<compile_context>
chip_gen: v6e
topology: v6e:2x2x1
jax: 0.10.0
libtpu: 0.0.40
codegen_flags: <defaults>
</compile_context>

<pallas_src>
import functools
import math

import jax
import jax.numpy as jnp
from jax.experimental import pallas as pl
from jax.experimental.pallas import tpu as pltpu


# ----------------------------------------------------------------------------
# In-kernel helpers
# ----------------------------------------------------------------------------
def _layer_norm(z, gamma, beta, eps):
    mean = jnp.mean(z, axis=-1, keepdims=True)
    var = jnp.mean(jnp.square(z - mean), axis=-1, keepdims=True)
    zn = (z - mean) * jax.lax.rsqrt(var + eps)
    return zn * gamma + beta


def _mha_core(q, k, v, mask, num_heads, scale):
    """Batched-head scaled-dot attention.

    q: (Sq, D) f32, k/v: (Sk, D) f32, mask: (Hm, Sq, Sk) additive or None.
    Returns (ctx (Sq, D) f32, probs (H, Sq, Sk) f32).
    """
    sq, d = q.shape
    sk = k.shape[0]
    dh = d // num_heads
    qh = jnp.swapaxes(q.reshape(sq, num_heads, dh), 0, 1)      # (H, Sq, dh)
    kh = jnp.swapaxes(k.reshape(sk, num_heads, dh), 0, 1)      # (H, Sk, dh)
    vh = jnp.swapaxes(v.reshape(sk, num_heads, dh), 0, 1)      # (H, Sk, dh)
    s = jnp.einsum("hqd,hkd->hqk", qh, kh,
                   preferred_element_type=jnp.float32) * scale  # (H, Sq, Sk)
    if mask is not None:
        s = s + mask                       # (Hm,Sq,Sk) broadcasts over heads
    s = s - jnp.max(s, axis=-1, keepdims=True)
    e = jnp.exp(s)
    p = e / jnp.sum(e, axis=-1, keepdims=True)                  # exact softmax
    ctx = jnp.einsum("hqk,hkd->hqd", p, vh,
                     preferred_element_type=jnp.float32)        # (H, Sq, dh)
    ctx = jnp.swapaxes(ctx, 0, 1).reshape(sq, d)                # (Sq, D)
    return ctx, p


# ----------------------------------------------------------------------------
# Whole-stack fused decoder kernel: one grid step = one (batch, layer) pair.
# ----------------------------------------------------------------------------
def _decoder_stack_kernel(*args, num_layers, num_heads, eps, scale,
                          with_self_mask, with_cross_mask):
    it = iter(args)
    emb_ref, pe_ref, enc_ref = next(it), next(it), next(it)
    sa_wqkv, sa_bqkv, sa_wo, sa_bo = next(it), next(it), next(it), next(it)
    g1, be1 = next(it), next(it)
    ca_wq, ca_bq, ca_wkv, ca_bkv = next(it), next(it), next(it), next(it)
    ca_wo, ca_bo = next(it), next(it)
    g2, be2 = next(it), next(it)
    w1, b1, w2, b2 = next(it), next(it), next(it), next(it)
    g3, be3 = next(it), next(it)
    smask_ref = next(it) if with_self_mask else None
    cmask_ref = next(it) if with_cross_mask else None
    dec_ref, sap_ref, cap_ref = next(it), next(it), next(it)

    l = pl.program_id(1)

    # Layer-0 prologue: dec = embedding + positional encoding (dropout=identity).
    @pl.when(l == 0)
    def _():
        dec_ref[0] = (emb_ref[0] + pe_ref[0]).astype(dec_ref.dtype)

    x = dec_ref[0].astype(jnp.float32)              # (Sq, D) current layer input
    d_model = x.shape[-1]

    smask = smask_ref[0].astype(jnp.float32) if with_self_mask else None
    cmask = cmask_ref[0].astype(jnp.float32) if with_cross_mask else None

    # ----------------- self attention + residual + LayerNorm ----------------
    qkv = jnp.dot(x.astype(sa_wqkv.dtype), sa_wqkv[0],
                  preferred_element_type=jnp.float32) + sa_bqkv[0]
    q = qkv[:, :d_model]
    k = qkv[:, d_model:2 * d_model]
    v = qkv[:, 2 * d_model:]
    ctx, p_self = _mha_core(q, k, v, smask, num_heads, scale)
    attn = jnp.dot(ctx.astype(sa_wo.dtype), sa_wo[0],
                   preferred_element_type=jnp.float32) + sa_bo[0]
    x = _layer_norm(x + attn, g1[0], be1[0], eps)

    # ----------------- cross attention + residual + LayerNorm ---------------
    q = jnp.dot(x.astype(ca_wq.dtype), ca_wq[0],
                preferred_element_type=jnp.float32) + ca_bq[0]
    kv = jnp.dot(enc_ref[0].astype(ca_wkv.dtype), ca_wkv[0],
                 preferred_element_type=jnp.float32) + ca_bkv[0]
    k, v = kv[:, :d_model], kv[:, d_model:]
    ctx, p_cross = _mha_core(q, k, v, cmask, num_heads, scale)
    attn = jnp.dot(ctx.astype(ca_wo.dtype), ca_wo[0],
                   preferred_element_type=jnp.float32) + ca_bo[0]
    x = _layer_norm(x + attn, g2[0], be2[0], eps)

    # ----------------- position-wise FFN + residual + LayerNorm -------------
    h = jnp.dot(x.astype(w1.dtype), w1[0],
                preferred_element_type=jnp.float32) + b1[0]
    h = jnp.maximum(h, 0.0)
    ff = jnp.dot(h.astype(w2.dtype), w2[0],
                 preferred_element_type=jnp.float32) + b2[0]
    x = _layer_norm(x + ff, g3[0], be3[0], eps)

    # Carry the decoder state in the resident output block.
    dec_ref[0] = x.astype(dec_ref.dtype)

    # Attention probabilities are only exported for the last layer.
    @pl.when(l == num_layers - 1)
    def _():
        sap_ref[0] = p_self.astype(sap_ref.dtype)
        cap_ref[0] = p_cross.astype(cap_ref.dtype)


# ----------------------------------------------------------------------------
# Host-side glue
# ----------------------------------------------------------------------------
def _prep_mask(mask, num_heads, sq, sk):
    """Normalize an additive attention mask to (Bm, Hm, Sq, Sk), Hm in {1, H}."""
    m = jnp.asarray(mask, jnp.float32)
    if m.ndim == 2:
        m = m[None, None]
    elif m.ndim == 3:
        m = m[:, None]
    hm = 1 if m.shape[1] == 1 else num_heads
    return jnp.broadcast_to(m, (m.shape[0], hm, sq, sk))


def decoder_forward(params, tokens, enc_outputs, self_mask=None, cross_mask=None,
                    num_heads=4, eps=1e-5, weights_dtype=jnp.bfloat16):
    B, S = tokens.shape
    D = params["embedding"].shape[1]
    Sk = enc_outputs.shape[1]
    L = params["sa_wqkv"].shape[0]
    F = params["ffn_w1"].shape[-1]
    assert D % num_heads == 0
    scale = 1.0 / math.sqrt(D // num_heads)

    # TODO(synk): the data-dependent embedding token gather stays as an XLA
    # jnp.take; everything after it runs in one fused Pallas kernel.
    emb = jnp.take(params["embedding"], tokens, axis=0)          # (B, S, D) f32
    pe = params["pos_encoding"][:S][None]                        # (1, S, D) f32

    inputs, in_specs = [], []
    vmem_est = [0]

    def single_buffer_spec(block_shape, index_map):
        # Grid-constant blocks never re-DMA; don't pay for double buffering.
        try:
            return pl.BlockSpec(block_shape, index_map, pipeline_mode=pl.Buffered(1))
        except TypeError:   # fallback for jax versions without pipeline_mode
            return pl.BlockSpec(block_shape, index_map)

    def add(arr, block_shape, index_map, buffers=2):
        inputs.append(arr)
        if buffers == 1:
            in_specs.append(single_buffer_spec(block_shape, index_map))
        else:
            in_specs.append(pl.BlockSpec(block_shape, index_map))
        vmem_est[0] += math.prod(block_shape) * arr.dtype.itemsize * buffers

    add(emb, (1, S, D), lambda b, l: (b, 0, 0))
    add(pe, (1, S, D), lambda b, l: (0, 0, 0), buffers=1)
    add(enc_outputs, (1, Sk, D), lambda b, l: (b, 0, 0))

    # Per-layer parameters are stacked over a leading layer axis and indexed by
    # the layer grid coordinate; matmul weights are cast to bf16 at the boundary.
    layer_params = [
        ("sa_wqkv", True), ("sa_bqkv", False), ("sa_wo", True), ("sa_bo", False),
        ("ln1_g", False), ("ln1_b", False),
        ("ca_wq", True), ("ca_bq", False), ("ca_wkv", True), ("ca_bkv", False),
        ("ca_wo", True), ("ca_bo", False), ("ln2_g", False), ("ln2_b", False),
        ("ffn_w1", True), ("ffn_b1", False), ("ffn_w2", True), ("ffn_b2", False),
        ("ln3_g", False), ("ln3_b", False),
    ]
    for name, is_weight in layer_params:
        arr = params[name]
        if is_weight:
            arr = arr.astype(weights_dtype)
        nrest = arr.ndim - 1
        add(arr, (1,) + arr.shape[1:], lambda b, l, _n=nrest: (l,) + (0,) * _n)

    with_self_mask = self_mask is not None
    with_cross_mask = cross_mask is not None
    if with_self_mask:
        sm = _prep_mask(self_mask, num_heads, S, S)
        if sm.shape[0] == 1:
            add(sm, (1,) + sm.shape[1:], lambda b, l: (0, 0, 0, 0), buffers=1)
        else:
            add(sm, (1,) + sm.shape[1:], lambda b, l: (b, 0, 0, 0))
    if with_cross_mask:
        cm = _prep_mask(cross_mask, num_heads, S, Sk)
        if cm.shape[0] == 1:
            add(cm, (1,) + cm.shape[1:], lambda b, l: (0, 0, 0, 0), buffers=1)
        else:
            add(cm, (1,) + cm.shape[1:], lambda b, l: (b, 0, 0, 0))

    out_shape = (
        jax.ShapeDtypeStruct((B, S, D), emb.dtype),
        jax.ShapeDtypeStruct((B, num_heads, S, S), jnp.float32),
        jax.ShapeDtypeStruct((B, num_heads, S, Sk), jnp.float32),
    )
    out_specs = (
        pl.BlockSpec((1, S, D), lambda b, l: (b, 0, 0)),
        pl.BlockSpec((1, num_heads, S, S), lambda b, l: (b, 0, 0, 0)),
        pl.BlockSpec((1, num_heads, S, Sk), lambda b, l: (b, 0, 0, 0)),
    )
    for os in out_shape:
        vmem_est[0] += math.prod(os.shape[1:]) * jnp.dtype(os.dtype).itemsize * 2

    # Rough in-kernel intermediate footprint (qkv, ffn hidden, scores/probs, x).
    interm = 4 * (S * 3 * D + S * F + 4 * num_heads * S * max(S, Sk) + 8 * S * D)
    vmem_limit = int(min(64 << 20, max(16 << 20, 1.5 * (vmem_est[0] + interm))))

    # TODO(synk): for long sequences / large d_model (or B==1 on v7x), add an
    # Sq-tile "parallel" grid axis with flash-style online softmax and K/N-tiled
    # FFN weights; this whole-stack fusion assumes the per-layer working set
    # (weights + (Sq,3D) qkv + (H,Sq,Sk) scores) fits VMEM.
    kernel = functools.partial(
        _decoder_stack_kernel, num_layers=L, num_heads=num_heads, eps=eps,
        scale=scale, with_self_mask=with_self_mask, with_cross_mask=with_cross_mask)

    dec, sa_prob, ca_prob = pl.pallas_call(
        kernel,
        out_shape=out_shape,
        grid=(B, L),                              # carry (layer) axis last
        in_specs=in_specs,
        out_specs=out_specs,
        compiler_params=pltpu.CompilerParams(
            dimension_semantics=("parallel", "arbitrary"),
            vmem_limit_bytes=vmem_limit),
    )(*inputs)
    return dec, sa_prob, ca_prob


# ----------------------------------------------------------------------------
# Deterministic parameter init (dropout treated as identity / eval mode)
# ----------------------------------------------------------------------------
def sinusoidal_pos_encoding(max_len, d):
    pos = jnp.arange(max_len, dtype=jnp.float32)[:, None]
    i = jnp.arange(0, d, 2, dtype=jnp.float32)
    inv_freq = jnp.exp(-jnp.log(10000.0) * i / d)
    pe = jnp.zeros((max_len, d), dtype=jnp.float32)
    pe = pe.at[:, 0::2].set(jnp.sin(pos * inv_freq))
    pe = pe.at[:, 1::2].set(jnp.cos(pos * inv_freq))
    return pe


def make_decoder_params(key, vocab_size, num_layers, max_len, embed_dim, ffn_dim):
    D, F, Lyr = embed_dim, ffn_dim, num_layers
    keys = jax.random.split(key, 8)
    nrm = lambda k, shape: jax.random.normal(k, shape, jnp.float32) * 0.02
    zeros = lambda shape: jnp.zeros(shape, jnp.float32)
    ones = lambda shape: jnp.ones(shape, jnp.float32)
    return {
        "embedding": nrm(keys[0], (vocab_size, D)),
        "pos_encoding": sinusoidal_pos_encoding(max_len, D),
        # self-attention: fused (D, 3D) QKV projection, stacked over layers
        "sa_wqkv": nrm(keys[1], (Lyr, D, 3 * D)),
        "sa_bqkv": zeros((Lyr, 1, 3 * D)),
        "sa_wo": nrm(keys[2], (Lyr, D, D)),
        "sa_bo": zeros((Lyr, 1, D)),
        "ln1_g": ones((Lyr, 1, D)), "ln1_b": zeros((Lyr, 1, D)),
        # cross-attention: Q plus fused (D, 2D) KV projection
        "ca_wq": nrm(keys[3], (Lyr, D, D)),
        "ca_bq": zeros((Lyr, 1, D)),
        "ca_wkv": nrm(keys[4], (Lyr, D, 2 * D)),
        "ca_bkv": zeros((Lyr, 1, 2 * D)),
        "ca_wo": nrm(keys[5], (Lyr, D, D)),
        "ca_bo": zeros((Lyr, 1, D)),
        "ln2_g": ones((Lyr, 1, D)), "ln2_b": zeros((Lyr, 1, D)),
        # position-wise FFN
        "ffn_w1": nrm(keys[6], (Lyr, D, F)),
        "ffn_b1": zeros((Lyr, 1, F)),
        "ffn_w2": nrm(keys[7], (Lyr, F, D)),
        "ffn_b2": zeros((Lyr, 1, D)),
        "ln3_g": ones((Lyr, 1, D)), "ln3_b": zeros((Lyr, 1, D)),
    }


# ----------------------------------------------------------------------------
# Main
# ----------------------------------------------------------------------------
if __name__ == "__main__":
    B, S_DEC, S_ENC = 2, 8, 8
    VOCAB, LAYERS, MAX_LEN = 100, 2, 16
    EMBED, FFN, HEADS, EPS = 32, 64, 4, 1e-5

    root = jax.random.PRNGKey(0)
    k_params, k_tok, k_enc = jax.random.split(root, 3)

    params = make_decoder_params(k_params, VOCAB, LAYERS, MAX_LEN, EMBED, FFN)
    tokens = jax.random.randint(k_tok, (B, S_DEC), 0, VOCAB)                  # (2, 8)
    enc_outputs = jax.random.normal(k_enc, (B, S_ENC, EMBED), jnp.float32)    # (2, 8, 32)

    # Causal self-attention mask (additive: 0 keep, -1e9 masked).
    causal = jnp.triu(jnp.ones((S_DEC, S_DEC), jnp.float32), k=1) * -1e9
    self_mask = causal[None, None, :, :]          # (1, 1, Sq, Sq)
    cross_mask = None                             # no padding mask in this demo

    fwd = jax.jit(functools.partial(decoder_forward, num_heads=HEADS, eps=EPS))
    dec_out, self_prob, cross_prob = fwd(params, tokens, enc_outputs,
                                         self_mask, cross_mask)
    jax.block_until_ready((dec_out, self_prob, cross_prob))

    assert dec_out.shape == (B, S_DEC, EMBED)
    assert self_prob.shape == (B, HEADS, S_DEC, S_DEC)
    assert cross_prob.shape == (B, HEADS, S_DEC, S_ENC)
    assert bool(jnp.all(jnp.isfinite(dec_out)))
    # exact softmax path: exported probabilities sum to ~1 along the key axis
    assert bool(jnp.all(jnp.abs(jnp.sum(self_prob, axis=-1) - 1.0) < 1e-3))
    assert bool(jnp.all(jnp.abs(jnp.sum(cross_prob, axis=-1) - 1.0) < 1e-3))
    print("KERNEL_OK")
</pallas_src>

<mosaic_0001>
module attributes {stable_mosaic.version = 11 : i64} {
  func.func @_decoder_stack_kernel(%arg0: i32, %arg1: i32, %arg2: memref<1x8x32xf32, #tpu.memory_space<vmem>>, %arg3: memref<1x8x32xf32, #tpu.memory_space<vmem>>, %arg4: memref<1x8x32xf32, #tpu.memory_space<vmem>>, %arg5: memref<1x32x96xbf16, #tpu.memory_space<vmem>>, %arg6: memref<1x1x96xf32, #tpu.memory_space<vmem>>, %arg7: memref<1x32x32xbf16, #tpu.memory_space<vmem>>, %arg8: memref<1x1x32xf32, #tpu.memory_space<vmem>>, %arg9: memref<1x1x32xf32, #tpu.memory_space<vmem>>, %arg10: memref<1x1x32xf32, #tpu.memory_space<vmem>>, %arg11: memref<1x32x32xbf16, #tpu.memory_space<vmem>>, %arg12: memref<1x1x32xf32, #tpu.memory_space<vmem>>, %arg13: memref<1x32x64xbf16, #tpu.memory_space<vmem>>, %arg14: memref<1x1x64xf32, #tpu.memory_space<vmem>>, %arg15: memref<1x32x32xbf16, #tpu.memory_space<vmem>>, %arg16: memref<1x1x32xf32, #tpu.memory_space<vmem>>, %arg17: memref<1x1x32xf32, #tpu.memory_space<vmem>>, %arg18: memref<1x1x32xf32, #tpu.memory_space<vmem>>, %arg19: memref<1x32x64xbf16, #tpu.memory_space<vmem>>, %arg20: memref<1x1x64xf32, #tpu.memory_space<vmem>>, %arg21: memref<1x64x32xbf16, #tpu.memory_space<vmem>>, %arg22: memref<1x1x32xf32, #tpu.memory_space<vmem>>, %arg23: memref<1x1x32xf32, #tpu.memory_space<vmem>>, %arg24: memref<1x1x32xf32, #tpu.memory_space<vmem>>, %arg25: memref<1x1x8x8xf32, #tpu.memory_space<vmem>>, %arg26: memref<1x8x32xf32, #tpu.memory_space<vmem>>, %arg27: memref<1x4x8x8xf32, #tpu.memory_space<vmem>>, %arg28: memref<1x4x8x8xf32, #tpu.memory_space<vmem>>) attributes {dimension_semantics = [#tpu.dimension_semantics<parallel>, #tpu.dimension_semantics<arbitrary>], iteration_bounds = array<i64: 2, 2>, scalar_prefetch = 0 : i64, scratch_operands = 0 : i64, tpu.core_type = #tpu.core_type<tc>, window_params = [{transform_indices = @transform_0, window_bounds = array<i64: 1, 8, 32>}, {pipeline_mode = #tpu.pipeline_mode<synchronous>, transform_indices = @transform_1, window_bounds = array<i64: 1, 8, 32>}, {transform_indices = @transform_2, window_bounds = array<i64: 1, 8, 32>}, {transform_indices = @transform_3, window_bounds = array<i64: 1, 32, 96>}, {transform_indices = @transform_4, window_bounds = array<i64: 1, 1, 96>}, {transform_indices = @transform_5, window_bounds = array<i64: 1, 32, 32>}, {transform_indices = @transform_6, window_bounds = array<i64: 1, 1, 32>}, {transform_indices = @transform_7, window_bounds = array<i64: 1, 1, 32>}, {transform_indices = @transform_8, window_bounds = array<i64: 1, 1, 32>}, {transform_indices = @transform_9, window_bounds = array<i64: 1, 32, 32>}, {transform_indices = @transform_10, window_bounds = array<i64: 1, 1, 32>}, {transform_indices = @transform_11, window_bounds = array<i64: 1, 32, 64>}, {transform_indices = @transform_12, window_bounds = array<i64: 1, 1, 64>}, {transform_indices = @transform_13, window_bounds = array<i64: 1, 32, 32>}, {transform_indices = @transform_14, window_bounds = array<i64: 1, 1, 32>}, {transform_indices = @transform_15, window_bounds = array<i64: 1, 1, 32>}, {transform_indices = @transform_16, window_bounds = array<i64: 1, 1, 32>}, {transform_indices = @transform_17, window_bounds = array<i64: 1, 32, 64>}, {transform_indices = @transform_18, window_bounds = array<i64: 1, 1, 64>}, {transform_indices = @transform_19, window_bounds = array<i64: 1, 64, 32>}, {transform_indices = @transform_20, window_bounds = array<i64: 1, 1, 32>}, {transform_indices = @transform_21, window_bounds = array<i64: 1, 1, 32>}, {transform_indices = @transform_22, window_bounds = array<i64: 1, 1, 32>}, {pipeline_mode = #tpu.pipeline_mode<synchronous>, transform_indices = @transform_23, window_bounds = array<i64: 1, 1, 8, 8>}, {transform_indices = @transform_24, window_bounds = array<i64: 1, 8, 32>}, {transform_indices = @transform_25, window_bounds = array<i64: 1, 4, 8, 8>}, {transform_indices = @transform_26, window_bounds = array<i64: 1, 4, 8, 8>}]} {
    %c0_i32 = arith.constant 0 : i32
    %0 = arith.cmpi eq, %arg1, %c0_i32 : i32
    %1 = arith.extui %0 : i1 to i32
    %c0_i32_0 = arith.constant 0 : i32
    %2 = arith.cmpi ne, %1, %c0_i32_0 : i32
    scf.if %2 {
      %c0_106 = arith.constant 0 : index
      %c0_107 = arith.constant 0 : index
      %c0_108 = arith.constant 0 : index
      %203 = vector.load %arg2[%c0_106, %c0_107, %c0_108] : memref<1x8x32xf32, #tpu.memory_space<vmem>>, vector<1x8x32xf32>
      %204 = vector.shape_cast %203 : vector<1x8x32xf32> to vector<8x32xf32>
      %c0_109 = arith.constant 0 : index
      %c0_110 = arith.constant 0 : index
      %c0_111 = arith.constant 0 : index
      %205 = vector.load %arg3[%c0_109, %c0_110, %c0_111] : memref<1x8x32xf32, #tpu.memory_space<vmem>>, vector<1x8x32xf32>
      %206 = vector.shape_cast %205 : vector<1x8x32xf32> to vector<8x32xf32>
      %207 = arith.addf %204, %206 : vector<8x32xf32>
      %c0_112 = arith.constant 0 : index
      %c0_113 = arith.constant 0 : index
      %c0_114 = arith.constant 0 : index
      %208 = vector.load %arg26[%c0_112, %c0_113, %c0_114] : memref<1x8x32xf32, #tpu.memory_space<vmem>>, vector<1x8x32xf32>
      %209 = vector.shape_cast %208 : vector<1x8x32xf32> to vector<8x32xf32>
      %210 = vector.shape_cast %207 : vector<8x32xf32> to vector<1x8x32xf32>
      tpu.vector_store %arg26[%c0_112, %c0_113, %c0_114], %210 {strides = array<i32>} : memref<1x8x32xf32, #tpu.memory_space<vmem>>, vector<1x8x32xf32>,
    } else {
    }
    %c0 = arith.constant 0 : index
    %c0_1 = arith.constant 0 : index
    %c0_2 = arith.constant 0 : index
    %3 = vector.load %arg26[%c0, %c0_1, %c0_2] : memref<1x8x32xf32, #tpu.memory_space<vmem>>, vector<1x8x32xf32>
    %4 = vector.shape_cast %3 : vector<1x8x32xf32> to vector<8x32xf32>
    %c0_3 = arith.constant 0 : index
    %c0_4 = arith.constant 0 : index
    %c0_5 = arith.constant 0 : index
    %c0_6 = arith.constant 0 : index
    %5 = vector.load %arg25[%c0_3, %c0_4, %c0_5, %c0_6] : memref<1x1x8x8xf32, #tpu.memory_space<vmem>>, vector<1x1x8x8xf32>
    %6 = vector.shape_cast %5 : vector<1x1x8x8xf32> to vector<1x8x8xf32>
    %7 = arith.truncf %4 : vector<8x32xf32> to vector<8x32xbf16>
    %c0_7 = arith.constant 0 : index
    %c0_8 = arith.constant 0 : index
    %c0_9 = arith.constant 0 : index
    %8 = vector.load %arg5[%c0_7, %c0_8, %c0_9] : memref<1x32x96xbf16, #tpu.memory_space<vmem>>, vector<1x32x96xbf16>
    %9 = vector.shape_cast %8 : vector<1x32x96xbf16> to vector<32x96xbf16>
    %cst = arith.constant dense<0.000000e+00> : vector<8x96xf32>
    %10 = tpu.matmul %7, %9, %cst {dimension_numbers = #tpu.dot_dimension_numbers<[1], [0], [0], [1], [0, 0, 1, 1], [], []>} : vector<8x32xbf16>, vector<32x96xbf16>, vector<8x96xf32> -> vector<8x96xf32>
    %c0_10 = arith.constant 0 : index
    %c0_11 = arith.constant 0 : index
    %c0_12 = arith.constant 0 : index
    %11 = vector.load %arg6[%c0_10, %c0_11, %c0_12] : memref<1x1x96xf32, #tpu.memory_space<vmem>>, vector<1x1x96xf32>
    %12 = vector.shape_cast %11 : vector<1x1x96xf32> to vector<1x96xf32>
    %13 = vector.broadcast %12 : vector<1x96xf32> to vector<8x96xf32>
    %14 = arith.addf %10, %13 : vector<8x96xf32>
    %15 = vector.extract_strided_slice %14 {offsets = [0, 0], sizes = [8, 32], strides = [1, 1]} : vector<8x96xf32> to vector<8x32xf32>
    %16 = vector.extract_strided_slice %14 {offsets = [0, 32], sizes = [8, 32], strides = [1, 1]} : vector<8x96xf32> to vector<8x32xf32>
    %17 = vector.extract_strided_slice %14 {offsets = [0, 64], sizes = [8, 32], strides = [1, 1]} : vector<8x96xf32> to vector<8x32xf32>
    %18 = vector.shape_cast %15 : vector<8x32xf32> to vector<8x4x8xf32>
    %19 = tpu.transpose %18, [1, 0, 2] : vector<8x4x8xf32> -> vector<4x8x8xf32>
    %20 = vector.shape_cast %16 : vector<8x32xf32> to vector<8x4x8xf32>
    %21 = tpu.transpose %20, [1, 0, 2] : vector<8x4x8xf32> -> vector<4x8x8xf32>
    %22 = vector.shape_cast %17 : vector<8x32xf32> to vector<8x4x8xf32>
    %23 = tpu.transpose %22, [1, 0, 2] : vector<8x4x8xf32> -> vector<4x8x8xf32>
    "tpu.trace_start"() <{level = 10 : i32, message = "hqd,hkd->hqk"}> : () -> ()
    %cst_13 = arith.constant dense<0.000000e+00> : vector<4x8x8xf32>
    %24 = tpu.matmul %19, %21, %cst_13 {dimension_numbers = #tpu.dot_dimension_numbers<[2], [2], [1], [1], [0, 0, 0, 1, 1, 1], [0], [0]>} : vector<4x8x8xf32>, vector<4x8x8xf32>, vector<4x8x8xf32> -> vector<4x8x8xf32>
    "tpu.trace_stop"() : () -> ()
    %cst_14 = arith.constant 0.353553385 : f32
    %25 = vector.broadcast %cst_14 : f32 to vector<4x8x8xf32>
    %26 = arith.mulf %24, %25 : vector<4x8x8xf32>
    %27 = vector.broadcast %6 : vector<1x8x8xf32> to vector<4x8x8xf32>
    %28 = arith.addf %26, %27 : vector<4x8x8xf32>
    %cst_15 = arith.constant dense<0xFF800000> : vector<4x8xf32>
    %29 = vector.multi_reduction <maximumf>, %28, %cst_15 [2] : vector<4x8x8xf32> to vector<4x8xf32>
    %30 = vector.shape_cast %29 : vector<4x8xf32> to vector<4x8x1xf32>
    %31 = vector.broadcast %30 : vector<4x8x1xf32> to vector<4x8x8xf32>
    %32 = arith.subf %28, %31 : vector<4x8x8xf32>
    %33 = math.exp %32 : vector<4x8x8xf32>
    %cst_16 = arith.constant dense<0.000000e+00> : vector<4x8xf32>
    %34 = vector.multi_reduction <add>, %33, %cst_16 [2] : vector<4x8x8xf32> to vector<4x8xf32>
    %35 = vector.shape_cast %34 : vector<4x8xf32> to vector<4x8x1xf32>
    %36 = vector.broadcast %35 : vector<4x8x1xf32> to vector<4x8x8xf32>
    %37 = arith.divf %33, %36 : vector<4x8x8xf32>
    "tpu.trace_start"() <{level = 10 : i32, message = "hqk,hkd->hqd"}> : () -> ()
    %cst_17 = arith.constant dense<0.000000e+00> : vector<4x8x8xf32>
    %38 = tpu.matmul %37, %23, %cst_17 {dimension_numbers = #tpu.dot_dimension_numbers<[2], [1], [1], [2], [0, 0, 0, 1, 1, 2], [0], [0]>} : vector<4x8x8xf32>, vector<4x8x8xf32>, vector<4x8x8xf32> -> vector<4x8x8xf32>
    "tpu.trace_stop"() : () -> ()
    %39 = tpu.transpose %38, [1, 0, 2] : vector<4x8x8xf32> -> vector<8x4x8xf32>
    %40 = vector.shape_cast %39 : vector<8x4x8xf32> to vector<8x32xf32>
    %41 = arith.truncf %40 : vector<8x32xf32> to vector<8x32xbf16>
    %c0_18 = arith.constant 0 : index
    %c0_19 = arith.constant 0 : index
    %c0_20 = arith.constant 0 : index
    %42 = vector.load %arg7[%c0_18, %c0_19, %c0_20] : memref<1x32x32xbf16, #tpu.memory_space<vmem>>, vector<1x32x32xbf16>
    %43 = vector.shape_cast %42 : vector<1x32x32xbf16> to vector<32x32xbf16>
    %cst_21 = arith.constant dense<0.000000e+00> : vector<8x32xf32>
    %44 = tpu.matmul %41, %43, %cst_21 {dimension_numbers = #tpu.dot_dimension_numbers<[1], [0], [0], [1], [0, 0, 1, 1], [], []>} : vector<8x32xbf16>, vector<32x32xbf16>, vector<8x32xf32> -> vector<8x32xf32>
    %c0_22 = arith.constant 0 : index
    %c0_23 = arith.constant 0 : index
    %c0_24 = arith.constant 0 : index
    %45 = vector.load %arg8[%c0_22, %c0_23, %c0_24] : memref<1x1x32xf32, #tpu.memory_space<vmem>>, vector<1x1x32xf32>
    %46 = vector.shape_cast %45 : vector<1x1x32xf32> to vector<1x32xf32>
    %47 = vector.broadcast %46 : vector<1x32xf32> to vector<8x32xf32>
    %48 = arith.addf %44, %47 : vector<8x32xf32>
    %49 = arith.addf %4, %48 : vector<8x32xf32>
    %c0_25 = arith.constant 0 : index
    %c0_26 = arith.constant 0 : index
    %c0_27 = arith.constant 0 : index
    %50 = vector.load %arg9[%c0_25, %c0_26, %c0_27] : memref<1x1x32xf32, #tpu.memory_space<vmem>>, vector<1x1x32xf32>
    %51 = vector.shape_cast %50 : vector<1x1x32xf32> to vector<1x32xf32>
    %c0_28 = arith.constant 0 : index
    %c0_29 = arith.constant 0 : index
    %c0_30 = arith.constant 0 : index
    %52 = vector.load %arg10[%c0_28, %c0_29, %c0_30] : memref<1x1x32xf32, #tpu.memory_space<vmem>>, vector<1x1x32xf32>
    %53 = vector.shape_cast %52 : vector<1x1x32xf32> to vector<1x32xf32>
    %cst_31 = arith.constant dense<0.000000e+00> : vector<8xf32>
    %54 = vector.multi_reduction <add>, %49, %cst_31 [1] : vector<8x32xf32> to vector<8xf32>
    %55 = vector.shape_cast %54 : vector<8xf32> to vector<8x1xf32>
    %cst_32 = arith.constant 3.200000e+01 : f32
    %56 = vector.broadcast %cst_32 : f32 to vector<8x1xf32>
    %57 = arith.divf %55, %56 : vector<8x1xf32>
    %58 = vector.broadcast %57 : vector<8x1xf32> to vector<8x32xf32>
    %59 = arith.subf %49, %58 : vector<8x32xf32>
    %60 = arith.mulf %59, %59 : vector<8x32xf32>
    %cst_33 = arith.constant dense<0.000000e+00> : vector<8xf32>
    %61 = vector.multi_reduction <add>, %60, %cst_33 [1] : vector<8x32xf32> to vector<8xf32>
    %62 = vector.shape_cast %61 : vector<8xf32> to vector<8x1xf32>
    %cst_34 = arith.constant 3.200000e+01 : f32
    %63 = vector.broadcast %cst_34 : f32 to vector<8x1xf32>
    %64 = arith.divf %62, %63 : vector<8x1xf32>
    %65 = vector.broadcast %57 : vector<8x1xf32> to vector<8x32xf32>
    %66 = arith.subf %49, %65 : vector<8x32xf32>
    %cst_35 = arith.constant 9.99999974E-6 : f32
    %67 = vector.broadcast %cst_35 : f32 to vector<8x1xf32>
    %68 = arith.addf %64, %67 : vector<8x1xf32>
    %69 = math.rsqrt %68 : vector<8x1xf32>
    %70 = vector.broadcast %69 : vector<8x1xf32> to vector<8x32xf32>
    %71 = arith.mulf %66, %70 : vector<8x32xf32>
    %72 = vector.broadcast %51 : vector<1x32xf32> to vector<8x32xf32>
    %73 = arith.mulf %71, %72 : vector<8x32xf32>
    %74 = vector.broadcast %53 : vector<1x32xf32> to vector<8x32xf32>
    %75 = arith.addf %73, %74 : vector<8x32xf32>
    %76 = arith.truncf %75 : vector<8x32xf32> to vector<8x32xbf16>
    %c0_36 = arith.constant 0 : index
    %c0_37 = arith.constant 0 : index
    %c0_38 = arith.constant 0 : index
    %77 = vector.load %arg11[%c0_36, %c0_37, %c0_38] : memref<1x32x32xbf16, #tpu.memory_space<vmem>>, vector<1x32x32xbf16>
    %78 = vector.shape_cast %77 : vector<1x32x32xbf16> to vector<32x32xbf16>
    %cst_39 = arith.constant dense<0.000000e+00> : vector<8x32xf32>
    %79 = tpu.matmul %76, %78, %cst_39 {dimension_numbers = #tpu.dot_dimension_numbers<[1], [0], [0], [1], [0, 0, 1, 1], [], []>} : vector<8x32xbf16>, vector<32x32xbf16>, vector<8x32xf32> -> vector<8x32xf32>
    %c0_40 = arith.constant 0 : index
    %c0_41 = arith.constant 0 : index
    %c0_42 = arith.constant 0 : index
    %80 = vector.load %arg12[%c0_40, %c0_41, %c0_42] : memref<1x1x32xf32, #tpu.memory_space<vmem>>, vector<1x1x32xf32>
    %81 = vector.shape_cast %80 : vector<1x1x32xf32> to vector<1x32xf32>
    %82 = vector.broadcast %81 : vector<1x32xf32> to vector<8x32xf32>
    %83 = arith.addf %79, %82 : vector<8x32xf32>
    %c0_43 = arith.constant 0 : index
    %c0_44 = arith.constant 0 : index
    %c0_45 = arith.constant 0 : index
    %84 = vector.load %arg4[%c0_43, %c0_44, %c0_45] : memref<1x8x32xf32, #tpu.memory_space<vmem>>, vector<1x8x32xf32>
    %85 = vector.shape_cast %84 : vector<1x8x32xf32> to vector<8x32xf32>
    %86 = arith.truncf %85 : vector<8x32xf32> to vector<8x32xbf16>
    %c0_46 = arith.constant 0 : index
    %c0_47 = arith.constant 0 : index
    %c0_48 = arith.constant 0 : index
    %87 = vector.load %arg13[%c0_46, %c0_47, %c0_48] : memref<1x32x64xbf16, #tpu.memory_space<vmem>>, vector<1x32x64xbf16>
    %88 = vector.shape_cast %87 : vector<1x32x64xbf16> to vector<32x64xbf16>
    %cst_49 = arith.constant dense<0.000000e+00> : vector<8x64xf32>
    %89 = tpu.matmul %86, %88, %cst_49 {dimension_numbers = #tpu.dot_dimension_numbers<[1], [0], [0], [1], [0, 0, 1, 1], [], []>} : vector<8x32xbf16>, vector<32x64xbf16>, vector<8x64xf32> -> vector<8x64xf32>
    %c0_50 = arith.constant 0 : index
    %c0_51 = arith.constant 0 : index
    %c0_52 = arith.constant 0 : index
    %90 = vector.load %arg14[%c0_50, %c0_51, %c0_52] : memref<1x1x64xf32, #tpu.memory_space<vmem>>, vector<1x1x64xf32>
    %91 = vector.shape_cast %90 : vector<1x1x64xf32> to vector<1x64xf32>
    %92 = vector.broadcast %91 : vector<1x64xf32> to vector<8x64xf32>
    %93 = arith.addf %89, %92 : vector<8x64xf32>
    %94 = vector.extract_strided_slice %93 {offsets = [0, 0], sizes = [8, 32], strides = [1, 1]} : vector<8x64xf32> to vector<8x32xf32>
    %95 = vector.extract_strided_slice %93 {offsets = [0, 32], sizes = [8, 32], strides = [1, 1]} : vector<8x64xf32> to vector<8x32xf32>
    %96 = vector.shape_cast %83 : vector<8x32xf32> to vector<8x4x8xf32>
    %97 = tpu.transpose %96, [1, 0, 2] : vector<8x4x8xf32> -> vector<4x8x8xf32>
    %98 = vector.shape_cast %94 : vector<8x32xf32> to vector<8x4x8xf32>
    %99 = tpu.transpose %98, [1, 0, 2] : vector<8x4x8xf32> -> vector<4x8x8xf32>
    %100 = vector.shape_cast %95 : vector<8x32xf32> to vector<8x4x8xf32>
    %101 = tpu.transpose %100, [1, 0, 2] : vector<8x4x8xf32> -> vector<4x8x8xf32>
    "tpu.trace_start"() <{level = 10 : i32, message = "hqd,hkd->hqk"}> : () -> ()
    %cst_53 = arith.constant dense<0.000000e+00> : vector<4x8x8xf32>
    %102 = tpu.matmul %97, %99, %cst_53 {dimension_numbers = #tpu.dot_dimension_numbers<[2], [2], [1], [1], [0, 0, 0, 1, 1, 1], [0], [0]>} : vector<4x8x8xf32>, vector<4x8x8xf32>, vector<4x8x8xf32> -> vector<4x8x8xf32>
    "tpu.trace_stop"() : () -> ()
    %cst_54 = arith.constant 0.353553385 : f32
    %103 = vector.broadcast %cst_54 : f32 to vector<4x8x8xf32>
    %104 = arith.mulf %102, %103 : vector<4x8x8xf32>
    %cst_55 = arith.constant dense<0xFF800000> : vector<4x8xf32>
    %105 = vector.multi_reduction <maximumf>, %104, %cst_55 [2] : vector<4x8x8xf32> to vector<4x8xf32>
    %106 = vector.shape_cast %105 : vector<4x8xf32> to vector<4x8x1xf32>
    %107 = vector.broadcast %106 : vector<4x8x1xf32> to vector<4x8x8xf32>
    %108 = arith.subf %104, %107 : vector<4x8x8xf32>
    %109 = math.exp %108 : vector<4x8x8xf32>
    %cst_56 = arith.constant dense<0.000000e+00> : vector<4x8xf32>
    %110 = vector.multi_reduction <add>, %109, %cst_56 [2] : vector<4x8x8xf32> to vector<4x8xf32>
    %111 = vector.shape_cast %110 : vector<4x8xf32> to vector<4x8x1xf32>
    %112 = vector.broadcast %111 : vector<4x8x1xf32> to vector<4x8x8xf32>
    %113 = arith.divf %109, %112 : vector<4x8x8xf32>
    "tpu.trace_start"() <{level = 10 : i32, message = "hqk,hkd->hqd"}> : () -> ()
    %cst_57 = arith.constant dense<0.000000e+00> : vector<4x8x8xf32>
    %114 = tpu.matmul %113, %101, %cst_57 {dimension_numbers = #tpu.dot_dimension_numbers<[2], [1], [1], [2], [0, 0, 0, 1, 1, 2], [0], [0]>} : vector<4x8x8xf32>, vector<4x8x8xf32>, vector<4x8x8xf32> -> vector<4x8x8xf32>
    "tpu.trace_stop"() : () -> ()
    %115 = tpu.transpose %114, [1, 0, 2] : vector<4x8x8xf32> -> vector<8x4x8xf32>
    %116 = vector.shape_cast %115 : vector<8x4x8xf32> to vector<8x32xf32>
    %117 = arith.truncf %116 : vector<8x32xf32> to vector<8x32xbf16>
    %c0_58 = arith.constant 0 : index
    %c0_59 = arith.constant 0 : index
    %c0_60 = arith.constant 0 : index
    %118 = vector.load %arg15[%c0_58, %c0_59, %c0_60] : memref<1x32x32xbf16, #tpu.memory_space<vmem>>, vector<1x32x32xbf16>
    %119 = vector.shape_cast %118 : vector<1x32x32xbf16> to vector<32x32xbf16>
    %cst_61 = arith.constant dense<0.000000e+00> : vector<8x32xf32>
    %120 = tpu.matmul %117, %119, %cst_61 {dimension_numbers = #tpu.dot_dimension_numbers<[1], [0], [0], [1], [0, 0, 1, 1], [], []>} : vector<8x32xbf16>, vector<32x32xbf16>, vector<8x32xf32> -> vector<8x32xf32>
    %c0_62 = arith.constant 0 : index
    %c0_63 = arith.constant 0 : index
    %c0_64 = arith.constant 0 : index
    %121 = vector.load %arg16[%c0_62, %c0_63, %c0_64] : memref<1x1x32xf32, #tpu.memory_space<vmem>>, vector<1x1x32xf32>
    %122 = vector.shape_cast %121 : vector<1x1x32xf32> to vector<1x32xf32>
    %123 = vector.broadcast %122 : vector<1x32xf32> to vector<8x32xf32>
    %124 = arith.addf %120, %123 : vector<8x32xf32>
    %125 = arith.addf %75, %124 : vector<8x32xf32>
    %c0_65 = arith.constant 0 : index
    %c0_66 = arith.constant 0 : index
    %c0_67 = arith.constant 0 : index
    %126 = vector.load %arg17[%c0_65, %c0_66, %c0_67] : memref<1x1x32xf32, #tpu.memory_space<vmem>>, vector<1x1x32xf32>
    %127 = vector.shape_cast %126 : vector<1x1x32xf32> to vector<1x32xf32>
    %c0_68 = arith.constant 0 : index
    %c0_69 = arith.constant 0 : index
    %c0_70 = arith.constant 0 : index
    %128 = vector.load %arg18[%c0_68, %c0_69, %c0_70] : memref<1x1x32xf32, #tpu.memory_space<vmem>>, vector<1x1x32xf32>
    %129 = vector.shape_cast %128 : vector<1x1x32xf32> to vector<1x32xf32>
    %cst_71 = arith.constant dense<0.000000e+00> : vector<8xf32>
    %130 = vector.multi_reduction <add>, %125, %cst_71 [1] : vector<8x32xf32> to vector<8xf32>
    %131 = vector.shape_cast %130 : vector<8xf32> to vector<8x1xf32>
    %cst_72 = arith.constant 3.200000e+01 : f32
    %132 = vector.broadcast %cst_72 : f32 to vector<8x1xf32>
    %133 = arith.divf %131, %132 : vector<8x1xf32>
    %134 = vector.broadcast %133 : vector<8x1xf32> to vector<8x32xf32>
    %135 = arith.subf %125, %134 : vector<8x32xf32>
    %136 = arith.mulf %135, %135 : vector<8x32xf32>
    %cst_73 = arith.constant dense<0.000000e+00> : vector<8xf32>
    %137 = vector.multi_reduction <add>, %136, %cst_73 [1] : vector<8x32xf32> to vector<8xf32>
    %138 = vector.shape_cast %137 : vector<8xf32> to vector<8x1xf32>
    %cst_74 = arith.constant 3.200000e+01 : f32
    %139 = vector.broadcast %cst_74 : f32 to vector<8x1xf32>
    %140 = arith.divf %138, %139 : vector<8x1xf32>
    %141 = vector.broadcast %133 : vector<8x1xf32> to vector<8x32xf32>
    %142 = arith.subf %125, %141 : vector<8x32xf32>
    %cst_75 = arith.constant 9.99999974E-6 : f32
    %143 = vector.broadcast %cst_75 : f32 to vector<8x1xf32>
    %144 = arith.addf %140, %143 : vector<8x1xf32>
    %145 = math.rsqrt %144 : vector<8x1xf32>
    %146 = vector.broadcast %145 : vector<8x1xf32> to vector<8x32xf32>
    %147 = arith.mulf %142, %146 : vector<8x32xf32>
    %148 = vector.broadcast %127 : vector<1x32xf32> to vector<8x32xf32>
    %149 = arith.mulf %147, %148 : vector<8x32xf32>
    %150 = vector.broadcast %129 : vector<1x32xf32> to vector<8x32xf32>
    %151 = arith.addf %149, %150 : vector<8x32xf32>
    %152 = arith.truncf %151 : vector<8x32xf32> to vector<8x32xbf16>
    %c0_76 = arith.constant 0 : index
    %c0_77 = arith.constant 0 : index
    %c0_78 = arith.constant 0 : index
    %153 = vector.load %arg19[%c0_76, %c0_77, %c0_78] : memref<1x32x64xbf16, #tpu.memory_space<vmem>>, vector<1x32x64xbf16>
    %154 = vector.shape_cast %153 : vector<1x32x64xbf16> to vector<32x64xbf16>
    %cst_79 = arith.constant dense<0.000000e+00> : vector<8x64xf32>
    %155 = tpu.matmul %152, %154, %cst_79 {dimension_numbers = #tpu.dot_dimension_numbers<[1], [0], [0], [1], [0, 0, 1, 1], [], []>} : vector<8x32xbf16>, vector<32x64xbf16>, vector<8x64xf32> -> vector<8x64xf32>
    %c0_80 = arith.constant 0 : index
    %c0_81 = arith.constant 0 : index
    %c0_82 = arith.constant 0 : index
    %156 = vector.load %arg20[%c0_80, %c0_81, %c0_82] : memref<1x1x64xf32, #tpu.memory_space<vmem>>, vector<1x1x64xf32>
    %157 = vector.shape_cast %156 : vector<1x1x64xf32> to vector<1x64xf32>
    %158 = vector.broadcast %157 : vector<1x64xf32> to vector<8x64xf32>
    %159 = arith.addf %155, %158 : vector<8x64xf32>
    %cst_83 = arith.constant 0.000000e+00 : f32
    %160 = vector.broadcast %cst_83 : f32 to vector<8x64xf32>
    %161 = arith.maximumf %159, %160 : vector<8x64xf32>
    %162 = arith.truncf %161 : vector<8x64xf32> to vector<8x64xbf16>
    %c0_84 = arith.constant 0 : index
    %c0_85 = arith.constant 0 : index
    %c0_86 = arith.constant 0 : index
    %163 = vector.load %arg21[%c0_84, %c0_85, %c0_86] : memref<1x64x32xbf16, #tpu.memory_space<vmem>>, vector<1x64x32xbf16>
    %164 = vector.shape_cast %163 : vector<1x64x32xbf16> to vector<64x32xbf16>
    %cst_87 = arith.constant dense<0.000000e+00> : vector<8x32xf32>
    %165 = tpu.matmul %162, %164, %cst_87 {dimension_numbers = #tpu.dot_dimension_numbers<[1], [0], [0], [1], [0, 0, 1, 1], [], []>} : vector<8x64xbf16>, vector<64x32xbf16>, vector<8x32xf32> -> vector<8x32xf32>
    %c0_88 = arith.constant 0 : index
    %c0_89 = arith.constant 0 : index
    %c0_90 = arith.constant 0 : index
    %166 = vector.load %arg22[%c0_88, %c0_89, %c0_90] : memref<1x1x32xf32, #tpu.memory_space<vmem>>, vector<1x1x32xf32>
    %167 = vector.shape_cast %166 : vector<1x1x32xf32> to vector<1x32xf32>
    %168 = vector.broadcast %167 : vector<1x32xf32> to vector<8x32xf32>
    %169 = arith.addf %165, %168 : vector<8x32xf32>
    %170 = arith.addf %151, %169 : vector<8x32xf32>
    %c0_91 = arith.constant 0 : index
    %c0_92 = arith.constant 0 : index
    %c0_93 = arith.constant 0 : index
    %171 = vector.load %arg23[%c0_91, %c0_92, %c0_93] : memref<1x1x32xf32, #tpu.memory_space<vmem>>, vector<1x1x32xf32>
    %172 = vector.shape_cast %171 : vector<1x1x32xf32> to vector<1x32xf32>
    %c0_94 = arith.constant 0 : index
    %c0_95 = arith.constant 0 : index
    %c0_96 = arith.constant 0 : index
    %173 = vector.load %arg24[%c0_94, %c0_95, %c0_96] : memref<1x1x32xf32, #tpu.memory_space<vmem>>, vector<1x1x32xf32>
    %174 = vector.shape_cast %173 : vector<1x1x32xf32> to vector<1x32xf32>
    %cst_97 = arith.constant dense<0.000000e+00> : vector<8xf32>
    %175 = vector.multi_reduction <add>, %170, %cst_97 [1] : vector<8x32xf32> to vector<8xf32>
    %176 = vector.shape_cast %175 : vector<8xf32> to vector<8x1xf32>
    %cst_98 = arith.constant 3.200000e+01 : f32
    %177 = vector.broadcast %cst_98 : f32 to vector<8x1xf32>
    %178 = arith.divf %176, %177 : vector<8x1xf32>
    %179 = vector.broadcast %178 : vector<8x1xf32> to vector<8x32xf32>
    %180 = arith.subf %170, %179 : vector<8x32xf32>
    %181 = arith.mulf %180, %180 : vector<8x32xf32>
    %cst_99 = arith.constant dense<0.000000e+00> : vector<8xf32>
    %182 = vector.multi_reduction <add>, %181, %cst_99 [1] : vector<8x32xf32> to vector<8xf32>
    %183 = vector.shape_cast %182 : vector<8xf32> to vector<8x1xf32>
    %cst_100 = arith.constant 3.200000e+01 : f32
    %184 = vector.broadcast %cst_100 : f32 to vector<8x1xf32>
    %185 = arith.divf %183, %184 : vector<8x1xf32>
    %186 = vector.broadcast %178 : vector<8x1xf32> to vector<8x32xf32>
    %187 = arith.subf %170, %186 : vector<8x32xf32>
    %cst_101 = arith.constant 9.99999974E-6 : f32
    %188 = vector.broadcast %cst_101 : f32 to vector<8x1xf32>
    %189 = arith.addf %185, %188 : vector<8x1xf32>
    %190 = math.rsqrt %189 : vector<8x1xf32>
    %191 = vector.broadcast %190 : vector<8x1xf32> to vector<8x32xf32>
    %192 = arith.mulf %187, %191 : vector<8x32xf32>
    %193 = vector.broadcast %172 : vector<1x32xf32> to vector<8x32xf32>
    %194 = arith.mulf %192, %193 : vector<8x32xf32>
    %195 = vector.broadcast %174 : vector<1x32xf32> to vector<8x32xf32>
    %196 = arith.addf %194, %195 : vector<8x32xf32>
    %c0_102 = arith.constant 0 : index
    %c0_103 = arith.constant 0 : index
    %c0_104 = arith.constant 0 : index
    %197 = vector.load %arg26[%c0_102, %c0_103, %c0_104] : memref<1x8x32xf32, #tpu.memory_space<vmem>>, vector<1x8x32xf32>
    %198 = vector.shape_cast %197 : vector<1x8x32xf32> to vector<8x32xf32>
    %199 = vector.shape_cast %196 : vector<8x32xf32> to vector<1x8x32xf32>
    tpu.vector_store %arg26[%c0_102, %c0_103, %c0_104], %199 {strides = array<i32>} : memref<1x8x32xf32, #tpu.memory_space<vmem>>, vector<1x8x32xf32>,
    %c1_i32 = arith.constant 1 : i32
    %200 = arith.cmpi eq, %arg1, %c1_i32 : i32
    %201 = arith.extui %200 : i1 to i32
    %c0_i32_105 = arith.constant 0 : i32
    %202 = arith.cmpi ne, %201, %c0_i32_105 : i32
    scf.if %202 {
      %c0_106 = arith.constant 0 : index
      %c0_107 = arith.constant 0 : index
      %c0_108 = arith.constant 0 : index
      %c0_109 = arith.constant 0 : index
      %203 = vector.load %arg27[%c0_106, %c0_107, %c0_108, %c0_109] : memref<1x4x8x8xf32, #tpu.memory_space<vmem>>, vector<1x4x8x8xf32>
      %204 = vector.shape_cast %203 : vector<1x4x8x8xf32> to vector<4x8x8xf32>
      %205 = vector.shape_cast %37 : vector<4x8x8xf32> to vector<1x4x8x8xf32>
      tpu.vector_store %arg27[%c0_106, %c0_107, %c0_108, %c0_109], %205 {strides = array<i32>} : memref<1x4x8x8xf32, #tpu.memory_space<vmem>>, vector<1x4x8x8xf32>,
      %c0_110 = arith.constant 0 : index
      %c0_111 = arith.constant 0 : index
      %c0_112 = arith.constant 0 : index
      %c0_113 = arith.constant 0 : index
      %206 = vector.load %arg28[%c0_110, %c0_111, %c0_112, %c0_113] : memref<1x4x8x8xf32, #tpu.memory_space<vmem>>, vector<1x4x8x8xf32>
      %207 = vector.shape_cast %206 : vector<1x4x8x8xf32> to vector<4x8x8xf32>
      %208 = vector.shape_cast %113 : vector<4x8x8xf32> to vector<1x4x8x8xf32>
      tpu.vector_store %arg28[%c0_110, %c0_111, %c0_112, %c0_113], %208 {strides = array<i32>} : memref<1x4x8x8xf32, #tpu.memory_space<vmem>>, vector<1x4x8x8xf32>,
    } else {
    }
    return
  }
  func.func @transform_0(%arg0: i32, %arg1: i32) -> (i32, i32, i32) {
    %c0_i32 = arith.constant 0 : i32
    %c0_i32_0 = arith.constant 0 : i32
    %c0_i32_1 = arith.constant 0 : i32
    return %arg0, %c0_i32, %c0_i32_0 : i32, i32, i32
  }
  func.func @transform_1(%arg0: i32, %arg1: i32) -> (i32, i32, i32) {
    %c0_i32 = arith.constant 0 : i32
    %c0_i32_0 = arith.constant 0 : i32
    %c0_i32_1 = arith.constant 0 : i32
    %c0_i32_2 = arith.constant 0 : i32
    return %c0_i32, %c0_i32_0, %c0_i32_1 : i32, i32, i32
  }
  func.func @transform_2(%arg0: i32, %arg1: i32) -> (i32, i32, i32) {
    %c0_i32 = arith.constant 0 : i32
    %c0_i32_0 = arith.constant 0 : i32
    %c0_i32_1 = arith.constant 0 : i32
    return %arg0, %c0_i32, %c0_i32_0 : i32, i32, i32
  }
  func.func @transform_3(%arg0: i32, %arg1: i32) -> (i32, i32, i32) {
    %c0_i32 = arith.constant 0 : i32
    %c0_i32_0 = arith.constant 0 : i32
    %c0_i32_1 = arith.constant 0 : i32
    return %arg1, %c0_i32, %c0_i32_0 : i32, i32, i32
  }
  func.func @transform_4(%arg0: i32, %arg1: i32) -> (i32, i32, i32) {
    %c0_i32 = arith.constant 0 : i32
    %c0_i32_0 = arith.constant 0 : i32
    %c0_i32_1 = arith.constant 0 : i32
    return %arg1, %c0_i32, %c0_i32_0 : i32, i32, i32
  }
  func.func @transform_5(%arg0: i32, %arg1: i32) -> (i32, i32, i32) {
    %c0_i32 = arith.constant 0 : i32
    %c0_i32_0 = arith.constant 0 : i32
    %c0_i32_1 = arith.constant 0 : i32
    return %arg1, %c0_i32, %c0_i32_0 : i32, i32, i32
  }
  func.func @transform_6(%arg0: i32, %arg1: i32) -> (i32, i32, i32) {
    %c0_i32 = arith.constant 0 : i32
    %c0_i32_0 = arith.constant 0 : i32
    %c0_i32_1 = arith.constant 0 : i32
    return %arg1, %c0_i32, %c0_i32_0 : i32, i32, i32
  }
  func.func @transform_7(%arg0: i32, %arg1: i32) -> (i32, i32, i32) {
    %c0_i32 = arith.constant 0 : i32
    %c0_i32_0 = arith.constant 0 : i32
    %c0_i32_1 = arith.constant 0 : i32
    return %arg1, %c0_i32, %c0_i32_0 : i32, i32, i32
  }
  func.func @transform_8(%arg0: i32, %arg1: i32) -> (i32, i32, i32) {
    %c0_i32 = arith.constant 0 : i32
    %c0_i32_0 = arith.constant 0 : i32
    %c0_i32_1 = arith.constant 0 : i32
    return %arg1, %c0_i32, %c0_i32_0 : i32, i32, i32
  }
  func.func @transform_9(%arg0: i32, %arg1: i32) -> (i32, i32, i32) {
    %c0_i32 = arith.constant 0 : i32
    %c0_i32_0 = arith.constant 0 : i32
    %c0_i32_1 = arith.constant 0 : i32
    return %arg1, %c0_i32, %c0_i32_0 : i32, i32, i32
  }
  func.func @transform_10(%arg0: i32, %arg1: i32) -> (i32, i32, i32) {
    %c0_i32 = arith.constant 0 : i32
    %c0_i32_0 = arith.constant 0 : i32
    %c0_i32_1 = arith.constant 0 : i32
    return %arg1, %c0_i32, %c0_i32_0 : i32, i32, i32
  }
  func.func @transform_11(%arg0: i32, %arg1: i32) -> (i32, i32, i32) {
    %c0_i32 = arith.constant 0 : i32
    %c0_i32_0 = arith.constant 0 : i32
    %c0_i32_1 = arith.constant 0 : i32
    return %arg1, %c0_i32, %c0_i32_0 : i32, i32, i32
  }
  func.func @transform_12(%arg0: i32, %arg1: i32) -> (i32, i32, i32) {
    %c0_i32 = arith.constant 0 : i32
    %c0_i32_0 = arith.constant 0 : i32
    %c0_i32_1 = arith.constant 0 : i32
    return %arg1, %c0_i32, %c0_i32_0 : i32, i32, i32
  }
  func.func @transform_13(%arg0: i32, %arg1: i32) -> (i32, i32, i32) {
    %c0_i32 = arith.constant 0 : i32
    %c0_i32_0 = arith.constant 0 : i32
    %c0_i32_1 = arith.constant 0 : i32
    return %arg1, %c0_i32, %c0_i32_0 : i32, i32, i32
  }
  func.func @transform_14(%arg0: i32, %arg1: i32) -> (i32, i32, i32) {
    %c0_i32 = arith.constant 0 : i32
    %c0_i32_0 = arith.constant 0 : i32
    %c0_i32_1 = arith.constant 0 : i32
    return %arg1, %c0_i32, %c0_i32_0 : i32, i32, i32
  }
  func.func @transform_15(%arg0: i32, %arg1: i32) -> (i32, i32, i32) {
    %c0_i32 = arith.constant 0 : i32
    %c0_i32_0 = arith.constant 0 : i32
    %c0_i32_1 = arith.constant 0 : i32
    return %arg1, %c0_i32, %c0_i32_0 : i32, i32, i32
  }
  func.func @transform_16(%arg0: i32, %arg1: i32) -> (i32, i32, i32) {
    %c0_i32 = arith.constant 0 : i32
    %c0_i32_0 = arith.constant 0 : i32
    %c0_i32_1 = arith.constant 0 : i32
    return %arg1, %c0_i32, %c0_i32_0 : i32, i32, i32
  }
  func.func @transform_17(%arg0: i32, %arg1: i32) -> (i32, i32, i32) {
    %c0_i32 = arith.constant 0 : i32
    %c0_i32_0 = arith.constant 0 : i32
    %c0_i32_1 = arith.constant 0 : i32
    return %arg1, %c0_i32, %c0_i32_0 : i32, i32, i32
  }
  func.func @transform_18(%arg0: i32, %arg1: i32) -> (i32, i32, i32) {
    %c0_i32 = arith.constant 0 : i32
    %c0_i32_0 = arith.constant 0 : i32
    %c0_i32_1 = arith.constant 0 : i32
    return %arg1, %c0_i32, %c0_i32_0 : i32, i32, i32
  }
  func.func @transform_19(%arg0: i32, %arg1: i32) -> (i32, i32, i32) {
    %c0_i32 = arith.constant 0 : i32
    %c0_i32_0 = arith.constant 0 : i32
    %c0_i32_1 = arith.constant 0 : i32
    return %arg1, %c0_i32, %c0_i32_0 : i32, i32, i32
  }
  func.func @transform_20(%arg0: i32, %arg1: i32) -> (i32, i32, i32) {
    %c0_i32 = arith.constant 0 : i32
    %c0_i32_0 = arith.constant 0 : i32
    %c0_i32_1 = arith.constant 0 : i32
    return %arg1, %c0_i32, %c0_i32_0 : i32, i32, i32
  }
  func.func @transform_21(%arg0: i32, %arg1: i32) -> (i32, i32, i32) {
    %c0_i32 = arith.constant 0 : i32
    %c0_i32_0 = arith.constant 0 : i32
    %c0_i32_1 = arith.constant 0 : i32
    return %arg1, %c0_i32, %c0_i32_0 : i32, i32, i32
  }
  func.func @transform_22(%arg0: i32, %arg1: i32) -> (i32, i32, i32) {
    %c0_i32 = arith.constant 0 : i32
    %c0_i32_0 = arith.constant 0 : i32
    %c0_i32_1 = arith.constant 0 : i32
    return %arg1, %c0_i32, %c0_i32_0 : i32, i32, i32
  }
  func.func @transform_23(%arg0: i32, %arg1: i32) -> (i32, i32, i32, i32) {
    %c0_i32 = arith.constant 0 : i32
    %c0_i32_0 = arith.constant 0 : i32
    %c0_i32_1 = arith.constant 0 : i32
    %c0_i32_2 = arith.constant 0 : i32
    %c0_i32_3 = arith.constant 0 : i32
    return %c0_i32, %c0_i32_0, %c0_i32_1, %c0_i32_2 : i32, i32, i32, i32
  }
  func.func @transform_24(%arg0: i32, %arg1: i32) -> (i32, i32, i32) {
    %c0_i32 = arith.constant 0 : i32
    %c0_i32_0 = arith.constant 0 : i32
    %c0_i32_1 = arith.constant 0 : i32
    return %arg0, %c0_i32, %c0_i32_0 : i32, i32, i32
  }
  func.func @transform_25(%arg0: i32, %arg1: i32) -> (i32, i32, i32, i32) {
    %c0_i32 = arith.constant 0 : i32
    %c0_i32_0 = arith.constant 0 : i32
    %c0_i32_1 = arith.constant 0 : i32
    %c0_i32_2 = arith.constant 0 : i32
    return %arg0, %c0_i32, %c0_i32_0, %c0_i32_1 : i32, i32, i32, i32
  }
  func.func @transform_26(%arg0: i32, %arg1: i32) -> (i32, i32, i32, i32) {
    %c0_i32 = arith.constant 0 : i32
    %c0_i32_0 = arith.constant 0 : i32
    %c0_i32_1 = arith.constant 0 : i32
    %c0_i32_2 = arith.constant 0 : i32
    return %arg0, %c0_i32, %c0_i32_0, %c0_i32_1 : i32, i32, i32, i32
  }
}

</mosaic_0001>

<llo_original>
// kernel: decoder_forward.1
$region0: #{decoder_forward.1}
  #allocation0 [shape = 'u32[]', space=smem, size = 0x4, offset = 0x4, fixed_abs, tag = 'smem constant byte address 0x4 - core index']
  #allocation1 [shape = 'u32[144,128]{1,0:T(1,128)}', space=vmem, size = 0x12000, scoped, tag = 'internal scratch']
  %s0 = inlined_call_operand.vmem [shape: f32[2,8,32], index: 0, kind: input, shape index: {}]
  %s1 = inlined_call_operand.vmem [shape: f32[1,8,32], index: 1, kind: input, shape index: {}]
  %s2 = inlined_call_operand.vmem [shape: f32[2,8,32], index: 2, kind: input, shape index: {}]
  %s3 = inlined_call_operand.vmem [shape: bf16[2,32,96], index: 3, kind: input, shape index: {}]
  %s4 = inlined_call_operand.vmem [shape: f32[2,1,96], index: 4, kind: input, shape index: {}]
  %s5 = inlined_call_operand.vmem [shape: bf16[2,32,32], index: 5, kind: input, shape index: {}]
  %s6 = inlined_call_operand.vmem [shape: f32[2,1,32], index: 6, kind: input, shape index: {}]
  %s7 = inlined_call_operand.vmem [shape: f32[2,1,32], index: 7, kind: input, shape index: {}]
  %s8 = inlined_call_operand.vmem [shape: f32[2,1,32], index: 8, kind: input, shape index: {}]
  %s9 = inlined_call_operand.vmem [shape: bf16[2,32,32], index: 9, kind: input, shape index: {}]
  %s10 = inlined_call_operand.vmem [shape: f32[2,1,32], index: 10, kind: input, shape index: {}]
  %s11 = inlined_call_operand.vmem [shape: bf16[2,32,64], index: 11, kind: input, shape index: {}]
  %s12 = inlined_call_operand.vmem [shape: f32[2,1,64], index: 12, kind: input, shape index: {}]
  %s13 = inlined_call_operand.vmem [shape: bf16[2,32,32], index: 13, kind: input, shape index: {}]
  %s14 = inlined_call_operand.vmem [shape: f32[2,1,32], index: 14, kind: input, shape index: {}]
  %s15 = inlined_call_operand.vmem [shape: f32[2,1,32], index: 15, kind: input, shape index: {}]
  %s16 = inlined_call_operand.vmem [shape: f32[2,1,32], index: 16, kind: input, shape index: {}]
  %s17 = inlined_call_operand.vmem [shape: bf16[2,32,64], index: 17, kind: input, shape index: {}]
  %s18 = inlined_call_operand.vmem [shape: f32[2,1,64], index: 18, kind: input, shape index: {}]
  %s19 = inlined_call_operand.vmem [shape: bf16[2,64,32], index: 19, kind: input, shape index: {}]
  %s20 = inlined_call_operand.vmem [shape: f32[2,1,32], index: 20, kind: input, shape index: {}]
  %s21 = inlined_call_operand.vmem [shape: f32[2,1,32], index: 21, kind: input, shape index: {}]
  %s22 = inlined_call_operand.vmem [shape: f32[2,1,32], index: 22, kind: input, shape index: {}]
  %s23 = inlined_call_operand.vmem [shape: f32[1,1,8,8], index: 23, kind: input, shape index: {}]
  %s24 = inlined_call_operand.hbm [shape: f32[2,8,32], index: 24, kind: output, shape index: {0}]
  %s25 = inlined_call_operand.hbm [shape: f32[2,4,8,8], index: 25, kind: output, shape index: {1}]
  %s26 = inlined_call_operand.hbm [shape: f32[2,4,8,8], index: 26, kind: output, shape index: {2}]
  %27 = xla_tuple %s24, %s25, %s26
  %s28 = sld [smem:[#allocation0]]
  $region153: #{decoder_forward.1} parent=0
    _
  %s30 = ssub.s32 1, %s28
  %s31 = scalar_select 0, %s30, %s28
  $region1: #{decoder_forward.1} parent=0
    #allocation2 [shape = 'u8[8192]{0}', space=vmem, size = 0x2000, scoped, tag = 'output window, operand 0']
    #allocation3 [shape = 's32[2]{0}', space=sflag, size = 0x8, scoped, tag = 'scoped memory for decoder_forward.1']
    #allocation4 [shape = 'u8[32768]{0}', space=vmem, size = 0x8000, scoped, tag = 'output window, operand 1']
    #allocation5 [shape = 's32[2]{0}', space=sflag, size = 0x8, scoped, tag = 'scoped memory for decoder_forward.1']
    #allocation6 [shape = 'u8[32768]{0}', space=vmem, size = 0x8000, scoped, tag = 'output window, operand 2']
    %32 = vsyncpa [#allocation3], 0
    %s33 = scalar_lea.sflag [#allocation3], 1
    %34 = vsyncpa %s33, 0
    %35 = vsyncpa [#allocation5], 0
    %s36 = scalar_lea.sflag [#allocation5], 1
    %37 = vsyncpa %s36, 0
    loop: start=0, step=1, limit=6
    $region2: #{decoder_forward.1} parent=1 // loop_pre_header
      _
    $region3: #{decoder_forward.1} parent=1 // loop_header
      %s39 = sphi 0, %s43
      %p40 = scmp.ge.s32.totalorder %s39, 6
      %s46 = sphi 0, %s58
      %s47 = sphi 0, %s54
      %s48 = sphi 0, %s46
      %s49 = sphi 0, %s47
      %s50 = sphi 0, %s48
      %s51 = sphi 0, %s49
      %s61 = sphi 0, %s63
      %s64 = sphi 0, %s61
      %s65 = sphi 0, %s64
      %s81 = sphi 0, %s65
      %s85 = sphi 0, %s85
      %s87 = sphi 0, %s85
      %s88 = sphi 0, %s87
      %s102 = sphi 0, %s88
      %s108 = sphi 0, %s110
      %s111 = sphi 0, %s108
      %s112 = sphi 0, %s111
      %s128 = sphi 0, %s112
      %s134 = sphi 0, %s136
      %s137 = sphi 0, %s134
      %s138 = sphi 0, %s137
      %s154 = sphi 0, %s138
      %s160 = sphi 0, %s162
      %s163 = sphi 0, %s160
      %s164 = sphi 0, %s163
      %s180 = sphi 0, %s164
      %s186 = sphi 0, %s188
      %s189 = sphi 0, %s186
      %s190 = sphi 0, %s189
      %s206 = sphi 0, %s190
      %s212 = sphi 0, %s214
      %s215 = sphi 0, %s212
      %s216 = sphi 0, %s215
      %s232 = sphi 0, %s216
      %s238 = sphi 0, %s240
      %s241 = sphi 0, %s238
      %s242 = sphi 0, %s241
      %s258 = sphi 0, %s242
      %s264 = sphi 0, %s266
      %s267 = sphi 0, %s264
      %s268 = sphi 0, %s267
      %s284 = sphi 0, %s268
      %s290 = sphi 0, %s292
      %s293 = sphi 0, %s290
      %s294 = sphi 0, %s293
      %s310 = sphi 0, %s294
      %s316 = sphi 0, %s318
      %s319 = sphi 0, %s316
      %s320 = sphi 0, %s319
      %s336 = sphi 0, %s320
      %s342 = sphi 0, %s344
      %s345 = sphi 0, %s342
      %s346 = sphi 0, %s345
      %s362 = sphi 0, %s346
      %s368 = sphi 0, %s370
      %s371 = sphi 0, %s368
      %s372 = sphi 0, %s371
      %s388 = sphi 0, %s372
      %s394 = sphi 0, %s396
      %s397 = sphi 0, %s394
      %s398 = sphi 0, %s397
      %s414 = sphi 0, %s398
      %s420 = sphi 0, %s422
      %s423 = sphi 0, %s420
      %s424 = sphi 0, %s423
      %s440 = sphi 0, %s424
      %s446 = sphi 0, %s448
      %s449 = sphi 0, %s446
      %s450 = sphi 0, %s449
      %s466 = sphi 0, %s450
      %s472 = sphi 0, %s474
      %s475 = sphi 0, %s472
      %s476 = sphi 0, %s475
      %s492 = sphi 0, %s476
      %s498 = sphi 0, %s500
      %s501 = sphi 0, %s498
      %s502 = sphi 0, %s501
      %s518 = sphi 0, %s502
      %s524 = sphi 0, %s526
      %s527 = sphi 0, %s524
      %s528 = sphi 0, %s527
      %s544 = sphi 0, %s528
      %s550 = sphi 0, %s552
      %s553 = sphi 0, %s550
      %s554 = sphi 0, %s553
      %s570 = sphi 0, %s554
      %s576 = sphi 0, %s578
      %s579 = sphi 0, %s576
      %s580 = sphi 0, %s579
      %s596 = sphi 0, %s580
      %s602 = sphi 0, %s604
      %s605 = sphi 0, %s602
      %s606 = sphi 0, %s605
      %s622 = sphi 0, %s606
      %s628 = sphi 0, %s630
      %s631 = sphi 0, %s628
      %s632 = sphi 0, %s631
      %s648 = sphi 0, %s632
      %s652 = sphi 0, %s652
      %s654 = sphi 0, %s652
      %s655 = sphi 0, %s654
      %s669 = sphi 0, %s655
      %s675 = sphi 0, %s677
      %s678 = sphi 0, %s675
      %s679 = sphi 0, %s678
      %s695 = sphi 0, %s679
      %s701 = sphi 0, %s703
      %s704 = sphi 0, %s701
      %s705 = sphi 0, %s704
      %s721 = sphi 0, %s705
      %s727 = sphi 0, %s729
      %s730 = sphi 0, %s727
      %s731 = sphi 0, %s730
      %s747 = sphi 0, %s731
    $region4: #{decoder_forward.1} parent=1 // loop_header_branch
      %42 = sbr.rel (%p40) target = $region8
    $region5: #{decoder_forward.1} parent=1 // loop_body
      %s44 = ssub.s32 %s39, 1
      %s45 = ssub.s32 %s39, 2
      %s52 = sadd.s32 1, %s47
      %p53 = scmp.ge.s32.totalorder %s52, 2
      %s54 = scalar_select %p53, 0, %s52
      %s55 = sadd.s32 1, %s46
      %s56 = scalar_select %p53, %s55, %s46
      %p57 = scmp.ge.s32.totalorder %s56, 2
      %s58 = scalar_select %p57, 0, %s56
      %s59 = ssub.s32 %s46, %s58
      %p60 = scmp.eq.s32.totalorder %s59, 0
      %s62 = sadd.s32 %s61, 1
      %s63 = scalar_select %p60, %s61, %s62
      %p66 = pneg %p60
      %p67 = scmp.eq.s32.totalorder %s39, 3
      %p68 = por %p66, %p67
      %p69 = scmp.ne.s32.totalorder %s61, %s64
      %p70 = scmp.eq.s32.totalorder %s39, 0
      %p71 = por %p69, %p70
      %p72 = scmp.ne.s32.totalorder %s61, %s64
      %p73 = scmp.eq.s32.totalorder %s44, 3
      %p74 = por %p72, %p73
      %p75 = scmp.ne.s32.totalorder %s64, %s65
      %p76 = scmp.eq.s32.totalorder %s44, 0
      %p77 = por %p75, %p76
      %p78 = scmp.ne.s32.totalorder %s64, %s65
      %p79 = scmp.eq.s32.totalorder %s45, 3
      %p80 = por %p78, %p79
      %p82 = scmp.ne.s32.totalorder %s65, %s81
      %p83 = scmp.eq.s32.totalorder %s45, 0
      %p84 = por %p82, %p83
      %s86 = sadd.s32 %s85, 1
      %p89 = scmp.eq.s32.totalorder %s39, 3
      %p90 = scmp.ne.s32.totalorder %s85, %s87
      %p91 = scmp.eq.s32.totalorder %s39, 0
      %p92 = por %p90, %p91
      %p93 = scmp.ne.s32.totalorder %s85, %s87
      %p94 = scmp.eq.s32.totalorder %s44, 3
      %p95 = por %p93, %p94
      %p96 = scmp.ne.s32.totalorder %s87, %s88
      %p97 = scmp.eq.s32.totalorder %s44, 0
      %p98 = por %p96, %p97
      %p99 = scmp.ne.s32.totalorder %s87, %s88
      %p100 = scmp.eq.s32.totalorder %s45, 3
      %p101 = por %p99, %p100
      %p103 = scmp.ne.s32.totalorder %s88, %s102
      %p104 = scmp.eq.s32.totalorder %s45, 0
      %p105 = por %p103, %p104
      %s106 = ssub.s32 %s46, %s58
      %p107 = scmp.eq.s32.totalorder %s106, 0
      %s109 = sadd.s32 %s108, 1
      %s110 = scalar_select %p107, %s108, %s109
      %p113 = pneg %p107
      %p114 = scmp.eq.s32.totalorder %s39, 3
      %p115 = por %p113, %p114
      %p116 = scmp.ne.s32.totalorder %s108, %s111
      %p117 = scmp.eq.s32.totalorder %s39, 0
      %p118 = por %p116, %p117
      %p119 = scmp.ne.s32.totalorder %s108, %s111
      %p120 = scmp.eq.s32.totalorder %s44, 3
      %p121 = por %p119, %p120
      %p122 = scmp.ne.s32.totalorder %s111, %s112
      %p123 = scmp.eq.s32.totalorder %s44, 0
      %p124 = por %p122, %p123
      %p125 = scmp.ne.s32.totalorder %s111, %s112
      %p126 = scmp.eq.s32.totalorder %s45, 3
      %p127 = por %p125, %p126
      %p129 = scmp.ne.s32.totalorder %s112, %s128
      %p130 = scmp.eq.s32.totalorder %s45, 0
      %p131 = por %p129, %p130
      %s132 = ssub.s32 %s47, %s54
      %p133 = scmp.eq.s32.totalorder %s132, 0
      %s135 = sadd.s32 %s134, 1
      %s136 = scalar_select %p133, %s134, %s135
      %p139 = pneg %p133
      %p140 = scmp.eq.s32.totalorder %s39, 3
      %p141 = por %p139, %p140
      %p142 = scmp.ne.s32.totalorder %s134, %s137
      %p143 = scmp.eq.s32.totalorder %s39, 0
      %p144 = por %p142, %p143
      %p145 = scmp.ne.s32.totalorder %s134, %s137
      %p146 = scmp.eq.s32.totalorder %s44, 3
      %p147 = por %p145, %p146
      %p148 = scmp.ne.s32.totalorder %s137, %s138
      %p149 = scmp.eq.s32.totalorder %s44, 0
      %p150 = por %p148, %p149
      %p151 = scmp.ne.s32.totalorder %s137, %s138
      %p152 = scmp.eq.s32.totalorder %s45, 3
      %p153 = por %p151, %p152
      %p155 = scmp.ne.s32.totalorder %s138, %s154
      %p156 = scmp.eq.s32.totalorder %s45, 0
      %p157 = por %p155, %p156
      %s158 = ssub.s32 %s47, %s54
      %p159 = scmp.eq.s32.totalorder %s158, 0
      %s161 = sadd.s32 %s160, 1
      %s162 = scalar_select %p159, %s160, %s161
      %p165 = pneg %p159
      %p166 = scmp.eq.s32.totalorder %s39, 3
      %p167 = por %p165, %p166
      %p168 = scmp.ne.s32.totalorder %s160, %s163
      %p169 = scmp.eq.s32.totalorder %s39, 0
      %p170 = por %p168, %p169
      %p171 = scmp.ne.s32.totalorder %s160, %s163
      %p172 = scmp.eq.s32.totalorder %s44, 3
      %p173 = por %p171, %p172
      %p174 = scmp.ne.s32.totalorder %s163, %s164
      %p175 = scmp.eq.s32.totalorder %s44, 0
      %p176 = por %p174, %p175
      %p177 = scmp.ne.s32.totalorder %s163, %s164
      %p178 = scmp.eq.s32.totalorder %s45, 3
      %p179 = por %p177, %p178
      %p181 = scmp.ne.s32.totalorder %s164, %s180
      %p182 = scmp.eq.s32.totalorder %s45, 0
      %p183 = por %p181, %p182
      %s184 = ssub.s32 %s47, %s54
      %p185 = scmp.eq.s32.totalorder %s184, 0
      %s187 = sadd.s32 %s186, 1
      %s188 = scalar_select %p185, %s186, %s187
      %p191 = pneg %p185
      %p192 = scmp.eq.s32.totalorder %s39, 3
      %p193 = por %p191, %p192
      %p194 = scmp.ne.s32.totalorder %s186, %s189
      %p195 = scmp.eq.s32.totalorder %s39, 0
      %p196 = por %p194, %p195
      %p197 = scmp.ne.s32.totalorder %s186, %s189
      %p198 = scmp.eq.s32.totalorder %s44, 3
      %p199 = por %p197, %p198
      %p200 = scmp.ne.s32.totalorder %s189, %s190
      %p201 = scmp.eq.s32.totalorder %s44, 0
      %p202 = por %p200, %p201
      %p203 = scmp.ne.s32.totalorder %s189, %s190
      %p204 = scmp.eq.s32.totalorder %s45, 3
      %p205 = por %p203, %p204
      %p207 = scmp.ne.s32.totalorder %s190, %s206
      %p208 = scmp.eq.s32.totalorder %s45, 0
      %p209 = por %p207, %p208
      %s210 = ssub.s32 %s47, %s54
      %p211 = scmp.eq.s32.totalorder %s210, 0
      %s213 = sadd.s32 %s212, 1
      %s214 = scalar_select %p211, %s212, %s213
      %p217 = pneg %p211
      %p218 = scmp.eq.s32.totalorder %s39, 3
      %p219 = por %p217, %p218
      %p220 = scmp.ne.s32.totalorder %s212, %s215
      %p221 = scmp.eq.s32.totalorder %s39, 0
      %p222 = por %p220, %p221
      %p223 = scmp.ne.s32.totalorder %s212, %s215
      %p224 = scmp.eq.s32.totalorder %s44, 3
      %p225 = por %p223, %p224
      %p226 = scmp.ne.s32.totalorder %s215, %s216
      %p227 = scmp.eq.s32.totalorder %s44, 0
      %p228 = por %p226, %p227
      %p229 = scmp.ne.s32.totalorder %s215, %s216
      %p230 = scmp.eq.s32.totalorder %s45, 3
      %p231 = por %p229, %p230
      %p233 = scmp.ne.s32.totalorder %s216, %s232
      %p234 = scmp.eq.s32.totalorder %s45, 0
      %p235 = por %p233, %p234
      %s236 = ssub.s32 %s47, %s54
      %p237 = scmp.eq.s32.totalorder %s236, 0
      %s239 = sadd.s32 %s238, 1
      %s240 = scalar_select %p237, %s238, %s239
      %p243 = pneg %p237
      %p244 = scmp.eq.s32.totalorder %s39, 3
      %p245 = por %p243, %p244
      %p246 = scmp.ne.s32.totalorder %s238, %s241
      %p247 = scmp.eq.s32.totalorder %s39, 0
      %p248 = por %p246, %p247
      %p249 = scmp.ne.s32.totalorder %s238, %s241
      %p250 = scmp.eq.s32.totalorder %s44, 3
      %p251 = por %p249, %p250
      %p252 = scmp.ne.s32.totalorder %s241, %s242
      %p253 = scmp.eq.s32.totalorder %s44, 0
      %p254 = por %p252, %p253
      %p255 = scmp.ne.s32.totalorder %s241, %s242
      %p256 = scmp.eq.s32.totalorder %s45, 3
      %p257 = por %p255, %p256
      %p259 = scmp.ne.s32.totalorder %s242, %s258
      %p260 = scmp.eq.s32.totalorder %s45, 0
      %p261 = por %p259, %p260
      %s262 = ssub.s32 %s47, %s54
      %p263 = scmp.eq.s32.totalorder %s262, 0
      %s265 = sadd.s32 %s264, 1
      %s266 = scalar_select %p263, %s264, %s265
      %p269 = pneg %p263
      %p270 = scmp.eq.s32.totalorder %s39, 3
      %p271 = por %p269, %p270
      %p272 = scmp.ne.s32.totalorder %s264, %s267
      %p273 = scmp.eq.s32.totalorder %s39, 0
      %p274 = por %p272, %p273
      %p275 = scmp.ne.s32.totalorder %s264, %s267
      %p276 = scmp.eq.s32.totalorder %s44, 3
      %p277 = por %p275, %p276
      %p278 = scmp.ne.s32.totalorder %s267, %s268
      %p279 = scmp.eq.s32.totalorder %s44, 0
      %p280 = por %p278, %p279
      %p281 = scmp.ne.s32.totalorder %s267, %s268
      %p282 = scmp.eq.s32.totalorder %s45, 3
      %p283 = por %p281, %p282
      %p285 = scmp.ne.s32.totalorder %s268, %s284
      %p286 = scmp.eq.s32.totalorder %s45, 0
      %p287 = por %p285, %p286
      %s288 = ssub.s32 %s47, %s54
      %p289 = scmp.eq.s32.totalorder %s288, 0
      %s291 = sadd.s32 %s290, 1
      %s292 = scalar_select %p289, %s290, %s291
      %p295 = pneg %p289
      %p296 = scmp.eq.s32.totalorder %s39, 3
      %p297 = por %p295, %p296
      %p298 = scmp.ne.s32.totalorder %s290, %s293
      %p299 = scmp.eq.s32.totalorder %s39, 0
      %p300 = por %p298, %p299
      %p301 = scmp.ne.s32.totalorder %s290, %s293
      %p302 = scmp.eq.s32.totalorder %s44, 3
      %p303 = por %p301, %p302
      %p304 = scmp.ne.s32.totalorder %s293, %s294
      %p305 = scmp.eq.s32.totalorder %s44, 0
      %p306 = por %p304, %p305
      %p307 = scmp.ne.s32.totalorder %s293, %s294
      %p308 = scmp.eq.s32.totalorder %s45, 3
      %p309 = por %p307, %p308
      %p311 = scmp.ne.s32.totalorder %s294, %s310
      %p312 = scmp.eq.s32.totalorder %s45, 0
      %p313 = por %p311, %p312
      %s314 = ssub.s32 %s47, %s54
      %p315 = scmp.eq.s32.totalorder %s314, 0
      %s317 = sadd.s32 %s316, 1
      %s318 = scalar_select %p315, %s316, %s317
      %p321 = pneg %p315
      %p322 = scmp.eq.s32.totalorder %s39, 3
      %p323 = por %p321, %p322
      %p324 = scmp.ne.s32.totalorder %s316, %s319
      %p325 = scmp.eq.s32.totalorder %s39, 0
      %p326 = por %p324, %p325
      %p327 = scmp.ne.s32.totalorder %s316, %s319
      %p328 = scmp.eq.s32.totalorder %s44, 3
      %p329 = por %p327, %p328
      %p330 = scmp.ne.s32.totalorder %s319, %s320
      %p331 = scmp.eq.s32.totalorder %s44, 0
      %p332 = por %p330, %p331
      %p333 = scmp.ne.s32.totalorder %s319, %s320
      %p334 = scmp.eq.s32.totalorder %s45, 3
      %p335 = por %p333, %p334
      %p337 = scmp.ne.s32.totalorder %s320, %s336
      %p338 = scmp.eq.s32.totalorder %s45, 0
      %p339 = por %p337, %p338
      %s340 = ssub.s32 %s47, %s54
      %p341 = scmp.eq.s32.totalorder %s340, 0
      %s343 = sadd.s32 %s342, 1
      %s344 = scalar_select %p341, %s342, %s343
      %p347 = pneg %p341
      %p348 = scmp.eq.s32.totalorder %s39, 3
      %p349 = por %p347, %p348
      %p350 = scmp.ne.s32.totalorder %s342, %s345
      %p351 = scmp.eq.s32.totalorder %s39, 0
      %p352 = por %p350, %p351
      %p353 = scmp.ne.s32.totalorder %s342, %s345
      %p354 = scmp.eq.s32.totalorder %s44, 3
      %p355 = por %p353, %p354
      %p356 = scmp.ne.s32.totalorder %s345, %s346
      %p357 = scmp.eq.s32.totalorder %s44, 0
      %p358 = por %p356, %p357
      %p359 = scmp.ne.s32.totalorder %s345, %s346
      %p360 = scmp.eq.s32.totalorder %s45, 3
      %p361 = por %p359, %p360
      %p363 = scmp.ne.s32.totalorder %s346, %s362
      %p364 = scmp.eq.s32.totalorder %s45, 0
      %p365 = por %p363, %p364
      %s366 = ssub.s32 %s47, %s54
      %p367 = scmp.eq.s32.totalorder %s366, 0
      %s369 = sadd.s32 %s368, 1
      %s370 = scalar_select %p367, %s368, %s369
      %p373 = pneg %p367
      %p374 = scmp.eq.s32.totalorder %s39, 3
      %p375 = por %p373, %p374
      %p376 = scmp.ne.s32.totalorder %s368, %s371
      %p377 = scmp.eq.s32.totalorder %s39, 0
      %p378 = por %p376, %p377
      %p379 = scmp.ne.s32.totalorder %s368, %s371
      %p380 = scmp.eq.s32.totalorder %s44, 3
      %p381 = por %p379, %p380
      %p382 = scmp.ne.s32.totalorder %s371, %s372
      %p383 = scmp.eq.s32.totalorder %s44, 0
      %p384 = por %p382, %p383
      %p385 = scmp.ne.s32.totalorder %s371, %s372
      %p386 = scmp.eq.s32.totalorder %s45, 3
      %p387 = por %p385, %p386
      %p389 = scmp.ne.s32.totalorder %s372, %s388
      %p390 = scmp.eq.s32.totalorder %s45, 0
      %p391 = por %p389, %p390
      %s392 = ssub.s32 %s47, %s54
      %p393 = scmp.eq.s32.totalorder %s392, 0
      %s395 = sadd.s32 %s394, 1
      %s396 = scalar_select %p393, %s394, %s395
      %p399 = pneg %p393
      %p400 = scmp.eq.s32.totalorder %s39, 3
      %p401 = por %p399, %p400
      %p402 = scmp.ne.s32.totalorder %s394, %s397
      %p403 = scmp.eq.s32.totalorder %s39, 0
      %p404 = por %p402, %p403
      %p405 = scmp.ne.s32.totalorder %s394, %s397
      %p406 = scmp.eq.s32.totalorder %s44, 3
      %p407 = por %p405, %p406
      %p408 = scmp.ne.s32.totalorder %s397, %s398
      %p409 = scmp.eq.s32.totalorder %s44, 0
      %p410 = por %p408, %p409
      %p411 = scmp.ne.s32.totalorder %s397, %s398
      %p412 = scmp.eq.s32.totalorder %s45, 3
      %p413 = por %p411, %p412
      %p415 = scmp.ne.s32.totalorder %s398, %s414
      %p416 = scmp.eq.s32.totalorder %s45, 0
      %p417 = por %p415, %p416
      %s418 = ssub.s32 %s47, %s54
      %p419 = scmp.eq.s32.totalorder %s418, 0
      %s421 = sadd.s32 %s420, 1
      %s422 = scalar_select %p419, %s420, %s421
      %p425 = pneg %p419
      %p426 = scmp.eq.s32.totalorder %s39, 3
      %p427 = por %p425, %p426
      %p428 = scmp.ne.s32.totalorder %s420, %s423
      %p429 = scmp.eq.s32.totalorder %s39, 0
      %p430 = por %p428, %p429
      %p431 = scmp.ne.s32.totalorder %s420, %s423
      %p432 = scmp.eq.s32.totalorder %s44, 3
      %p433 = por %p431, %p432
      %p434 = scmp.ne.s32.totalorder %s423, %s424
      %p435 = scmp.eq.s32.totalorder %s44, 0
      %p436 = por %p434, %p435
      %p437 = scmp.ne.s32.totalorder %s423, %s424
      %p438 = scmp.eq.s32.totalorder %s45, 3
      %p439 = por %p437, %p438
      %p441 = scmp.ne.s32.totalorder %s424, %s440
      %p442 = scmp.eq.s32.totalorder %s45, 0
      %p443 = por %p441, %p442
      %s444 = ssub.s32 %s47, %s54
      %p445 = scmp.eq.s32.totalorder %s444, 0
      %s447 = sadd.s32 %s446, 1
      %s448 = scalar_select %p445, %s446, %s447
      %p451 = pneg %p445
      %p452 = scmp.eq.s32.totalorder %s39, 3
      %p453 = por %p451, %p452
      %p454 = scmp.ne.s32.totalorder %s446, %s449
      %p455 = scmp.eq.s32.totalorder %s39, 0
      %p456 = por %p454, %p455
      %p457 = scmp.ne.s32.totalorder %s446, %s449
      %p458 = scmp.eq.s32.totalorder %s44, 3
      %p459 = por %p457, %p458
      %p460 = scmp.ne.s32.totalorder %s449, %s450
      %p461 = scmp.eq.s32.totalorder %s44, 0
      %p462 = por %p460, %p461
      %p463 = scmp.ne.s32.totalorder %s449, %s450
      %p464 = scmp.eq.s32.totalorder %s45, 3
      %p465 = por %p463, %p464
      %p467 = scmp.ne.s32.totalorder %s450, %s466
      %p468 = scmp.eq.s32.totalorder %s45, 0
      %p469 = por %p467, %p468
      %s470 = ssub.s32 %s47, %s54
      %p471 = scmp.eq.s32.totalorder %s470, 0
      %s473 = sadd.s32 %s472, 1
      %s474 = scalar_select %p471, %s472, %s473
      %p477 = pneg %p471
      %p478 = scmp.eq.s32.totalorder %s39, 3
      %p479 = por %p477, %p478
      %p480 = scmp.ne.s32.totalorder %s472, %s475
      %p481 = scmp.eq.s32.totalorder %s39, 0
      %p482 = por %p480, %p481
      %p483 = scmp.ne.s32.totalorder %s472, %s475
      %p484 = scmp.eq.s32.totalorder %s44, 3
      %p485 = por %p483, %p484
      %p486 = scmp.ne.s32.totalorder %s475, %s476
      %p487 = scmp.eq.s32.totalorder %s44, 0
      %p488 = por %p486, %p487
      %p489 = scmp.ne.s32.totalorder %s475, %s476
      %p490 = scmp.eq.s32.totalorder %s45, 3
      %p491 = por %p489, %p490
      %p493 = scmp.ne.s32.totalorder %s476, %s492
      %p494 = scmp.eq.s32.totalorder %s45, 0
      %p495 = por %p493, %p494
      %s496 = ssub.s32 %s47, %s54
      %p497 = scmp.eq.s32.totalorder %s496, 0
      %s499 = sadd.s32 %s498, 1
      %s500 = scalar_select %p497, %s498, %s499
      %p503 = pneg %p497
      %p504 = scmp.eq.s32.totalorder %s39, 3
      %p505 = por %p503, %p504
      %p506 = scmp.ne.s32.totalorder %s498, %s501
      %p507 = scmp.eq.s32.totalorder %s39, 0
      %p508 = por %p506, %p507
      %p509 = scmp.ne.s32.totalorder %s498, %s501
      %p510 = scmp.eq.s32.totalorder %s44, 3
      %p511 = por %p509, %p510
      %p512 = scmp.ne.s32.totalorder %s501, %s502
      %p513 = scmp.eq.s32.totalorder %s44, 0
      %p514 = por %p512, %p513
      %p515 = scmp.ne.s32.totalorder %s501, %s502
      %p516 = scmp.eq.s32.totalorder %s45, 3
      %p517 = por %p515, %p516
      %p519 = scmp.ne.s32.totalorder %s502, %s518
      %p520 = scmp.eq.s32.totalorder %s45, 0
      %p521 = por %p519, %p520
      %s522 = ssub.s32 %s47, %s54
      %p523 = scmp.eq.s32.totalorder %s522, 0
      %s525 = sadd.s32 %s524, 1
      %s526 = scalar_select %p523, %s524, %s525
      %p529 = pneg %p523
      %p530 = scmp.eq.s32.totalorder %s39, 3
      %p531 = por %p529, %p530
      %p532 = scmp.ne.s32.totalorder %s524, %s527
      %p533 = scmp.eq.s32.totalorder %s39, 0
      %p534 = por %p532, %p533
      %p535 = scmp.ne.s32.totalorder %s524, %s527
      %p536 = scmp.eq.s32.totalorder %s44, 3
      %p537 = por %p535, %p536
      %p538 = scmp.ne.s32.totalorder %s527, %s528
      %p539 = scmp.eq.s32.totalorder %s44, 0
      %p540 = por %p538, %p539
      %p541 = scmp.ne.s32.totalorder %s527, %s528
      %p542 = scmp.eq.s32.totalorder %s45, 3
      %p543 = por %p541, %p542
      %p545 = scmp.ne.s32.totalorder %s528, %s544
      %p546 = scmp.eq.s32.totalorder %s45, 0
      %p547 = por %p545, %p546
      %s548 = ssub.s32 %s47, %s54
      %p549 = scmp.eq.s32.totalorder %s548, 0
      %s551 = sadd.s32 %s550, 1
      %s552 = scalar_select %p549, %s550, %s551
      %p555 = pneg %p549
      %p556 = scmp.eq.s32.totalorder %s39, 3
      %p557 = por %p555, %p556
      %p558 = scmp.ne.s32.totalorder %s550, %s553
      %p559 = scmp.eq.s32.totalorder %s39, 0
      %p560 = por %p558, %p559
      %p561 = scmp.ne.s32.totalorder %s550, %s553
      %p562 = scmp.eq.s32.totalorder %s44, 3
      %p563 = por %p561, %p562
      %p564 = scmp.ne.s32.totalorder %s553, %s554
      %p565 = scmp.eq.s32.totalorder %s44, 0
      %p566 = por %p564, %p565
      %p567 = scmp.ne.s32.totalorder %s553, %s554
      %p568 = scmp.eq.s32.totalorder %s45, 3
      %p569 = por %p567, %p568
      %p571 = scmp.ne.s32.totalorder %s554, %s570
      %p572 = scmp.eq.s32.totalorder %s45, 0
      %p573 = por %p571, %p572
      %s574 = ssub.s32 %s47, %s54
      %p575 = scmp.eq.s32.totalorder %s574, 0
      %s577 = sadd.s32 %s576, 1
      %s578 = scalar_select %p575, %s576, %s577
      %p581 = pneg %p575
      %p582 = scmp.eq.s32.totalorder %s39, 3
      %p583 = por %p581, %p582
      %p584 = scmp.ne.s32.totalorder %s576, %s579
      %p585 = scmp.eq.s32.totalorder %s39, 0
      %p586 = por %p584, %p585
      %p587 = scmp.ne.s32.totalorder %s576, %s579
      %p588 = scmp.eq.s32.totalorder %s44, 3
      %p589 = por %p587, %p588
      %p590 = scmp.ne.s32.totalorder %s579, %s580
      %p591 = scmp.eq.s32.totalorder %s44, 0
      %p592 = por %p590, %p591
      %p593 = scmp.ne.s32.totalorder %s579, %s580
      %p594 = scmp.eq.s32.totalorder %s45, 3
      %p595 = por %p593, %p594
      %p597 = scmp.ne.s32.totalorder %s580, %s596
      %p598 = scmp.eq.s32.totalorder %s45, 0
      %p599 = por %p597, %p598
      %s600 = ssub.s32 %s47, %s54
      %p601 = scmp.eq.s32.totalorder %s600, 0
      %s603 = sadd.s32 %s602, 1
      %s604 = scalar_select %p601, %s602, %s603
      %p607 = pneg %p601
      %p608 = scmp.eq.s32.totalorder %s39, 3
      %p609 = por %p607, %p608
      %p610 = scmp.ne.s32.totalorder %s602, %s605
      %p611 = scmp.eq.s32.totalorder %s39, 0
      %p612 = por %p610, %p611
      %p613 = scmp.ne.s32.totalorder %s602, %s605
      %p614 = scmp.eq.s32.totalorder %s44, 3
      %p615 = por %p613, %p614
      %p616 = scmp.ne.s32.totalorder %s605, %s606
      %p617 = scmp.eq.s32.totalorder %s44, 0
      %p618 = por %p616, %p617
      %p619 = scmp.ne.s32.totalorder %s605, %s606
      %p620 = scmp.eq.s32.totalorder %s45, 3
      %p621 = por %p619, %p620
      %p623 = scmp.ne.s32.totalorder %s606, %s622
      %p624 = scmp.eq.s32.totalorder %s45, 0
      %p625 = por %p623, %p624
      %s626 = ssub.s32 %s47, %s54
      %p627 = scmp.eq.s32.totalorder %s626, 0
      %s629 = sadd.s32 %s628, 1
      %s630 = scalar_select %p627, %s628, %s629
      %p633 = pneg %p627
      %p634 = scmp.eq.s32.totalorder %s39, 3
      %p635 = por %p633, %p634
      %p636 = scmp.ne.s32.totalorder %s628, %s631
      %p637 = scmp.eq.s32.totalorder %s39, 0
      %p638 = por %p636, %p637
      %p639 = scmp.ne.s32.totalorder %s628, %s631
      %p640 = scmp.eq.s32.totalorder %s44, 3
      %p641 = por %p639, %p640
      %p642 = scmp.ne.s32.totalorder %s631, %s632
      %p643 = scmp.eq.s32.totalorder %s44, 0
      %p644 = por %p642, %p643
      %p645 = scmp.ne.s32.totalorder %s631, %s632
      %p646 = scmp.eq.s32.totalorder %s45, 3
      %p647 = por %p645, %p646
      %p649 = scmp.ne.s32.totalorder %s632, %s648
      %p650 = scmp.eq.s32.totalorder %s45, 0
      %p651 = por %p649, %p650
      %s653 = sadd.s32 %s652, 1
      %p656 = scmp.eq.s32.totalorder %s39, 3
      %p657 = scmp.ne.s32.totalorder %s652, %s654
      %p658 = scmp.eq.s32.totalorder %s39, 0
      %p659 = por %p657, %p658
      %p660 = scmp.ne.s32.totalorder %s652, %s654
      %p661 = scmp.eq.s32.totalorder %s44, 3
      %p662 = por %p660, %p661
      %p663 = scmp.ne.s32.totalorder %s654, %s655
      %p664 = scmp.eq.s32.totalorder %s44, 0
      %p665 = por %p663, %p664
      %p666 = scmp.ne.s32.totalorder %s654, %s655
      %p667 = scmp.eq.s32.totalorder %s45, 3
      %p668 = por %p666, %p667
      %p670 = scmp.ne.s32.totalorder %s655, %s669
      %p671 = scmp.eq.s32.totalorder %s45, 0
      %p672 = por %p670, %p671
      %s673 = ssub.s32 %s46, %s58
      %p674 = scmp.eq.s32.totalorder %s673, 0
      %s676 = sadd.s32 %s675, 1
      %s677 = scalar_select %p674, %s675, %s676
      %p680 = pneg %p674
      %p681 = scmp.eq.s32.totalorder %s39, 3
      %p682 = por %p680, %p681
      %p683 = scmp.ne.s32.totalorder %s675, %s678
      %p684 = scmp.eq.s32.totalorder %s39, 0
      %p685 = por %p683, %p684
      %p686 = scmp.ne.s32.totalorder %s675, %s678
      %p687 = scmp.eq.s32.totalorder %s44, 3
      %p688 = por %p686, %p687
      %p689 = scmp.ne.s32.totalorder %s678, %s679
      %p690 = scmp.eq.s32.totalorder %s44, 0
      %p691 = por %p689, %p690
      %p692 = scmp.ne.s32.totalorder %s678, %s679
      %p693 = scmp.eq.s32.totalorder %s45, 3
      %p694 = por %p692, %p693
      %p696 = scmp.ne.s32.totalorder %s679, %s695
      %p697 = scmp.eq.s32.totalorder %s45, 0
      %p698 = por %p696, %p697
      %s699 = ssub.s32 %s46, %s58
      %p700 = scmp.eq.s32.totalorder %s699, 0
      %s702 = sadd.s32 %s701, 1
      %s703 = scalar_select %p700, %s701, %s702
      %p706 = pneg %p700
      %p707 = scmp.eq.s32.totalorder %s39, 3
      %p708 = por %p706, %p707
      %p709 = scmp.ne.s32.totalorder %s701, %s704
      %p710 = scmp.eq.s32.totalorder %s39, 0
      %p711 = por %p709, %p710
      %p712 = scmp.ne.s32.totalorder %s701, %s704
      %p713 = scmp.eq.s32.totalorder %s44, 3
      %p714 = por %p712, %p713
      %p715 = scmp.ne.s32.totalorder %s704, %s705
      %p716 = scmp.eq.s32.totalorder %s44, 0
      %p717 = por %p715, %p716
      %p718 = scmp.ne.s32.totalorder %s704, %s705
      %p719 = scmp.eq.s32.totalorder %s45, 3
      %p720 = por %p718, %p719
      %p722 = scmp.ne.s32.totalorder %s705, %s721
      %p723 = scmp.eq.s32.totalorder %s45, 0
      %p724 = por %p722, %p723
      %s725 = ssub.s32 %s46, %s58
      %p726 = scmp.eq.s32.totalorder %s725, 0
      %s728 = sadd.s32 %s727, 1
      %s729 = scalar_select %p726, %s727, %s728
      %p732 = pneg %p726
      %p733 = scmp.eq.s32.totalorder %s39, 3
      %p734 = por %p732, %p733
      %p735 = scmp.ne.s32.totalorder %s727, %s730
      %p736 = scmp.eq.s32.totalorder %s39, 0
      %p737 = por %p735, %p736
      %p738 = scmp.ne.s32.totalorder %s727, %s730
      %p739 = scmp.eq.s32.totalorder %s44, 3
      %p740 = por %p738, %p739
      %p741 = scmp.ne.s32.totalorder %s730, %s731
      %p742 = scmp.eq.s32.totalorder %s44, 0
      %p743 = por %p741, %p742
      %p744 = scmp.ne.s32.totalorder %s730, %s731
      %p745 = scmp.eq.s32.totalorder %s45, 3
      %p746 = por %p744, %p745
      %p748 = scmp.ne.s32.totalorder %s731, %s747
      %p749 = scmp.eq.s32.totalorder %s45, 0
      %p750 = por %p748, %p749
      %p751 = scmp.le.s32.totalorder 1, %s39
      %p752 = scmp.lt.s32.totalorder %s39, 5
      %p753 = pnand %p751, %p752
      %p754 = pneg %p753
      // Predicated region
      $region9: #{decoder_forward.1} parent=5 // pred_check
        _
      $region10: #{decoder_forward.1} parent=5 // pred_check_branch
        %756 = sbr.rel (%p753) target = $region12
      $region11: #{decoder_forward.1} parent=5 // pred_region
        %s757 = ssub.s32 %s39, 1
        // Predicated region
        $region13: #{decoder_forward.1} parent=11 // pred_check
          %p758 = pneg %p98
        $region14: #{decoder_forward.1} parent=11 // pred_check_branch
          %760 = sbr.rel (%p758) target = $region16
        $region15: #{decoder_forward.1} parent=11 // pred_region
          _
        $region16: #{decoder_forward.1} parent=11 // pred_fallthru
          _
        // Predicated region
        $region17: #{decoder_forward.1} parent=11 // pred_check
          %p761 = pneg %p665
        $region18: #{decoder_forward.1} parent=11 // pred_check_branch
          %763 = sbr.rel (%p761) target = $region20
        $region19: #{decoder_forward.1} parent=11 // pred_region
          _
        $region20: #{decoder_forward.1} parent=11 // pred_fallthru
          _
      $region12: #{decoder_forward.1} parent=5 // pred_fallthru
        _
      %p764 = scmp.lt.s32.totalorder %s39, 4
      // Predicated region
      $region21: #{decoder_forward.1} parent=5 // pred_check
        %p765 = pneg %p764
      $region22: #{decoder_forward.1} parent=5 // pred_check_branch
        %767 = sbr.rel (%p765) target = $region24
      $region23: #{decoder_forward.1} parent=5 // pred_region
        // Predicated region
        $region25: #{decoder_forward.1} parent=23 // pred_check
          %p768 = pneg %p71
        $region26: #{decoder_forward.1} parent=23 // pred_check_branch
          %770 = sbr.rel (%p768) target = $region28
        $region27: #{decoder_forward.1} parent=23 // pred_region
          %p771 = scmp.lt.s32.totalorder %s46, 1
          %s772 = scalar_select %p771, %s46, 1
          %s773 = smul.addr %s772, 8
          %s774 = scalar_lea.vmem %s0, %s773
        $region28: #{decoder_forward.1} parent=23 // pred_fallthru
          _
        // Predicated region
        $region29: #{decoder_forward.1} parent=23 // pred_check
          %p775 = pneg %p118
        $region30: #{decoder_forward.1} parent=23 // pred_check_branch
          %777 = sbr.rel (%p775) target = $region32
        $region31: #{decoder_forward.1} parent=23 // pred_region
          %p778 = scmp.lt.s32.totalorder %s46, 1
          %s779 = scalar_select %p778, %s46, 1
          %s780 = smul.addr %s779, 8
          %s781 = scalar_lea.vmem %s2, %s780
        $region32: #{decoder_forward.1} parent=23 // pred_fallthru
          _
        // Predicated region
        $region33: #{decoder_forward.1} parent=23 // pred_check
          %p782 = pneg %p144
        $region34: #{decoder_forward.1} parent=23 // pred_check_branch
          %784 = sbr.rel (%p782) target = $region36
        $region35: #{decoder_forward.1} parent=23 // pred_region
          %p785 = scmp.lt.s32.totalorder %s47, 1
          %s786 = scalar_select %p785, %s47, 1
          %s787 = smul.addr %s786, 4
          %s788 = smul.addr %s787, 4
          %s789 = scalar_lea.vmem %s3, %s788
        $region36: #{decoder_forward.1} parent=23 // pred_fallthru
          _
        // Predicated region
        $region37: #{decoder_forward.1} parent=23 // pred_check
          %p790 = pneg %p170
        $region38: #{decoder_forward.1} parent=23 // pred_check_branch
          %792 = sbr.rel (%p790) target = $region40
        $region39: #{decoder_forward.1} parent=23 // pred_region
          %p793 = scmp.lt.s32.totalorder %s47, 1
          %s794 = scalar_select %p793, %s47, 1
          %s795 = scalar_lea.vmem %s4, %s794
        $region40: #{decoder_forward.1} parent=23 // pred_fallthru
          _
        // Predicated region
        $region41: #{decoder_forward.1} parent=23 // pred_check
          %p796 = pneg %p196
        $region42: #{decoder_forward.1} parent=23 // pred_check_branch
          %798 = sbr.rel (%p796) target = $region44
        $region43: #{decoder_forward.1} parent=23 // pred_region
          %p799 = scmp.lt.s32.totalorder %s47, 1
          %s800 = scalar_select %p799, %s47, 1
          %s801 = smul.addr %s800, 4
          %s802 = smul.addr %s801, 4
          %s803 = scalar_lea.vmem %s5, %s802
        $region44: #{decoder_forward.1} parent=23 // pred_fallthru
          _
        // Predicated region
        $region45: #{decoder_forward.1} parent=23 // pred_check
          %p804 = pneg %p222
        $region46: #{decoder_forward.1} parent=23 // pred_check_branch
          %806 = sbr.rel (%p804) target = $region48
        $region47: #{decoder_forward.1} parent=23 // pred_region
          %p807 = scmp.lt.s32.totalorder %s47, 1
          %s808 = scalar_select %p807, %s47, 1
          %s809 = scalar_lea.vmem %s6, %s808
        $region48: #{decoder_forward.1} parent=23 // pred_fallthru
          _
        // Predicated region
        $region49: #{decoder_forward.1} parent=23 // pred_check
          %p810 = pneg %p248
        $region50: #{decoder_forward.1} parent=23 // pred_check_branch
          %812 = sbr.rel (%p810) target = $region52
        $region51: #{decoder_forward.1} parent=23 // pred_region
          %p813 = scmp.lt.s32.totalorder %s47, 1
          %s814 = scalar_select %p813, %s47, 1
          %s815 = scalar_lea.vmem %s7, %s814
        $region52: #{decoder_forward.1} parent=23 // pred_fallthru
          _
        // Predicated region
        $region53: #{decoder_forward.1} parent=23 // pred_check
          %p816 = pneg %p274
        $region54: #{decoder_forward.1} parent=23 // pred_check_branch
          %818 = sbr.rel (%p816) target = $region56
        $region55: #{decoder_forward.1} parent=23 // pred_region
          %p819 = scmp.lt.s32.totalorder %s47, 1
          %s820 = scalar_select %p819, %s47, 1
          %s821 = scalar_lea.vmem %s8, %s820
        $region56: #{decoder_forward.1} parent=23 // pred_fallthru
          _
        // Predicated region
        $region57: #{decoder_forward.1} parent=23 // pred_check
          %p822 = pneg %p300
        $region58: #{decoder_forward.1} parent=23 // pred_check_branch
          %824 = sbr.rel (%p822) target = $region60
        $region59: #{decoder_forward.1} parent=23 // pred_region
          %p825 = scmp.lt.s32.totalorder %s47, 1
          %s826 = scalar_select %p825, %s47, 1
          %s827 = smul.addr %s826, 4
          %s828 = smul.addr %s827, 4
          %s829 = scalar_lea.vmem %s9, %s828
        $region60: #{decoder_forward.1} parent=23 // pred_fallthru
          _
        // Predicated region
        $region61: #{decoder_forward.1} parent=23 // pred_check
          %p830 = pneg %p326
        $region62: #{decoder_forward.1} parent=23 // pred_check_branch
          %832 = sbr.rel (%p830) target = $region64
        $region63: #{decoder_forward.1} parent=23 // pred_region
          %p833 = scmp.lt.s32.totalorder %s47, 1
          %s834 = scalar_select %p833, %s47, 1
          %s835 = scalar_lea.vmem %s10, %s834
        $region64: #{decoder_forward.1} parent=23 // pred_fallthru
          _
        // Predicated region
        $region65: #{decoder_forward.1} parent=23 // pred_check
          %p836 = pneg %p352
        $region66: #{decoder_forward.1} parent=23 // pred_check_branch
          %838 = sbr.rel (%p836) target = $region68
        $region67: #{decoder_forward.1} parent=23 // pred_region
          %p839 = scmp.lt.s32.totalorder %s47, 1
          %s840 = scalar_select %p839, %s47, 1
          %s841 = smul.addr %s840, 4
          %s842 = smul.addr %s841, 4
          %s843 = scalar_lea.vmem %s11, %s842
        $region68: #{decoder_forward.1} parent=23 // pred_fallthru
          _
        // Predicated region
        $region69: #{decoder_forward.1} parent=23 // pred_check
          %p844 = pneg %p378
        $region70: #{decoder_forward.1} parent=23 // pred_check_branch
          %846 = sbr.rel (%p844) target = $region72
        $region71: #{decoder_forward.1} parent=23 // pred_region
          %p847 = scmp.lt.s32.totalorder %s47, 1
          %s848 = scalar_select %p847, %s47, 1
          %s849 = scalar_lea.vmem %s12, %s848
        $region72: #{decoder_forward.1} parent=23 // pred_fallthru
          _
        // Predicated region
        $region73: #{decoder_forward.1} parent=23 // pred_check
          %p850 = pneg %p404
        $region74: #{decoder_forward.1} parent=23 // pred_check_branch
          %852 = sbr.rel (%p850) target = $region76
        $region75: #{decoder_forward.1} parent=23 // pred_region
          %p853 = scmp.lt.s32.totalorder %s47, 1
          %s854 = scalar_select %p853, %s47, 1
          %s855 = smul.addr %s854, 4
          %s856 = smul.addr %s855, 4
          %s857 = scalar_lea.vmem %s13, %s856
        $region76: #{decoder_forward.1} parent=23 // pred_fallthru
          _
        // Predicated region
        $region77: #{decoder_forward.1} parent=23 // pred_check
          %p858 = pneg %p430
        $region78: #{decoder_forward.1} parent=23 // pred_check_branch
          %860 = sbr.rel (%p858) target = $region80
        $region79: #{decoder_forward.1} parent=23 // pred_region
          %p861 = scmp.lt.s32.totalorder %s47, 1
          %s862 = scalar_select %p861, %s47, 1
          %s863 = scalar_lea.vmem %s14, %s862
        $region80: #{decoder_forward.1} parent=23 // pred_fallthru
          _
        // Predicated region
        $region81: #{decoder_forward.1} parent=23 // pred_check
          %p864 = pneg %p456
        $region82: #{decoder_forward.1} parent=23 // pred_check_branch
          %866 = sbr.rel (%p864) target = $region84
        $region83: #{decoder_forward.1} parent=23 // pred_region
          %p867 = scmp.lt.s32.totalorder %s47, 1
          %s868 = scalar_select %p867, %s47, 1
          %s869 = scalar_lea.vmem %s15, %s868
        $region84: #{decoder_forward.1} parent=23 // pred_fallthru
          _
        // Predicated region
        $region85: #{decoder_forward.1} parent=23 // pred_check
          %p870 = pneg %p482
        $region86: #{decoder_forward.1} parent=23 // pred_check_branch
          %872 = sbr.rel (%p870) target = $region88
        $region87: #{decoder_forward.1} parent=23 // pred_region
          %p873 = scmp.lt.s32.totalorder %s47, 1
          %s874 = scalar_select %p873, %s47, 1
          %s875 = scalar_lea.vmem %s16, %s874
        $region88: #{decoder_forward.1} parent=23 // pred_fallthru
          _
        // Predicated region
        $region89: #{decoder_forward.1} parent=23 // pred_check
          %p876 = pneg %p508
        $region90: #{decoder_forward.1} parent=23 // pred_check_branch
          %878 = sbr.rel (%p876) target = $region92
        $region91: #{decoder_forward.1} parent=23 // pred_region
          %p879 = scmp.lt.s32.totalorder %s47, 1
          %s880 = scalar_select %p879, %s47, 1
          %s881 = smul.addr %s880, 4
          %s882 = smul.addr %s881, 4
          %s883 = scalar_lea.vmem %s17, %s882
        $region92: #{decoder_forward.1} parent=23 // pred_fallthru
          _
        // Predicated region
        $region93: #{decoder_forward.1} parent=23 // pred_check
          %p884 = pneg %p534
        $region94: #{decoder_forward.1} parent=23 // pred_check_branch
          %886 = sbr.rel (%p884) target = $region96
        $region95: #{decoder_forward.1} parent=23 // pred_region
          %p887 = scmp.lt.s32.totalorder %s47, 1
          %s888 = scalar_select %p887, %s47, 1
          %s889 = scalar_lea.vmem %s18, %s888
        $region96: #{decoder_forward.1} parent=23 // pred_fallthru
          _
        // Predicated region
        $region97: #{decoder_forward.1} parent=23 // pred_check
          %p890 = pneg %p560
        $region98: #{decoder_forward.1} parent=23 // pred_check_branch
          %892 = sbr.rel (%p890) target = $region100
        $region99: #{decoder_forward.1} parent=23 // pred_region
          %p893 = scmp.lt.s32.totalorder %s47, 1
          %s894 = scalar_select %p893, %s47, 1
          %s895 = smul.addr %s894, 8
          %s896 = smul.addr %s895, 4
          %s897 = scalar_lea.vmem %s19, %s896
        $region100: #{decoder_forward.1} parent=23 // pred_fallthru
          _
        // Predicated region
        $region101: #{decoder_forward.1} parent=23 // pred_check
          %p898 = pneg %p586
        $region102: #{decoder_forward.1} parent=23 // pred_check_branch
          %900 = sbr.rel (%p898) target = $region104
        $region103: #{decoder_forward.1} parent=23 // pred_region
          %p901 = scmp.lt.s32.totalorder %s47, 1
          %s902 = scalar_select %p901, %s47, 1
          %s903 = scalar_lea.vmem %s20, %s902
        $region104: #{decoder_forward.1} parent=23 // pred_fallthru
          _
        // Predicated region
        $region105: #{decoder_forward.1} parent=23 // pred_check
          %p904 = pneg %p612
        $region106: #{decoder_forward.1} parent=23 // pred_check_branch
          %906 = sbr.rel (%p904) target = $region108
        $region107: #{decoder_forward.1} parent=23 // pred_region
          %p907 = scmp.lt.s32.totalorder %s47, 1
          %s908 = scalar_select %p907, %s47, 1
          %s909 = scalar_lea.vmem %s21, %s908
        $region108: #{decoder_forward.1} parent=23 // pred_fallthru
          _
        // Predicated region
        $region109: #{decoder_forward.1} parent=23 // pred_check
          %p910 = pneg %p638
        $region110: #{decoder_forward.1} parent=23 // pred_check_branch
          %912 = sbr.rel (%p910) target = $region112
        $region111: #{decoder_forward.1} parent=23 // pred_region
          %p913 = scmp.lt.s32.totalorder %s47, 1
          %s914 = scalar_select %p913, %s47, 1
          %s915 = scalar_lea.vmem %s22, %s914
        $region112: #{decoder_forward.1} parent=23 // pred_fallthru
          _
      $region24: #{decoder_forward.1} parent=5 // pred_fallthru
        _
      %p916 = scmp.le.s32.totalorder 1, %s39
      %p917 = scmp.lt.s32.totalorder %s39, 5
      %p918 = pnand %p916, %p917
      %p919 = pneg %p918
      // Predicated region
      $region113: #{decoder_forward.1} parent=5 // pred_check
        _
      $region114: #{decoder_forward.1} parent=5 // pred_check_branch
        %921 = sbr.rel (%p918) target = $region116
      $region115: #{decoder_forward.1} parent=5 // pred_region
        %s922 = ssub.s32 %s39, 1
        %p923 = scmp.lt.s32.totalorder %s48, 1
        %s924 = scalar_select %p923, %s48, 1
        %s925 = smul.addr %s924, 8
        %s926 = scalar_lea.vmem %s0, %s925
        %p927 = pneg %p77
        %p928 = pneg %p74
        %p929 = pneg %p98
        %p930 = pneg %p95
        %p931 = scmp.lt.s32.totalorder %s48, 1
        %s932 = scalar_select %p931, %s48, 1
        %s933 = smul.addr %s932, 8
        %s934 = scalar_lea.vmem %s2, %s933
        %p935 = pneg %p124
        %p936 = pneg %p121
        %p937 = scmp.lt.s32.totalorder %s49, 1
        %s938 = scalar_select %p937, %s49, 1
        %s939 = smul.addr %s938, 4
        %s940 = smul.addr %s939, 4
        %s941 = scalar_lea.vmem %s3, %s940
        %p942 = pneg %p150
        %p943 = pneg %p147
        %p944 = scmp.lt.s32.totalorder %s49, 1
        %s945 = scalar_select %p944, %s49, 1
        %s946 = scalar_lea.vmem %s4, %s945
        %p947 = pneg %p176
        %p948 = pneg %p173
        %p949 = scmp.lt.s32.totalorder %s49, 1
        %s950 = scalar_select %p949, %s49, 1
        %s951 = smul.addr %s950, 4
        %s952 = smul.addr %s951, 4
        %s953 = scalar_lea.vmem %s5, %s952
        %p954 = pneg %p202
        %p955 = pneg %p199
        %p956 = scmp.lt.s32.totalorder %s49, 1
        %s957 = scalar_select %p956, %s49, 1
        %s958 = scalar_lea.vmem %s6, %s957
        %p959 = pneg %p228
        %p960 = pneg %p225
        %p961 = scmp.lt.s32.totalorder %s49, 1
        %s962 = scalar_select %p961, %s49, 1
        %s963 = scalar_lea.vmem %s7, %s962
        %p964 = pneg %p254
        %p965 = pneg %p251
        %p966 = scmp.lt.s32.totalorder %s49, 1
        %s967 = scalar_select %p966, %s49, 1
        %s968 = scalar_lea.vmem %s8, %s967
        %p969 = pneg %p280
        %p970 = pneg %p277
        %p971 = scmp.lt.s32.totalorder %s49, 1
        %s972 = scalar_select %p971, %s49, 1
        %s973 = smul.addr %s972, 4
        %s974 = smul.addr %s973, 4
        %s975 = scalar_lea.vmem %s9, %s974
        %p976 = pneg %p306
        %p977 = pneg %p303
        %p978 = scmp.lt.s32.totalorder %s49, 1
        %s979 = scalar_select %p978, %s49, 1
        %s980 = scalar_lea.vmem %s10, %s979
        %p981 = pneg %p332
        %p982 = pneg %p329
        %p983 = scmp.lt.s32.totalorder %s49, 1
        %s984 = scalar_select %p983, %s49, 1
        %s985 = smul.addr %s984, 4
        %s986 = smul.addr %s985, 4
        %s987 = scalar_lea.vmem %s11, %s986
        %p988 = pneg %p358
        %p989 = pneg %p355
        %p990 = scmp.lt.s32.totalorder %s49, 1
        %s991 = scalar_select %p990, %s49, 1
        %s992 = scalar_lea.vmem %s12, %s991
        %p993 = pneg %p384
        %p994 = pneg %p381
        %p995 = scmp.lt.s32.totalorder %s49, 1
        %s996 = scalar_select %p995, %s49, 1
        %s997 = smul.addr %s996, 4
        %s998 = smul.addr %s997, 4
        %s999 = scalar_lea.vmem %s13, %s998
        %p1000 = pneg %p410
        %p1001 = pneg %p407
        %p1002 = scmp.lt.s32.totalorder %s49, 1
        %s1003 = scalar_select %p1002, %s49, 1
        %s1004 = scalar_lea.vmem %s14, %s1003
        %p1005 = pneg %p436
        %p1006 = pneg %p433
        %p1007 = scmp.lt.s32.totalorder %s49, 1
        %s1008 = scalar_select %p1007, %s49, 1
        %s1009 = scalar_lea.vmem %s15, %s1008
        %p1010 = pneg %p462
        %p1011 = pneg %p459
        %p1012 = scmp.lt.s32.totalorder %s49, 1
        %s1013 = scalar_select %p1012, %s49, 1
        %s1014 = scalar_lea.vmem %s16, %s1013
        %p1015 = pneg %p488
        %p1016 = pneg %p485
        %p1017 = scmp.lt.s32.totalorder %s49, 1
        %s1018 = scalar_select %p1017, %s49, 1
        %s1019 = smul.addr %s1018, 4
        %s1020 = smul.addr %s1019, 4
        %s1021 = scalar_lea.vmem %s17, %s1020
        %p1022 = pneg %p514
        %p1023 = pneg %p511
        %p1024 = scmp.lt.s32.totalorder %s49, 1
        %s1025 = scalar_select %p1024, %s49, 1
        %s1026 = scalar_lea.vmem %s18, %s1025
        %p1027 = pneg %p540
        %p1028 = pneg %p537
        %p1029 = scmp.lt.s32.totalorder %s49, 1
        %s1030 = scalar_select %p1029, %s49, 1
        %s1031 = smul.addr %s1030, 8
        %s1032 = smul.addr %s1031, 4
        %s1033 = scalar_lea.vmem %s19, %s1032
        %p1034 = pneg %p566
        %p1035 = pneg %p563
        %p1036 = scmp.lt.s32.totalorder %s49, 1
        %s1037 = scalar_select %p1036, %s49, 1
        %s1038 = scalar_lea.vmem %s20, %s1037
        %p1039 = pneg %p592
        %p1040 = pneg %p589
        %p1041 = scmp.lt.s32.totalorder %s49, 1
        %s1042 = scalar_select %p1041, %s49, 1
        %s1043 = scalar_lea.vmem %s21, %s1042
        %p1044 = pneg %p618
        %p1045 = pneg %p615
        %p1046 = scmp.lt.s32.totalorder %s49, 1
        %s1047 = scalar_select %p1046, %s49, 1
        %s1048 = scalar_lea.vmem %s22, %s1047
        %p1049 = pneg %p644
        %p1050 = pneg %p641
        %p1051 = pneg %p665
        %p1052 = pneg %p662
        %p1053 = pneg %p691
        %p1054 = pneg %p688
        %s1055 = sand.u32 %s678, 1
        %s1056 = scalar_lea.sflag [#allocation3], %s1055
        %s1057 = sand.u32 %s678, 1
        %s1058 = smul.addr %s1057, 8
        %s1059 = scalar_lea.vmem [#allocation2], %s1058
        %p1060 = pneg %p717
        %p1061 = pneg %p714
        %s1062 = sand.u32 %s44, 1
        %s1063 = scalar_lea.sflag [#allocation5], %s1062
        %s1064 = sand.u32 %s704, 1
        %s1065 = smul.addr %s1064, 32
        %s1066 = scalar_lea.vmem [#allocation4], %s1065
        %p1067 = pneg %p743
        %p1068 = pneg %p740
        %s1069 = sand.u32 %s44, 1
        %s1070 = scalar_lea.sflag [#allocation5], %s1069
        %s1071 = sand.u32 %s730, 1
        %s1072 = smul.addr %s1071, 32
        %s1073 = scalar_lea.vmem [#allocation6], %s1072
        %p1074 = scmp.lt.s32.totalorder %s48, 1
        %s1075 = scalar_select %p1074, %s48, 1
        %s1076 = smul.addr %s1075, 8
        %s1077 = scalar_lea.vmem %s0, %s1076
        %p1078 = scmp.lt.s32.totalorder %s48, 1
        %s1079 = scalar_select %p1078, %s48, 1
        %s1080 = smul.addr %s1079, 8
        %s1081 = scalar_lea.vmem %s2, %s1080
        %p1082 = scmp.lt.s32.totalorder %s49, 1
        %s1083 = scalar_select %p1082, %s49, 1
        %s1084 = smul.addr %s1083, 4
        %s1085 = smul.addr %s1084, 4
        %s1086 = scalar_lea.vmem %s3, %s1085
        %p1087 = scmp.lt.s32.totalorder %s49, 1
        %s1088 = scalar_select %p1087, %s49, 1
        %s1089 = scalar_lea.vmem %s4, %s1088
        %p1090 = scmp.lt.s32.totalorder %s49, 1
        %s1091 = scalar_select %p1090, %s49, 1
        %s1092 = smul.addr %s1091, 4
        %s1093 = smul.addr %s1092, 4
        %s1094 = scalar_lea.vmem %s5, %s1093
        %p1095 = scmp.lt.s32.totalorder %s49, 1
        %s1096 = scalar_select %p1095, %s49, 1
        %s1097 = scalar_lea.vmem %s6, %s1096
        %p1098 = scmp.lt.s32.totalorder %s49, 1
        %s1099 = scalar_select %p1098, %s49, 1
        %s1100 = scalar_lea.vmem %s7, %s1099
        %p1101 = scmp.lt.s32.totalorder %s49, 1
        %s1102 = scalar_select %p1101, %s49, 1
        %s1103 = scalar_lea.vmem %s8, %s1102
        %p1104 = scmp.lt.s32.totalorder %s49, 1
        %s1105 = scalar_select %p1104, %s49, 1
        %s1106 = smul.addr %s1105, 4
        %s1107 = smul.addr %s1106, 4
        %s1108 = scalar_lea.vmem %s9, %s1107
        %p1109 = scmp.lt.s32.totalorder %s49, 1
        %s1110 = scalar_select %p1109, %s49, 1
        %s1111 = scalar_lea.vmem %s10, %s1110
        %p1112 = scmp.lt.s32.totalorder %s49, 1
        %s1113 = scalar_select %p1112, %s49, 1
        %s1114 = smul.addr %s1113, 4
        %s1115 = smul.addr %s1114, 4
        %s1116 = scalar_lea.vmem %s11, %s1115
        %p1117 = scmp.lt.s32.totalorder %s49, 1
        %s1118 = scalar_select %p1117, %s49, 1
        %s1119 = scalar_lea.vmem %s12, %s1118
        %p1120 = scmp.lt.s32.totalorder %s49, 1
        %s1121 = scalar_select %p1120, %s49, 1
        %s1122 = smul.addr %s1121, 4
        %s1123 = smul.addr %s1122, 4
        %s1124 = scalar_lea.vmem %s13, %s1123
        %p1125 = scmp.lt.s32.totalorder %s49, 1
        %s1126 = scalar_select %p1125, %s49, 1
        %s1127 = scalar_lea.vmem %s14, %s1126
        %p1128 = scmp.lt.s32.totalorder %s49, 1
        %s1129 = scalar_select %p1128, %s49, 1
        %s1130 = scalar_lea.vmem %s15, %s1129
        %p1131 = scmp.lt.s32.totalorder %s49, 1
        %s1132 = scalar_select %p1131, %s49, 1
        %s1133 = scalar_lea.vmem %s16, %s1132
        %p1134 = scmp.lt.s32.totalorder %s49, 1
        %s1135 = scalar_select %p1134, %s49, 1
        %s1136 = smul.addr %s1135, 4
        %s1137 = smul.addr %s1136, 4
        %s1138 = scalar_lea.vmem %s17, %s1137
        %p1139 = scmp.lt.s32.totalorder %s49, 1
        %s1140 = scalar_select %p1139, %s49, 1
        %s1141 = scalar_lea.vmem %s18, %s1140
        %p1142 = scmp.lt.s32.totalorder %s49, 1
        %s1143 = scalar_select %p1142, %s49, 1
        %s1144 = smul.addr %s1143, 8
        %s1145 = smul.addr %s1144, 4
        %s1146 = scalar_lea.vmem %s19, %s1145
        %p1147 = scmp.lt.s32.totalorder %s49, 1
        %s1148 = scalar_select %p1147, %s49, 1
        %s1149 = scalar_lea.vmem %s20, %s1148
        %p1150 = scmp.lt.s32.totalorder %s49, 1
        %s1151 = scalar_select %p1150, %s49, 1
        %s1152 = scalar_lea.vmem %s21, %s1151
        %p1153 = scmp.lt.s32.totalorder %s49, 1
        %s1154 = scalar_select %p1153, %s49, 1
        %s1155 = scalar_lea.vmem %s22, %s1154
        %p1157 = scmp.eq.s32.totalorder %s49, 0
        // Predicated region
        $region117: #{decoder_forward.1} parent=115 // pred_check
          %p1158 = pneg %p1157
        $region118: #{decoder_forward.1} parent=115 // pred_check_branch
          %1160 = sbr.rel (%p1158) target = $region120
        $region119: #{decoder_forward.1} parent=115 // pred_region
          %v1161 = vld [vmem:[%s1077] sm:$0xff]
          %v1162 = vld [vmem:[%s1] sm:$0xff]
          %v1163 = vadd.f32 %v1161, %v1162
          %vm1164 = vcmask 261120
          %1165 = vst.msk [vmem:[%s1059] sm:$0xff] %vm1164, %v1163
        $region120: #{decoder_forward.1} parent=115 // pred_fallthru
          _
        %v1166 = vld [vmem:[%s1059] sm:$0xff]
        %v1167 = vld [vmem:[%s23] sm:$0xff]
        %v1168 = vpack.c.bf16 %v1166, %v1166
        %v1169 = vld [vmem:[%s1086] sm:$0xf]
        %v1170 = vld [vmem:[%s1086 + $0x4] sm:$0xf]
        %v1171 = vld [vmem:[%s1086 + $0x8] sm:$0xf]
        %v1172 = vld [vmem:[%s1086 + $0xc] sm:$0xf]
        %v1173 = vld [vmem:[%s1089] sm:$0x1]
        %v1175 = vlaneseq
        %v1176 = vshrl.u32 %v1175, 7
        %v1177 = vsub.s32 0, %v1176
        %v1178 = vrot.slane %v1173, %v1177
        %v1184 = vunpack.c.l.b16 %v1169
        %v1185 = vunpack.c.l.b16 %v1170
        %v1186 = vunpack.c.l.b16 %v1171
        %v1187 = vunpack.c.l.b16 %v1172
        %v1188 = vpack.c.b16 %v1185, %v1184
        %v1189 = vpack.c.b16 %v1187, %v1186
        %vm1192 = vcmask 261120
        %v1194 = vsel %vm1192, %v1168, 0
        %1196 = vmatprep.subr.bf16.mxu0 0
        %1197 = vmatpush1.bf16.msra.mxu0 0
        %1198 = vmatprep.subr.bf16.mxu0 0
        %1199 = vmatpush1.bf16.msra.mxu0 0
        %1200 = vmatprep.subr.bf16.mxu0 0
        %1201 = vmatpush1.bf16.msra.mxu0 0
        %1202 = vmatprep.subr.bf16.mxu0 0
        %1203 = vmatpush1.bf16.msra.mxu0 0
        %1204 = vmatprep.subr.bf16.mxu0 0
        %1205 = vmatpush1.bf16.msra.mxu0 0
        %1206 = vmatprep.subr.bf16.mxu0 0
        %1207 = vmatpush1.bf16.msra.mxu0 0
        %1208 = vmatprep.subr.bf16.mxu0 0
        %1209 = vmatpush1.bf16.msra.mxu0 %v1189
        %1210 = vmatprep.subr.bf16.mxu0 0
        %1211 = vmatpush1.bf16.msra.mxu0 %v1188
        %1212 = vmatprep.subr.bf16.mxu0 0
        %1213 = vmatpush2.bf16.msra.mxu0 0
        %1214 = vmatprep.subr.bf16.mxu0 0
        %1215 = vmatpush2.bf16.msra.mxu0 0
        %1216 = vmatprep.subr.bf16.mxu0 0
        %1217 = vmatpush2.bf16.msra.mxu0 0
        %1218 = vmatprep.subr.bf16.mxu0 0
        %1219 = vmatpush2.bf16.msra.mxu0 0
        %1220 = vmatprep.subr.bf16.mxu0 0
        %1221 = vmatpush2.bf16.msra.mxu0 0
        %1222 = vmatprep.subr.bf16.mxu0 0
        %1223 = vmatpush2.bf16.msra.mxu0 0
        %1224 = vmatprep.subr.bf16.mxu0 0
        %1225 = vmatpush2.bf16.msra.mxu0 0
        %1226 = vmatprep.subr.bf16.mxu0 0
        %1227 = vmatpush2.bf16.msra.mxu0 0
        %1228 = vmatprep.mubr.bf16.mxu0 0
        %1229 = vmatmul.mubr.bf16.gmra.mxu0 %v1194
        %v1230 = vpop.f32.mrf.mxu0
        %v1231 = vadd.f32 %v1178, %v1230
        %v1232 = vpop.f32.mrf.mxu0
        %v1233 = vpop.f32.mrf.mxu0
        %v1234 = vpop.f32.mrf.mxu0
        %1235 = vdwg.mxu0
        %1237 = vrot.lane.b32.xlu0 %v1231, 120
        %v1238 = vpop.permute.xlu0 %1237
        %1240 = vrot.lane.b32.xlu0 %v1231, 112
        %v1241 = vpop.permute.xlu0 %1240
        %1243 = vrot.lane.b32.xlu0 %v1231, 104
        %v1244 = vpop.permute.xlu0 %1243
        %v1246 = vcombine.low %v1231, %v1241
        %v1247 = vcombine.high %v1231, %v1241
        %v1249 = vunpack.c.l.s4 1983009808
        %v1250 = vunpack.c.0.s8 %v1249
        %v1251 = vlaneseq
        %v1252 = vshrl.u32 %v1251, 7
        %v1253 = vsub.s32 %v1250, %v1252
        %v1254 = vrot.slane %v1246, %v1253
        %v1256 = vunpack.c.l.s4 1983009808
        %v1257 = vunpack.c.0.s8 %v1256
        %v1258 = vlaneseq
        %v1259 = vshrl.u32 %v1258, 7
        %v1260 = vsub.s32 %v1257, %v1259
        %v1261 = vrot.slane %v1247, %v1260
        %v1262 = vcombine.low %v1238, %v1244
        %v1263 = vcombine.high %v1238, %v1244
        %v1265 = vunpack.c.l.s4 1983009808
        %v1266 = vunpack.c.0.s8 %v1265
        %v1267 = vlaneseq
        %v1268 = vshrl.u32 %v1267, 7
        %v1269 = vsub.s32 %v1266, %v1268
        %v1270 = vrot.slane %v1262, %v1269
        %v1272 = vunpack.c.l.s4 1983009808
        %v1273 = vunpack.c.0.s8 %v1272
        %v1274 = vlaneseq
        %v1275 = vshrl.u32 %v1274, 7
        %v1276 = vsub.s32 %v1273, %v1275
        %v1277 = vrot.slane %v1263, %v1276
        %v1278 = vcombine.low %v1254, %v1270
        %v1279 = vcombine.high %v1254, %v1270
        %v1281 = vunpack.c.l.s4 1934713408
        %v1282 = vunpack.c.0.s8 %v1281
        %v1283 = vlaneseq
        %v1284 = vshrl.u32 %v1283, 7
        %v1285 = vsub.s32 %v1282, %v1284
        %v1286 = vrot.slane %v1278, %v1285
        %v1288 = vunpack.c.l.s4 1934713408
        %v1289 = vunpack.c.0.s8 %v1288
        %v1290 = vlaneseq
        %v1291 = vshrl.u32 %v1290, 7
        %v1292 = vsub.s32 %v1289, %v1291
        %v1293 = vrot.slane %v1279, %v1292
        %v1294 = vcombine.low %v1261, %v1277
        %v1295 = vcombine.high %v1261, %v1277
        %v1297 = vunpack.c.l.s4 1934713408
        %v1298 = vunpack.c.0.s8 %v1297
        %v1299 = vlaneseq
        %v1300 = vshrl.u32 %v1299, 7
        %v1301 = vsub.s32 %v1298, %v1300
        %v1302 = vrot.slane %v1294, %v1301
        %v1304 = vunpack.c.l.s4 1934713408
        %v1305 = vunpack.c.0.s8 %v1304
        %v1306 = vlaneseq
        %v1307 = vshrl.u32 %v1306, 7
        %v1308 = vsub.s32 %v1305, %v1307
        %v1309 = vrot.slane %v1295, %v1308
        %v1310 = vcombine.high %v1286, 0.0
        %v1311 = vcombine.high %v1293, 0.0
        %v1312 = vcombine.high %v1302, 0.0
        %v1313 = vcombine.high %v1309, 0.0
        %v1314 = vcombine.low %v1286, %v1293
        %v1316 = vunpack.c.l.s4 1983009808
        %v1317 = vunpack.c.0.s8 %v1316
        %v1318 = vlaneseq
        %v1319 = vshrl.u32 %v1318, 7
        %v1320 = vsub.s32 %v1317, %v1319
        %v1321 = vrot.slane %v1314, %v1320
        %v1322 = vcombine.low %v1310, %v1311
        %v1324 = vunpack.c.l.s4 1983009808
        %v1325 = vunpack.c.0.s8 %v1324
        %v1326 = vlaneseq
        %v1327 = vshrl.u32 %v1326, 7
        %v1328 = vsub.s32 %v1325, %v1327
        %v1329 = vrot.slane %v1322, %v1328
        %v1330 = vcombine.low %v1302, %v1309
        %v1332 = vunpack.c.l.s4 1983009808
        %v1333 = vunpack.c.0.s8 %v1332
        %v1334 = vlaneseq
        %v1335 = vshrl.u32 %v1334, 7
        %v1336 = vsub.s32 %v1333, %v1335
        %v1337 = vrot.slane %v1330, %v1336
        %v1338 = vcombine.low %v1312, %v1313
        %v1340 = vunpack.c.l.s4 1983009808
        %v1341 = vunpack.c.0.s8 %v1340
        %v1342 = vlaneseq
        %v1343 = vshrl.u32 %v1342, 7
        %v1344 = vsub.s32 %v1341, %v1343
        %v1345 = vrot.slane %v1338, %v1344
        %v1346 = vcombine.low %v1321, %v1329
        %v1347 = vcombine.high %v1321, %v1329
        %v1349 = vunpack.c.l.s4 1934713408
        %v1350 = vunpack.c.0.s8 %v1349
        %v1351 = vlaneseq
        %v1352 = vshrl.u32 %v1351, 7
        %v1353 = vsub.s32 %v1350, %v1352
        %v1354 = vrot.slane %v1346, %v1353
        %v1356 = vunpack.c.l.s4 1934713408
        %v1357 = vunpack.c.0.s8 %v1356
        %v1358 = vlaneseq
        %v1359 = vshrl.u32 %v1358, 7
        %v1360 = vsub.s32 %v1357, %v1359
        %v1361 = vrot.slane %v1347, %v1360
        %v1362 = vcombine.low %v1337, %v1345
        %v1363 = vcombine.high %v1337, %v1345
        %v1365 = vunpack.c.l.s4 1934713408
        %v1366 = vunpack.c.0.s8 %v1365
        %v1367 = vlaneseq
        %v1368 = vshrl.u32 %v1367, 7
        %v1369 = vsub.s32 %v1366, %v1368
        %v1370 = vrot.slane %v1362, %v1369
        %v1372 = vunpack.c.l.s4 1934713408
        %v1373 = vunpack.c.0.s8 %v1372
        %v1374 = vlaneseq
        %v1375 = vshrl.u32 %v1374, 7
        %v1376 = vsub.s32 %v1373, %v1375
        %v1377 = vrot.slane %v1363, %v1376
        %v1378 = vcombine.low %v1354, %v1370
        %v1379 = vcombine.high %v1354, %v1370
        %v1380 = vcombine.low %v1361, %v1377
        %v1381 = vcombine.high %v1361, %v1377
        %1382 = vrot.lane.b32.xlu0 %v1231, 96
        %v1383 = vpop.permute.xlu0 %1382
        %1384 = vrot.lane.b32.xlu0 %v1238, 96
        %v1385 = vpop.permute.xlu0 %1384
        %1386 = vrot.lane.b32.xlu0 %v1241, 96
        %v1387 = vpop.permute.xlu0 %1386
        %1388 = vrot.lane.b32.xlu0 %v1244, 96
        %v1389 = vpop.permute.xlu0 %1388
        %v1394 = vcombine.low %v1383, %v1387
        %v1395 = vcombine.high %v1383, %v1387
        %v1397 = vunpack.c.l.s4 1983009808
        %v1398 = vunpack.c.0.s8 %v1397
        %v1399 = vlaneseq
        %v1400 = vshrl.u32 %v1399, 7
        %v1401 = vsub.s32 %v1398, %v1400
        %v1402 = vrot.slane %v1394, %v1401
        %v1404 = vunpack.c.l.s4 1983009808
        %v1405 = vunpack.c.0.s8 %v1404
        %v1406 = vlaneseq
        %v1407 = vshrl.u32 %v1406, 7
        %v1408 = vsub.s32 %v1405, %v1407
        %v1409 = vrot.slane %v1395, %v1408
        %v1410 = vcombine.low %v1385, %v1389
        %v1411 = vcombine.high %v1385, %v1389
        %v1413 = vunpack.c.l.s4 1983009808
        %v1414 = vunpack.c.0.s8 %v1413
        %v1415 = vlaneseq
        %v1416 = vshrl.u32 %v1415, 7
        %v1417 = vsub.s32 %v1414, %v1416
        %v1418 = vrot.slane %v1410, %v1417
        %v1420 = vunpack.c.l.s4 1983009808
        %v1421 = vunpack.c.0.s8 %v1420
        %v1422 = vlaneseq
        %v1423 = vshrl.u32 %v1422, 7
        %v1424 = vsub.s32 %v1421, %v1423
        %v1425 = vrot.slane %v1411, %v1424
        %v1426 = vcombine.low %v1402, %v1418
        %v1427 = vcombine.high %v1402, %v1418
        %v1429 = vunpack.c.l.s4 1934713408
        %v1430 = vunpack.c.0.s8 %v1429
        %v1431 = vlaneseq
        %v1432 = vshrl.u32 %v1431, 7
        %v1433 = vsub.s32 %v1430, %v1432
        %v1434 = vrot.slane %v1426, %v1433
        %v1436 = vunpack.c.l.s4 1934713408
        %v1437 = vunpack.c.0.s8 %v1436
        %v1438 = vlaneseq
        %v1439 = vshrl.u32 %v1438, 7
        %v1440 = vsub.s32 %v1437, %v1439
        %v1441 = vrot.slane %v1427, %v1440
        %v1442 = vcombine.low %v1409, %v1425
        %v1443 = vcombine.high %v1409, %v1425
        %v1445 = vunpack.c.l.s4 1934713408
        %v1446 = vunpack.c.0.s8 %v1445
        %v1447 = vlaneseq
        %v1448 = vshrl.u32 %v1447, 7
        %v1449 = vsub.s32 %v1446, %v1448
        %v1450 = vrot.slane %v1442, %v1449
        %v1452 = vunpack.c.l.s4 1934713408
        %v1453 = vunpack.c.0.s8 %v1452
        %v1454 = vlaneseq
        %v1455 = vshrl.u32 %v1454, 7
        %v1456 = vsub.s32 %v1453, %v1455
        %v1457 = vrot.slane %v1443, %v1456
        %v1458 = vcombine.high %v1434, 0.0
        %v1459 = vcombine.high %v1441, 0.0
        %v1460 = vcombine.high %v1450, 0.0
        %v1461 = vcombine.high %v1457, 0.0
        %v1462 = vcombine.low %v1434, %v1441
        %v1464 = vunpack.c.l.s4 1983009808
        %v1465 = vunpack.c.0.s8 %v1464
        %v1466 = vlaneseq
        %v1467 = vshrl.u32 %v1466, 7
        %v1468 = vsub.s32 %v1465, %v1467
        %v1469 = vrot.slane %v1462, %v1468
        %v1470 = vcombine.low %v1458, %v1459
        %v1472 = vunpack.c.l.s4 1983009808
        %v1473 = vunpack.c.0.s8 %v1472
        %v1474 = vlaneseq
        %v1475 = vshrl.u32 %v1474, 7
        %v1476 = vsub.s32 %v1473, %v1475
        %v1477 = vrot.slane %v1470, %v1476
        %v1478 = vcombine.low %v1450, %v1457
        %v1480 = vunpack.c.l.s4 1983009808
        %v1481 = vunpack.c.0.s8 %v1480
        %v1482 = vlaneseq
        %v1483 = vshrl.u32 %v1482, 7
        %v1484 = vsub.s32 %v1481, %v1483
        %v1485 = vrot.slane %v1478, %v1484
        %v1486 = vcombine.low %v1460, %v1461
        %v1488 = vunpack.c.l.s4 1983009808
        %v1489 = vunpack.c.0.s8 %v1488
        %v1490 = vlaneseq
        %v1491 = vshrl.u32 %v1490, 7
        %v1492 = vsub.s32 %v1489, %v1491
        %v1493 = vrot.slane %v1486, %v1492
        %v1494 = vcombine.low %v1469, %v1477
        %v1495 = vcombine.high %v1469, %v1477
        %v1497 = vunpack.c.l.s4 1934713408
        %v1498 = vunpack.c.0.s8 %v1497
        %v1499 = vlaneseq
        %v1500 = vshrl.u32 %v1499, 7
        %v1501 = vsub.s32 %v1498, %v1500
        %v1502 = vrot.slane %v1494, %v1501
        %v1504 = vunpack.c.l.s4 1934713408
        %v1505 = vunpack.c.0.s8 %v1504
        %v1506 = vlaneseq
        %v1507 = vshrl.u32 %v1506, 7
        %v1508 = vsub.s32 %v1505, %v1507
        %v1509 = vrot.slane %v1495, %v1508
        %v1510 = vcombine.low %v1485, %v1493
        %v1511 = vcombine.high %v1485, %v1493
        %v1513 = vunpack.c.l.s4 1934713408
        %v1514 = vunpack.c.0.s8 %v1513
        %v1515 = vlaneseq
        %v1516 = vshrl.u32 %v1515, 7
        %v1517 = vsub.s32 %v1514, %v1516
        %v1518 = vrot.slane %v1510, %v1517
        %v1520 = vunpack.c.l.s4 1934713408
        %v1521 = vunpack.c.0.s8 %v1520
        %v1522 = vlaneseq
        %v1523 = vshrl.u32 %v1522, 7
        %v1524 = vsub.s32 %v1521, %v1523
        %v1525 = vrot.slane %v1511, %v1524
        %v1526 = vcombine.low %v1502, %v1518
        %v1527 = vcombine.high %v1502, %v1518
        %v1528 = vcombine.low %v1509, %v1525
        %v1529 = vcombine.high %v1509, %v1525
        %1530 = vrot.lane.b32.xlu0 %v1231, 64
        %v1531 = vpop.permute.xlu0 %1530
        %1532 = vrot.lane.b32.xlu0 %v1238, 64
        %v1533 = vpop.permute.xlu0 %1532
        %1534 = vrot.lane.b32.xlu0 %v1241, 64
        %v1535 = vpop.permute.xlu0 %1534
        %1536 = vrot.lane.b32.xlu0 %v1244, 64
        %v1537 = vpop.permute.xlu0 %1536
        %v1542 = vcombine.low %v1531, %v1535
        %v1543 = vcombine.high %v1531, %v1535
        %v1545 = vunpack.c.l.s4 1983009808
        %v1546 = vunpack.c.0.s8 %v1545
        %v1547 = vlaneseq
        %v1548 = vshrl.u32 %v1547, 7
        %v1549 = vsub.s32 %v1546, %v1548
        %v1550 = vrot.slane %v1542, %v1549
        %v1552 = vunpack.c.l.s4 1983009808
        %v1553 = vunpack.c.0.s8 %v1552
        %v1554 = vlaneseq
        %v1555 = vshrl.u32 %v1554, 7
        %v1556 = vsub.s32 %v1553, %v1555
        %v1557 = vrot.slane %v1543, %v1556
        %v1558 = vcombine.low %v1533, %v1537
        %v1559 = vcombine.high %v1533, %v1537
        %v1561 = vunpack.c.l.s4 1983009808
        %v1562 = vunpack.c.0.s8 %v1561
        %v1563 = vlaneseq
        %v1564 = vshrl.u32 %v1563, 7
        %v1565 = vsub.s32 %v1562, %v1564
        %v1566 = vrot.slane %v1558, %v1565
        %v1568 = vunpack.c.l.s4 1983009808
        %v1569 = vunpack.c.0.s8 %v1568
        %v1570 = vlaneseq
        %v1571 = vshrl.u32 %v1570, 7
        %v1572 = vsub.s32 %v1569, %v1571
        %v1573 = vrot.slane %v1559, %v1572
        %v1574 = vcombine.low %v1550, %v1566
        %v1575 = vcombine.high %v1550, %v1566
        %v1577 = vunpack.c.l.s4 1934713408
        %v1578 = vunpack.c.0.s8 %v1577
        %v1579 = vlaneseq
        %v1580 = vshrl.u32 %v1579, 7
        %v1581 = vsub.s32 %v1578, %v1580
        %v1582 = vrot.slane %v1574, %v1581
        %v1584 = vunpack.c.l.s4 1934713408
        %v1585 = vunpack.c.0.s8 %v1584
        %v1586 = vlaneseq
        %v1587 = vshrl.u32 %v1586, 7
        %v1588 = vsub.s32 %v1585, %v1587
        %v1589 = vrot.slane %v1575, %v1588
        %v1590 = vcombine.low %v1557, %v1573
        %v1591 = vcombine.high %v1557, %v1573
        %v1593 = vunpack.c.l.s4 1934713408
        %v1594 = vunpack.c.0.s8 %v1593
        %v1595 = vlaneseq
        %v1596 = vshrl.u32 %v1595, 7
        %v1597 = vsub.s32 %v1594, %v1596
        %v1598 = vrot.slane %v1590, %v1597
        %v1600 = vunpack.c.l.s4 1934713408
        %v1601 = vunpack.c.0.s8 %v1600
        %v1602 = vlaneseq
        %v1603 = vshrl.u32 %v1602, 7
        %v1604 = vsub.s32 %v1601, %v1603
        %v1605 = vrot.slane %v1591, %v1604
        %v1606 = vcombine.high %v1582, 0.0
        %v1607 = vcombine.high %v1589, 0.0
        %v1608 = vcombine.high %v1598, 0.0
        %v1609 = vcombine.high %v1605, 0.0
        %v1610 = vcombine.low %v1582, %v1589
        %v1612 = vunpack.c.l.s4 1983009808
        %v1613 = vunpack.c.0.s8 %v1612
        %v1614 = vlaneseq
        %v1615 = vshrl.u32 %v1614, 7
        %v1616 = vsub.s32 %v1613, %v1615
        %v1617 = vrot.slane %v1610, %v1616
        %v1618 = vcombine.low %v1606, %v1607
        %v1620 = vunpack.c.l.s4 1983009808
        %v1621 = vunpack.c.0.s8 %v1620
        %v1622 = vlaneseq
        %v1623 = vshrl.u32 %v1622, 7
        %v1624 = vsub.s32 %v1621, %v1623
        %v1625 = vrot.slane %v1618, %v1624
        %v1626 = vcombine.low %v1598, %v1605
        %v1628 = vunpack.c.l.s4 1983009808
        %v1629 = vunpack.c.0.s8 %v1628
        %v1630 = vlaneseq
        %v1631 = vshrl.u32 %v1630, 7
        %v1632 = vsub.s32 %v1629, %v1631
        %v1633 = vrot.slane %v1626, %v1632
        %v1634 = vcombine.low %v1608, %v1609
        %v1636 = vunpack.c.l.s4 1983009808
        %v1637 = vunpack.c.0.s8 %v1636
        %v1638 = vlaneseq
        %v1639 = vshrl.u32 %v1638, 7
        %v1640 = vsub.s32 %v1637, %v1639
        %v1641 = vrot.slane %v1634, %v1640
        %v1642 = vcombine.low %v1617, %v1625
        %v1643 = vcombine.high %v1617, %v1625
        %v1645 = vunpack.c.l.s4 1934713408
        %v1646 = vunpack.c.0.s8 %v1645
        %v1647 = vlaneseq
        %v1648 = vshrl.u32 %v1647, 7
        %v1649 = vsub.s32 %v1646, %v1648
        %v1650 = vrot.slane %v1642, %v1649
        %v1652 = vunpack.c.l.s4 1934713408
        %v1653 = vunpack.c.0.s8 %v1652
        %v1654 = vlaneseq
        %v1655 = vshrl.u32 %v1654, 7
        %v1656 = vsub.s32 %v1653, %v1655
        %v1657 = vrot.slane %v1643, %v1656
        %v1658 = vcombine.low %v1633, %v1641
        %v1659 = vcombine.high %v1633, %v1641
        %v1661 = vunpack.c.l.s4 1934713408
        %v1662 = vunpack.c.0.s8 %v1661
        %v1663 = vlaneseq
        %v1664 = vshrl.u32 %v1663, 7
        %v1665 = vsub.s32 %v1662, %v1664
        %v1666 = vrot.slane %v1658, %v1665
        %v1668 = vunpack.c.l.s4 1934713408
        %v1669 = vunpack.c.0.s8 %v1668
        %v1670 = vlaneseq
        %v1671 = vshrl.u32 %v1670, 7
        %v1672 = vsub.s32 %v1669, %v1671
        %v1673 = vrot.slane %v1659, %v1672
        %v1674 = vcombine.low %v1650, %v1666
        %v1675 = vcombine.high %v1650, %v1666
        %v1676 = vcombine.low %v1657, %v1673
        %v1677 = vcombine.high %v1657, %v1673
        %vm1678 = vcmask 64512
        %v1680 = vsel %vm1678, %v1378, 0
        %v1683 = vsel %vm1678, %v1526, 0
        %1685 = vmatprep.subr.mxu0 0.0
        %1686 = vmatpush1.xpose.msra.mxu0 0.0
        %1687 = vmatprep.subr.mxu0 0.0
        %1688 = vmatpush1.xpose.msra.mxu0 0.0
        %1689 = vmatprep.subr.mxu0 0.0
        %1690 = vmatpush1.xpose.msra.mxu0 0.0
        %1691 = vmatprep.subr.mxu0 0.0
        %1692 = vmatpush1.xpose.msra.mxu0 0.0
        %1693 = vmatprep.subr.mxu0 0.0
        %1694 = vmatpush1.xpose.msra.mxu0 0.0
        %1695 = vmatprep.subr.mxu0 0.0
        %1696 = vmatpush1.xpose.msra.mxu0 0.0
        %1697 = vmatprep.subr.mxu0 0.0
        %1698 = vmatpush1.xpose.msra.mxu0 0.0
        %1699 = vmatprep.subr.mxu0 0.0
        %1700 = vmatpush1.xpose.msra.mxu0 0.0
        %1701 = vmatprep.subr.mxu0 0.0
        %1702 = vmatpush1.xpose.msra.mxu0 0.0
        %1703 = vmatprep.subr.mxu0 0.0
        %1704 = vmatpush1.xpose.msra.mxu0 0.0
        %1705 = vmatprep.subr.mxu0 0.0
        %1706 = vmatpush1.xpose.msra.mxu0 0.0
        %1707 = vmatprep.subr.mxu0 0.0
        %1708 = vmatpush1.xpose.msra.mxu0 0.0
        %1709 = vmatprep.subr.mxu0 0.0
        %1710 = vmatpush1.xpose.msra.mxu0 0.0
        %1711 = vmatprep.subr.mxu0 0.0
        %1712 = vmatpush1.xpose.msra.mxu0 0.0
        %1713 = vmatprep.subr.mxu0 0.0
        %1714 = vmatpush1.xpose.msra.mxu0 0.0
        %1715 = vmatprep.subr.mxu0 0.0
        %1716 = vmatpush1.xpose.msra.mxu0 %v1683
        %1717 = vmatprep.subr.mxu0 0.0
        %1718 = vmatpush2.xpose.msra.mxu0 0.0
        %1719 = vmatprep.subr.mxu0 0.0
        %1720 = vmatpush2.xpose.msra.mxu0 0.0
        %1721 = vmatprep.subr.mxu0 0.0
        %1722 = vmatpush2.xpose.msra.mxu0 0.0
        %1723 = vmatprep.subr.mxu0 0.0
        %1724 = vmatpush2.xpose.msra.mxu0 0.0
        %1725 = vmatprep.subr.mxu0 0.0
        %1726 = vmatpush2.xpose.msra.mxu0 0.0
        %1727 = vmatprep.subr.mxu0 0.0
        %1728 = vmatpush2.xpose.msra.mxu0 0.0
        %1729 = vmatprep.subr.mxu0 0.0
        %1730 = vmatpush2.xpose.msra.mxu0 0.0
        %1731 = vmatprep.subr.mxu0 0.0
        %1732 = vmatpush2.xpose.msra.mxu0 0.0
        %1733 = vmatprep.subr.mxu0 0.0
        %1734 = vmatpush2.xpose.msra.mxu0 0.0
        %1735 = vmatprep.subr.mxu0 0.0
        %1736 = vmatpush2.xpose.msra.mxu0 0.0
        %1737 = vmatprep.subr.mxu0 0.0
        %1738 = vmatpush2.xpose.msra.mxu0 0.0
        %1739 = vmatprep.subr.mxu0 0.0
        %1740 = vmatpush2.xpose.msra.mxu0 0.0
        %1741 = vmatprep.subr.mxu0 0.0
        %1742 = vmatpush2.xpose.msra.mxu0 0.0
        %1743 = vmatprep.subr.mxu0 0.0
        %1744 = vmatpush2.xpose.msra.mxu0 0.0
        %1745 = vmatprep.subr.mxu0 0.0
        %1746 = vmatpush2.xpose.msra.mxu0 0.0
        %1747 = vmatprep.subr.mxu0 0.0
        %1748 = vmatpush2.xpose.msra.mxu0 0.0
        %1749 = vmatprep.mubr.f32.mxu0 0.0
        %1750 = vmatmul.mubr.f32.gmra.mxu0 %v1680
        %v1751 = vpop.f32.mrf.mxu0
        %v1752 = vadd.f32 0.0, %v1751
        %v1753 = vpop.f32.mrf.mxu0
        %1754 = vdwg.mxu0
        %v1756 = vsel %vm1678, %v1379, 0
        %v1759 = vsel %vm1678, %v1527, 0
        %1761 = vmatprep.subr.mxu0 0.0
        %1762 = vmatpush1.xpose.msra.mxu0 0.0
        %1763 = vmatprep.subr.mxu0 0.0
        %1764 = vmatpush1.xpose.msra.mxu0 0.0
        %1765 = vmatprep.subr.mxu0 0.0
        %1766 = vmatpush1.xpose.msra.mxu0 0.0
        %1767 = vmatprep.subr.mxu0 0.0
        %1768 = vmatpush1.xpose.msra.mxu0 0.0
        %1769 = vmatprep.subr.mxu0 0.0
        %1770 = vmatpush1.xpose.msra.mxu0 0.0
        %1771 = vmatprep.subr.mxu0 0.0
        %1772 = vmatpush1.xpose.msra.mxu0 0.0
        %1773 = vmatprep.subr.mxu0 0.0
        %1774 = vmatpush1.xpose.msra.mxu0 0.0
        %1775 = vmatprep.subr.mxu0 0.0
        %1776 = vmatpush1.xpose.msra.mxu0 0.0
        %1777 = vmatprep.subr.mxu0 0.0
        %1778 = vmatpush1.xpose.msra.mxu0 0.0
        %1779 = vmatprep.subr.mxu0 0.0
        %1780 = vmatpush1.xpose.msra.mxu0 0.0
        %1781 = vmatprep.subr.mxu0 0.0
        %1782 = vmatpush1.xpose.msra.mxu0 0.0
        %1783 = vmatprep.subr.mxu0 0.0
        %1784 = vmatpush1.xpose.msra.mxu0 0.0
        %1785 = vmatprep.subr.mxu0 0.0
        %1786 = vmatpush1.xpose.msra.mxu0 0.0
        %1787 = vmatprep.subr.mxu0 0.0
        %1788 = vmatpush1.xpose.msra.mxu0 0.0
        %1789 = vmatprep.subr.mxu0 0.0
        %1790 = vmatpush1.xpose.msra.mxu0 0.0
        %1791 = vmatprep.subr.mxu0 0.0
        %1792 = vmatpush1.xpose.msra.mxu0 %v1759
        %1793 = vmatprep.subr.mxu0 0.0
        %1794 = vmatpush2.xpose.msra.mxu0 0.0
        %1795 = vmatprep.subr.mxu0 0.0
        %1796 = vmatpush2.xpose.msra.mxu0 0.0
        %1797 = vmatprep.subr.mxu0 0.0
        %1798 = vmatpush2.xpose.msra.mxu0 0.0
        %1799 = vmatprep.subr.mxu0 0.0
        %1800 = vmatpush2.xpose.msra.mxu0 0.0
        %1801 = vmatprep.subr.mxu0 0.0
        %1802 = vmatpush2.xpose.msra.mxu0 0.0
        %1803 = vmatprep.subr.mxu0 0.0
        %1804 = vmatpush2.xpose.msra.mxu0 0.0
        %1805 = vmatprep.subr.mxu0 0.0
        %1806 = vmatpush2.xpose.msra.mxu0 0.0
        %1807 = vmatprep.subr.mxu0 0.0
        %1808 = vmatpush2.xpose.msra.mxu0 0.0
        %1809 = vmatprep.subr.mxu0 0.0
        %1810 = vmatpush2.xpose.msra.mxu0 0.0
        %1811 = vmatprep.subr.mxu0 0.0
        %1812 = vmatpush2.xpose.msra.mxu0 0.0
        %1813 = vmatprep.subr.mxu0 0.0
        %1814 = vmatpush2.xpose.msra.mxu0 0.0
        %1815 = vmatprep.subr.mxu0 0.0
        %1816 = vmatpush2.xpose.msra.mxu0 0.0
        %1817 = vmatprep.subr.mxu0 0.0
        %1818 = vmatpush2.xpose.msra.mxu0 0.0
        %1819 = vmatprep.subr.mxu0 0.0
        %1820 = vmatpush2.xpose.msra.mxu0 0.0
        %1821 = vmatprep.subr.mxu0 0.0
        %1822 = vmatpush2.xpose.msra.mxu0 0.0
        %1823 = vmatprep.subr.mxu0 0.0
        %1824 = vmatpush2.xpose.msra.mxu0 0.0
        %1825 = vmatprep.mubr.f32.mxu0 0.0
        %1826 = vmatmul.mubr.f32.gmra.mxu0 %v1756
        %v1827 = vpop.f32.mrf.mxu0
        %v1828 = vadd.f32 0.0, %v1827
        %v1829 = vpop.f32.mrf.mxu0
        %1830 = vdwg.mxu0
        %v1832 = vsel %vm1678, %v1380, 0
        %v1835 = vsel %vm1678, %v1528, 0
        %1837 = vmatprep.subr.mxu0 0.0
        %1838 = vmatpush1.xpose.msra.mxu0 0.0
        %1839 = vmatprep.subr.mxu0 0.0
        %1840 = vmatpush1.xpose.msra.mxu0 0.0
        %1841 = vmatprep.subr.mxu0 0.0
        %1842 = vmatpush1.xpose.msra.mxu0 0.0
        %1843 = vmatprep.subr.mxu0 0.0
        %1844 = vmatpush1.xpose.msra.mxu0 0.0
        %1845 = vmatprep.subr.mxu0 0.0
        %1846 = vmatpush1.xpose.msra.mxu0 0.0
        %1847 = vmatprep.subr.mxu0 0.0
        %1848 = vmatpush1.xpose.msra.mxu0 0.0
        %1849 = vmatprep.subr.mxu0 0.0
        %1850 = vmatpush1.xpose.msra.mxu0 0.0
        %1851 = vmatprep.subr.mxu0 0.0
        %1852 = vmatpush1.xpose.msra.mxu0 0.0
        %1853 = vmatprep.subr.mxu0 0.0
        %1854 = vmatpush1.xpose.msra.mxu0 0.0
        %1855 = vmatprep.subr.mxu0 0.0
        %1856 = vmatpush1.xpose.msra.mxu0 0.0
        %1857 = vmatprep.subr.mxu0 0.0
        %1858 = vmatpush1.xpose.msra.mxu0 0.0
        %1859 = vmatprep.subr.mxu0 0.0
        %1860 = vmatpush1.xpose.msra.mxu0 0.0
        %1861 = vmatprep.subr.mxu0 0.0
        %1862 = vmatpush1.xpose.msra.mxu0 0.0
        %1863 = vmatprep.subr.mxu0 0.0
        %1864 = vmatpush1.xpose.msra.mxu0 0.0
        %1865 = vmatprep.subr.mxu0 0.0
        %1866 = vmatpush1.xpose.msra.mxu0 0.0
        %1867 = vmatprep.subr.mxu0 0.0
        %1868 = vmatpush1.xpose.msra.mxu0 %v1835
        %1869 = vmatprep.subr.mxu0 0.0
        %1870 = vmatpush2.xpose.msra.mxu0 0.0
        %1871 = vmatprep.subr.mxu0 0.0
        %1872 = vmatpush2.xpose.msra.mxu0 0.0
        %1873 = vmatprep.subr.mxu0 0.0
        %1874 = vmatpush2.xpose.msra.mxu0 0.0
        %1875 = vmatprep.subr.mxu0 0.0
        %1876 = vmatpush2.xpose.msra.mxu0 0.0
        %1877 = vmatprep.subr.mxu0 0.0
        %1878 = vmatpush2.xpose.msra.mxu0 0.0
        %1879 = vmatprep.subr.mxu0 0.0
        %1880 = vmatpush2.xpose.msra.mxu0 0.0
        %1881 = vmatprep.subr.mxu0 0.0
        %1882 = vmatpush2.xpose.msra.mxu0 0.0
        %1883 = vmatprep.subr.mxu0 0.0
        %1884 = vmatpush2.xpose.msra.mxu0 0.0
        %1885 = vmatprep.subr.mxu0 0.0
        %1886 = vmatpush2.xpose.msra.mxu0 0.0
        %1887 = vmatprep.subr.mxu0 0.0
        %1888 = vmatpush2.xpose.msra.mxu0 0.0
        %1889 = vmatprep.subr.mxu0 0.0
        %1890 = vmatpush2.xpose.msra.mxu0 0.0
        %1891 = vmatprep.subr.mxu0 0.0
        %1892 = vmatpush2.xpose.msra.mxu0 0.0
        %1893 = vmatprep.subr.mxu0 0.0
        %1894 = vmatpush2.xpose.msra.mxu0 0.0
        %1895 = vmatprep.subr.mxu0 0.0
        %1896 = vmatpush2.xpose.msra.mxu0 0.0
        %1897 = vmatprep.subr.mxu0 0.0
        %1898 = vmatpush2.xpose.msra.mxu0 0.0
        %1899 = vmatprep.subr.mxu0 0.0
        %1900 = vmatpush2.xpose.msra.mxu0 0.0
        %1901 = vmatprep.mubr.f32.mxu0 0.0
        %1902 = vmatmul.mubr.f32.gmra.mxu0 %v1832
        %v1903 = vpop.f32.mrf.mxu0
        %v1904 = vadd.f32 0.0, %v1903
        %v1905 = vpop.f32.mrf.mxu0
        %1906 = vdwg.mxu0
        %v1908 = vsel %vm1678, %v1381, 0
        %v1911 = vsel %vm1678, %v1529, 0
        %1913 = vmatprep.subr.mxu0 0.0
        %1914 = vmatpush1.xpose.msra.mxu0 0.0
        %1915 = vmatprep.subr.mxu0 0.0
        %1916 = vmatpush1.xpose.msra.mxu0 0.0
        %1917 = vmatprep.subr.mxu0 0.0
        %1918 = vmatpush1.xpose.msra.mxu0 0.0
        %1919 = vmatprep.subr.mxu0 0.0
        %1920 = vmatpush1.xpose.msra.mxu0 0.0
        %1921 = vmatprep.subr.mxu0 0.0
        %1922 = vmatpush1.xpose.msra.mxu0 0.0
        %1923 = vmatprep.subr.mxu0 0.0
        %1924 = vmatpush1.xpose.msra.mxu0 0.0
        %1925 = vmatprep.subr.mxu0 0.0
        %1926 = vmatpush1.xpose.msra.mxu0 0.0
        %1927 = vmatprep.subr.mxu0 0.0
        %1928 = vmatpush1.xpose.msra.mxu0 0.0
        %1929 = vmatprep.subr.mxu0 0.0
        %1930 = vmatpush1.xpose.msra.mxu0 0.0
        %1931 = vmatprep.subr.mxu0 0.0
        %1932 = vmatpush1.xpose.msra.mxu0 0.0
        %1933 = vmatprep.subr.mxu0 0.0
        %1934 = vmatpush1.xpose.msra.mxu0 0.0
        %1935 = vmatprep.subr.mxu0 0.0
        %1936 = vmatpush1.xpose.msra.mxu0 0.0
        %1937 = vmatprep.subr.mxu0 0.0
        %1938 = vmatpush1.xpose.msra.mxu0 0.0
        %1939 = vmatprep.subr.mxu0 0.0
        %1940 = vmatpush1.xpose.msra.mxu0 0.0
        %1941 = vmatprep.subr.mxu0 0.0
        %1942 = vmatpush1.xpose.msra.mxu0 0.0
        %1943 = vmatprep.subr.mxu0 0.0
        %1944 = vmatpush1.xpose.msra.mxu0 %v1911
        %1945 = vmatprep.subr.mxu0 0.0
        %1946 = vmatpush2.xpose.msra.mxu0 0.0
        %1947 = vmatprep.subr.mxu0 0.0
        %1948 = vmatpush2.xpose.msra.mxu0 0.0
        %1949 = vmatprep.subr.mxu0 0.0
        %1950 = vmatpush2.xpose.msra.mxu0 0.0
        %1951 = vmatprep.subr.mxu0 0.0
        %1952 = vmatpush2.xpose.msra.mxu0 0.0
        %1953 = vmatprep.subr.mxu0 0.0
        %1954 = vmatpush2.xpose.msra.mxu0 0.0
        %1955 = vmatprep.subr.mxu0 0.0
        %1956 = vmatpush2.xpose.msra.mxu0 0.0
        %1957 = vmatprep.subr.mxu0 0.0
        %1958 = vmatpush2.xpose.msra.mxu0 0.0
        %1959 = vmatprep.subr.mxu0 0.0
        %1960 = vmatpush2.xpose.msra.mxu0 0.0
        %1961 = vmatprep.subr.mxu0 0.0
        %1962 = vmatpush2.xpose.msra.mxu0 0.0
        %1963 = vmatprep.subr.mxu0 0.0
        %1964 = vmatpush2.xpose.msra.mxu0 0.0
        %1965 = vmatprep.subr.mxu0 0.0
        %1966 = vmatpush2.xpose.msra.mxu0 0.0
        %1967 = vmatprep.subr.mxu0 0.0
        %1968 = vmatpush2.xpose.msra.mxu0 0.0
        %1969 = vmatprep.subr.mxu0 0.0
        %1970 = vmatpush2.xpose.msra.mxu0 0.0
        %1971 = vmatprep.subr.mxu0 0.0
        %1972 = vmatpush2.xpose.msra.mxu0 0.0
        %1973 = vmatprep.subr.mxu0 0.0
        %1974 = vmatpush2.xpose.msra.mxu0 0.0
        %1975 = vmatprep.subr.mxu0 0.0
        %1976 = vmatpush2.xpose.msra.mxu0 0.0
        %1977 = vmatprep.mubr.f32.mxu0 0.0
        %1978 = vmatmul.mubr.f32.gmra.mxu0 %v1908
        %v1979 = vpop.f32.mrf.mxu0
        %v1980 = vadd.f32 0.0, %v1979
        %v1981 = vpop.f32.mrf.mxu0
        %1982 = vdwg.mxu0
        %v1983 = vmul.f32 %v1752, 0.35355338
        %v1984 = vmul.f32 %v1828, 0.35355338
        %v1985 = vmul.f32 %v1904, 0.35355338
        %v1986 = vmul.f32 %v1980, 0.35355338
        %v1987 = vadd.f32 %v1983, %v1167
        %v1988 = vadd.f32 %v1984, %v1167
        %v1989 = vadd.f32 %v1985, %v1167
        %v1990 = vadd.f32 %v1986, %v1167
        %v1991 = vsel %vm1678, %v1987, -inf
        %1992 = vmax.xlane.f32.xlu0 %v1991
        %v1993 = vpop.xlane.xlu0 %1992
        %v1994 = vsel %vm1678, %v1988, -inf
        %1995 = vmax.xlane.f32.xlu0 %v1994
        %v1996 = vpop.xlane.xlu0 %1995
        %v1997 = vsel %vm1678, %v1989, -inf
        %1998 = vmax.xlane.f32.xlu0 %v1997
        %v1999 = vpop.xlane.xlu0 %1998
        %v2000 = vsel %vm1678, %v1990, -inf
        %2001 = vmax.xlane.f32.xlu0 %v2000
        %v2002 = vpop.xlane.xlu0 %2001
        %v2003 = vsub.f32 %v1987, %v1993
        %v2004 = vsub.f32 %v1988, %v1996
        %v2005 = vsub.f32 %v1989, %v1999
        %v2006 = vsub.f32 %v1990, %v2002
        %v2007 = vmul.f32 %v2003, 1.442695
        %v2008 = vpow.pop %v2007
        %v2009 = vmul.f32 %v2004, 1.442695
        %v2010 = vpow.pop %v2009
        %v2011 = vmul.f32 %v2005, 1.442695
        %v2012 = vpow.pop %v2011
        %v2013 = vmul.f32 %v2006, 1.442695
        %v2014 = vpow.pop %v2013
        %v2015 = vsel %vm1678, %v2008, 0.0
        %2016 = vadd.xlane.f32.xlu0 %v2015
        %v2017 = vpop.xlane.xlu0 %2016
        %v2018 = vsel %vm1678, %v2010, 0.0
        %2019 = vadd.xlane.f32.xlu0 %v2018
        %v2020 = vpop.xlane.xlu0 %2019
        %v2021 = vsel %vm1678, %v2012, 0.0
        %2022 = vadd.xlane.f32.xlu0 %v2021
        %v2023 = vpop.xlane.xlu0 %2022
        %v2024 = vsel %vm1678, %v2014, 0.0
        %2025 = vadd.xlane.f32.xlu0 %v2024
        %v2026 = vpop.xlane.xlu0 %2025
        %v2027 = vrcp.pop %v2017
        %v2028 = vmul.f32 %v2008, %v2027
        %v2029 = vrcp.pop %v2020
        %v2030 = vmul.f32 %v2010, %v2029
        %v2031 = vrcp.pop %v2023
        %v2032 = vmul.f32 %v2012, %v2031
        %v2033 = vrcp.pop %v2026
        %v2034 = vmul.f32 %v2014, %v2033
        %v2036 = vsel %vm1678, %v2028, 0
        %2038 = vmatprep.subr.mxu0 0.0
        %2039 = vmatpush1.msra.mxu0 0.0
        %2040 = vmatprep.subr.mxu0 0.0
        %2041 = vmatpush1.msra.mxu0 0.0
        %2042 = vmatprep.subr.mxu0 0.0
        %2043 = vmatpush1.msra.mxu0 0.0
        %2044 = vmatprep.subr.mxu0 0.0
        %2045 = vmatpush1.msra.mxu0 0.0
        %2046 = vmatprep.subr.mxu0 0.0
        %2047 = vmatpush1.msra.mxu0 0.0
        %2048 = vmatprep.subr.mxu0 0.0
        %2049 = vmatpush1.msra.mxu0 0.0
        %2050 = vmatprep.subr.mxu0 0.0
        %2051 = vmatpush1.msra.mxu0 0.0
        %2052 = vmatprep.subr.mxu0 0.0
        %2053 = vmatpush1.msra.mxu0 0.0
        %2054 = vmatprep.subr.mxu0 0.0
        %2055 = vmatpush1.msra.mxu0 0.0
        %2056 = vmatprep.subr.mxu0 0.0
        %2057 = vmatpush1.msra.mxu0 0.0
        %2058 = vmatprep.subr.mxu0 0.0
        %2059 = vmatpush1.msra.mxu0 0.0
        %2060 = vmatprep.subr.mxu0 0.0
        %2061 = vmatpush1.msra.mxu0 0.0
        %2062 = vmatprep.subr.mxu0 0.0
        %2063 = vmatpush1.msra.mxu0 0.0
        %2064 = vmatprep.subr.mxu0 0.0
        %2065 = vmatpush1.msra.mxu0 0.0
        %2066 = vmatprep.subr.mxu0 0.0
        %2067 = vmatpush1.msra.mxu0 0.0
        %2068 = vmatprep.subr.mxu0 0.0
        %2069 = vmatpush1.msra.mxu0 %v1674
        %2070 = vmatprep.subr.mxu0 0.0
        %2071 = vmatpush2.msra.mxu0 0.0
        %2072 = vmatprep.subr.mxu0 0.0
        %2073 = vmatpush2.msra.mxu0 0.0
        %2074 = vmatprep.subr.mxu0 0.0
        %2075 = vmatpush2.msra.mxu0 0.0
        %2076 = vmatprep.subr.mxu0 0.0
        %2077 = vmatpush2.msra.mxu0 0.0
        %2078 = vmatprep.subr.mxu0 0.0
        %2079 = vmatpush2.msra.mxu0 0.0
        %2080 = vmatprep.subr.mxu0 0.0
        %2081 = vmatpush2.msra.mxu0 0.0
        %2082 = vmatprep.subr.mxu0 0.0
        %2083 = vmatpush2.msra.mxu0 0.0
        %2084 = vmatprep.subr.mxu0 0.0
        %2085 = vmatpush2.msra.mxu0 0.0
        %2086 = vmatprep.subr.mxu0 0.0
        %2087 = vmatpush2.msra.mxu0 0.0
        %2088 = vmatprep.subr.mxu0 0.0
        %2089 = vmatpush2.msra.mxu0 0.0
        %2090 = vmatprep.subr.mxu0 0.0
        %2091 = vmatpush2.msra.mxu0 0.0
        %2092 = vmatprep.subr.mxu0 0.0
        %2093 = vmatpush2.msra.mxu0 0.0
        %2094 = vmatprep.subr.mxu0 0.0
        %2095 = vmatpush2.msra.mxu0 0.0
        %2096 = vmatprep.subr.mxu0 0.0
        %2097 = vmatpush2.msra.mxu0 0.0
        %2098 = vmatprep.subr.mxu0 0.0
        %2099 = vmatpush2.msra.mxu0 0.0
        %2100 = vmatprep.subr.mxu0 0.0
        %2101 = vmatpush2.msra.mxu0 0.0
        %2102 = vmatprep.mubr.f32.mxu0 0.0
        %2103 = vmatmul.mubr.f32.gmra.mxu0 %v2036
        %v2104 = vpop.f32.mrf.mxu0
        %v2105 = vadd.f32 0.0, %v2104
        %v2106 = vpop.f32.mrf.mxu0
        %2107 = vdwg.mxu0
        %v2109 = vsel %vm1678, %v2030, 0
        %2111 = vmatprep.subr.mxu0 0.0
        %2112 = vmatpush1.msra.mxu0 0.0
        %2113 = vmatprep.subr.mxu0 0.0
        %2114 = vmatpush1.msra.mxu0 0.0
        %2115 = vmatprep.subr.mxu0 0.0
        %2116 = vmatpush1.msra.mxu0 0.0
        %2117 = vmatprep.subr.mxu0 0.0
        %2118 = vmatpush1.msra.mxu0 0.0
        %2119 = vmatprep.subr.mxu0 0.0
        %2120 = vmatpush1.msra.mxu0 0.0
        %2121 = vmatprep.subr.mxu0 0.0
        %2122 = vmatpush1.msra.mxu0 0.0
        %2123 = vmatprep.subr.mxu0 0.0
        %2124 = vmatpush1.msra.mxu0 0.0
        %2125 = vmatprep.subr.mxu0 0.0
        %2126 = vmatpush1.msra.mxu0 0.0
        %2127 = vmatprep.subr.mxu0 0.0
        %2128 = vmatpush1.msra.mxu0 0.0
        %2129 = vmatprep.subr.mxu0 0.0
        %2130 = vmatpush1.msra.mxu0 0.0
        %2131 = vmatprep.subr.mxu0 0.0
        %2132 = vmatpush1.msra.mxu0 0.0
        %2133 = vmatprep.subr.mxu0 0.0
        %2134 = vmatpush1.msra.mxu0 0.0
        %2135 = vmatprep.subr.mxu0 0.0
        %2136 = vmatpush1.msra.mxu0 0.0
        %2137 = vmatprep.subr.mxu0 0.0
        %2138 = vmatpush1.msra.mxu0 0.0
        %2139 = vmatprep.subr.mxu0 0.0
        %2140 = vmatpush1.msra.mxu0 0.0
        %2141 = vmatprep.subr.mxu0 0.0
        %2142 = vmatpush1.msra.mxu0 %v1675
        %2143 = vmatprep.subr.mxu0 0.0
        %2144 = vmatpush2.msra.mxu0 0.0
        %2145 = vmatprep.subr.mxu0 0.0
        %2146 = vmatpush2.msra.mxu0 0.0
        %2147 = vmatprep.subr.mxu0 0.0
        %2148 = vmatpush2.msra.mxu0 0.0
        %2149 = vmatprep.subr.mxu0 0.0
        %2150 = vmatpush2.msra.mxu0 0.0
        %2151 = vmatprep.subr.mxu0 0.0
        %2152 = vmatpush2.msra.mxu0 0.0
        %2153 = vmatprep.subr.mxu0 0.0
        %2154 = vmatpush2.msra.mxu0 0.0
        %2155 = vmatprep.subr.mxu0 0.0
        %2156 = vmatpush2.msra.mxu0 0.0
        %2157 = vmatprep.subr.mxu0 0.0
        %2158 = vmatpush2.msra.mxu0 0.0
        %2159 = vmatprep.subr.mxu0 0.0
        %2160 = vmatpush2.msra.mxu0 0.0
        %2161 = vmatprep.subr.mxu0 0.0
        %2162 = vmatpush2.msra.mxu0 0.0
        %2163 = vmatprep.subr.mxu0 0.0
        %2164 = vmatpush2.msra.mxu0 0.0
        %2165 = vmatprep.subr.mxu0 0.0
        %2166 = vmatpush2.msra.mxu0 0.0
        %2167 = vmatprep.subr.mxu0 0.0
        %2168 = vmatpush2.msra.mxu0 0.0
        %2169 = vmatprep.subr.mxu0 0.0
        %2170 = vmatpush2.msra.mxu0 0.0
        %2171 = vmatprep.subr.mxu0 0.0
        %2172 = vmatpush2.msra.mxu0 0.0
        %2173 = vmatprep.subr.mxu0 0.0
        %2174 = vmatpush2.msra.mxu0 0.0
        %2175 = vmatprep.mubr.f32.mxu0 0.0
        %2176 = vmatmul.mubr.f32.gmra.mxu0 %v2109
        %v2177 = vpop.f32.mrf.mxu0
        %v2178 = vadd.f32 0.0, %v2177
        %v2179 = vpop.f32.mrf.mxu0
        %2180 = vdwg.mxu0
        %v2182 = vsel %vm1678, %v2032, 0
        %2184 = vmatprep.subr.mxu0 0.0
        %2185 = vmatpush1.msra.mxu0 0.0
        %2186 = vmatprep.subr.mxu0 0.0
        %2187 = vmatpush1.msra.mxu0 0.0
        %2188 = vmatprep.subr.mxu0 0.0
        %2189 = vmatpush1.msra.mxu0 0.0
        %2190 = vmatprep.subr.mxu0 0.0
        %2191 = vmatpush1.msra.mxu0 0.0
        %2192 = vmatprep.subr.mxu0 0.0
        %2193 = vmatpush1.msra.mxu0 0.0
        %2194 = vmatprep.subr.mxu0 0.0
        %2195 = vmatpush1.msra.mxu0 0.0
        %2196 = vmatprep.subr.mxu0 0.0
        %2197 = vmatpush1.msra.mxu0 0.0
        %2198 = vmatprep.subr.mxu0 0.0
        %2199 = vmatpush1.msra.mxu0 0.0
        %2200 = vmatprep.subr.mxu0 0.0
        %2201 = vmatpush1.msra.mxu0 0.0
        %2202 = vmatprep.subr.mxu0 0.0
        %2203 = vmatpush1.msra.mxu0 0.0
        %2204 = vmatprep.subr.mxu0 0.0
        %2205 = vmatpush1.msra.mxu0 0.0
        %2206 = vmatprep.subr.mxu0 0.0
        %2207 = vmatpush1.msra.mxu0 0.0
        %2208 = vmatprep.subr.mxu0 0.0
        %2209 = vmatpush1.msra.mxu0 0.0
        %2210 = vmatprep.subr.mxu0 0.0
        %2211 = vmatpush1.msra.mxu0 0.0
        %2212 = vmatprep.subr.mxu0 0.0
        %2213 = vmatpush1.msra.mxu0 0.0
        %2214 = vmatprep.subr.mxu0 0.0
        %2215 = vmatpush1.msra.mxu0 %v1676
        %2216 = vmatprep.subr.mxu0 0.0
        %2217 = vmatpush2.msra.mxu0 0.0
        %2218 = vmatprep.subr.mxu0 0.0
        %2219 = vmatpush2.msra.mxu0 0.0
        %2220 = vmatprep.subr.mxu0 0.0
        %2221 = vmatpush2.msra.mxu0 0.0
        %2222 = vmatprep.subr.mxu0 0.0
        %2223 = vmatpush2.msra.mxu0 0.0
        %2224 = vmatprep.subr.mxu0 0.0
        %2225 = vmatpush2.msra.mxu0 0.0
        %2226 = vmatprep.subr.mxu0 0.0
        %2227 = vmatpush2.msra.mxu0 0.0
        %2228 = vmatprep.subr.mxu0 0.0
        %2229 = vmatpush2.msra.mxu0 0.0
        %2230 = vmatprep.subr.mxu0 0.0
        %2231 = vmatpush2.msra.mxu0 0.0
        %2232 = vmatprep.subr.mxu0 0.0
        %2233 = vmatpush2.msra.mxu0 0.0
        %2234 = vmatprep.subr.mxu0 0.0
        %2235 = vmatpush2.msra.mxu0 0.0
        %2236 = vmatprep.subr.mxu0 0.0
        %2237 = vmatpush2.msra.mxu0 0.0
        %2238 = vmatprep.subr.mxu0 0.0
        %2239 = vmatpush2.msra.mxu0 0.0
        %2240 = vmatprep.subr.mxu0 0.0
        %2241 = vmatpush2.msra.mxu0 0.0
        %2242 = vmatprep.subr.mxu0 0.0
        %2243 = vmatpush2.msra.mxu0 0.0
        %2244 = vmatprep.subr.mxu0 0.0
        %2245 = vmatpush2.msra.mxu0 0.0
        %2246 = vmatprep.subr.mxu0 0.0
        %2247 = vmatpush2.msra.mxu0 0.0
        %2248 = vmatprep.mubr.f32.mxu0 0.0
        %2249 = vmatmul.mubr.f32.gmra.mxu0 %v2182
        %v2250 = vpop.f32.mrf.mxu0
        %v2251 = vadd.f32 0.0, %v2250
        %v2252 = vpop.f32.mrf.mxu0
        %2253 = vdwg.mxu0
        %v2255 = vsel %vm1678, %v2034, 0
        %2257 = vmatprep.subr.mxu0 0.0
        %2258 = vmatpush1.msra.mxu0 0.0
        %2259 = vmatprep.subr.mxu0 0.0
        %2260 = vmatpush1.msra.mxu0 0.0
        %2261 = vmatprep.subr.mxu0 0.0
        %2262 = vmatpush1.msra.mxu0 0.0
        %2263 = vmatprep.subr.mxu0 0.0
        %2264 = vmatpush1.msra.mxu0 0.0
        %2265 = vmatprep.subr.mxu0 0.0
        %2266 = vmatpush1.msra.mxu0 0.0
        %2267 = vmatprep.subr.mxu0 0.0
        %2268 = vmatpush1.msra.mxu0 0.0
        %2269 = vmatprep.subr.mxu0 0.0
        %2270 = vmatpush1.msra.mxu0 0.0
        %2271 = vmatprep.subr.mxu0 0.0
        %2272 = vmatpush1.msra.mxu0 0.0
        %2273 = vmatprep.subr.mxu0 0.0
        %2274 = vmatpush1.msra.mxu0 0.0
        %2275 = vmatprep.subr.mxu0 0.0
        %2276 = vmatpush1.msra.mxu0 0.0
        %2277 = vmatprep.subr.mxu0 0.0
        %2278 = vmatpush1.msra.mxu0 0.0
        %2279 = vmatprep.subr.mxu0 0.0
        %2280 = vmatpush1.msra.mxu0 0.0
        %2281 = vmatprep.subr.mxu0 0.0
        %2282 = vmatpush1.msra.mxu0 0.0
        %2283 = vmatprep.subr.mxu0 0.0
        %2284 = vmatpush1.msra.mxu0 0.0
        %2285 = vmatprep.subr.mxu0 0.0
        %2286 = vmatpush1.msra.mxu0 0.0
        %2287 = vmatprep.subr.mxu0 0.0
        %2288 = vmatpush1.msra.mxu0 %v1677
        %2289 = vmatprep.subr.mxu0 0.0
        %2290 = vmatpush2.msra.mxu0 0.0
        %2291 = vmatprep.subr.mxu0 0.0
        %2292 = vmatpush2.msra.mxu0 0.0
        %2293 = vmatprep.subr.mxu0 0.0
        %2294 = vmatpush2.msra.mxu0 0.0
        %2295 = vmatprep.subr.mxu0 0.0
        %2296 = vmatpush2.msra.mxu0 0.0
        %2297 = vmatprep.subr.mxu0 0.0
        %2298 = vmatpush2.msra.mxu0 0.0
        %2299 = vmatprep.subr.mxu0 0.0
        %2300 = vmatpush2.msra.mxu0 0.0
        %2301 = vmatprep.subr.mxu0 0.0
        %2302 = vmatpush2.msra.mxu0 0.0
        %2303 = vmatprep.subr.mxu0 0.0
        %2304 = vmatpush2.msra.mxu0 0.0
        %2305 = vmatprep.subr.mxu0 0.0
        %2306 = vmatpush2.msra.mxu0 0.0
        %2307 = vmatprep.subr.mxu0 0.0
        %2308 = vmatpush2.msra.mxu0 0.0
        %2309 = vmatprep.subr.mxu0 0.0
        %2310 = vmatpush2.msra.mxu0 0.0
        %2311 = vmatprep.subr.mxu0 0.0
        %2312 = vmatpush2.msra.mxu0 0.0
        %2313 = vmatprep.subr.mxu0 0.0
        %2314 = vmatpush2.msra.mxu0 0.0
        %2315 = vmatprep.subr.mxu0 0.0
        %2316 = vmatpush2.msra.mxu0 0.0
        %2317 = vmatprep.subr.mxu0 0.0
        %2318 = vmatpush2.msra.mxu0 0.0
        %2319 = vmatprep.subr.mxu0 0.0
        %2320 = vmatpush2.msra.mxu0 0.0
        %2321 = vmatprep.mubr.f32.mxu0 0.0
        %2322 = vmatmul.mubr.f32.gmra.mxu0 %v2255
        %v2323 = vpop.f32.mrf.mxu0
        %v2324 = vadd.f32 0.0, %v2323
        %v2325 = vpop.f32.mrf.mxu0
        %2326 = vdwg.mxu0
        %v2327 = vcombine.low %v2105, %v2251
        %v2328 = vcombine.high %v2105, %v2251
        %v2330 = vunpack.c.l.s4 1983009808
        %v2331 = vunpack.c.0.s8 %v2330
        %v2332 = vlaneseq
        %v2333 = vshrl.u32 %v2332, 7
        %v2334 = vsub.s32 %v2331, %v2333
        %v2335 = vrot.slane %v2327, %v2334
        %v2337 = vunpack.c.l.s4 1983009808
        %v2338 = vunpack.c.0.s8 %v2337
        %v2339 = vlaneseq
        %v2340 = vshrl.u32 %v2339, 7
        %v2341 = vsub.s32 %v2338, %v2340
        %v2342 = vrot.slane %v2328, %v2341
        %v2343 = vcombine.low %v2178, %v2324
        %v2344 = vcombine.high %v2178, %v2324
        %v2346 = vunpack.c.l.s4 1983009808
        %v2347 = vunpack.c.0.s8 %v2346
        %v2348 = vlaneseq
        %v2349 = vshrl.u32 %v2348, 7
        %v2350 = vsub.s32 %v2347, %v2349
        %v2351 = vrot.slane %v2343, %v2350
        %v2353 = vunpack.c.l.s4 1983009808
        %v2354 = vunpack.c.0.s8 %v2353
        %v2355 = vlaneseq
        %v2356 = vshrl.u32 %v2355, 7
        %v2357 = vsub.s32 %v2354, %v2356
        %v2358 = vrot.slane %v2344, %v2357
        %v2359 = vcombine.low %v2335, %v2351
        %v2360 = vcombine.high %v2335, %v2351
        %v2362 = vunpack.c.l.s4 1934713408
        %v2363 = vunpack.c.0.s8 %v2362
        %v2364 = vlaneseq
        %v2365 = vshrl.u32 %v2364, 7
        %v2366 = vsub.s32 %v2363, %v2365
        %v2367 = vrot.slane %v2359, %v2366
        %v2369 = vunpack.c.l.s4 1934713408
        %v2370 = vunpack.c.0.s8 %v2369
        %v2371 = vlaneseq
        %v2372 = vshrl.u32 %v2371, 7
        %v2373 = vsub.s32 %v2370, %v2372
        %v2374 = vrot.slane %v2360, %v2373
        %v2375 = vcombine.low %v2342, %v2358
        %v2376 = vcombine.high %v2342, %v2358
        %v2378 = vunpack.c.l.s4 1934713408
        %v2379 = vunpack.c.0.s8 %v2378
        %v2380 = vlaneseq
        %v2381 = vshrl.u32 %v2380, 7
        %v2382 = vsub.s32 %v2379, %v2381
        %v2383 = vrot.slane %v2375, %v2382
        %v2385 = vunpack.c.l.s4 1934713408
        %v2386 = vunpack.c.0.s8 %v2385
        %v2387 = vlaneseq
        %v2388 = vshrl.u32 %v2387, 7
        %v2389 = vsub.s32 %v2386, %v2388
        %v2390 = vrot.slane %v2376, %v2389
        %v2391 = vcombine.high %v2367, 0.0
        %v2392 = vcombine.high %v2374, 0.0
        %v2393 = vcombine.high %v2383, 0.0
        %v2394 = vcombine.high %v2390, 0.0
        %v2395 = vcombine.low %v2367, %v2374
        %v2397 = vunpack.c.l.s4 1983009808
        %v2398 = vunpack.c.0.s8 %v2397
        %v2399 = vlaneseq
        %v2400 = vshrl.u32 %v2399, 7
        %v2401 = vsub.s32 %v2398, %v2400
        %v2402 = vrot.slane %v2395, %v2401
        %v2403 = vcombine.low %v2391, %v2392
        %v2405 = vunpack.c.l.s4 1983009808
        %v2406 = vunpack.c.0.s8 %v2405
        %v2407 = vlaneseq
        %v2408 = vshrl.u32 %v2407, 7
        %v2409 = vsub.s32 %v2406, %v2408
        %v2410 = vrot.slane %v2403, %v2409
        %v2411 = vcombine.low %v2383, %v2390
        %v2413 = vunpack.c.l.s4 1983009808
        %v2414 = vunpack.c.0.s8 %v2413
        %v2415 = vlaneseq
        %v2416 = vshrl.u32 %v2415, 7
        %v2417 = vsub.s32 %v2414, %v2416
        %v2418 = vrot.slane %v2411, %v2417
        %v2419 = vcombine.low %v2393, %v2394
        %v2421 = vunpack.c.l.s4 1983009808
        %v2422 = vunpack.c.0.s8 %v2421
        %v2423 = vlaneseq
        %v2424 = vshrl.u32 %v2423, 7
        %v2425 = vsub.s32 %v2422, %v2424
        %v2426 = vrot.slane %v2419, %v2425
        %v2427 = vcombine.low %v2402, %v2410
        %v2428 = vcombine.high %v2402, %v2410
        %v2430 = vunpack.c.l.s4 1934713408
        %v2431 = vunpack.c.0.s8 %v2430
        %v2432 = vlaneseq
        %v2433 = vshrl.u32 %v2432, 7
        %v2434 = vsub.s32 %v2431, %v2433
        %v2435 = vrot.slane %v2427, %v2434
        %v2437 = vunpack.c.l.s4 1934713408
        %v2438 = vunpack.c.0.s8 %v2437
        %v2439 = vlaneseq
        %v2440 = vshrl.u32 %v2439, 7
        %v2441 = vsub.s32 %v2438, %v2440
        %v2442 = vrot.slane %v2428, %v2441
        %v2443 = vcombine.low %v2418, %v2426
        %v2444 = vcombine.high %v2418, %v2426
        %v2446 = vunpack.c.l.s4 1934713408
        %v2447 = vunpack.c.0.s8 %v2446
        %v2448 = vlaneseq
        %v2449 = vshrl.u32 %v2448, 7
        %v2450 = vsub.s32 %v2447, %v2449
        %v2451 = vrot.slane %v2443, %v2450
        %v2453 = vunpack.c.l.s4 1934713408
        %v2454 = vunpack.c.0.s8 %v2453
        %v2455 = vlaneseq
        %v2456 = vshrl.u32 %v2455, 7
        %v2457 = vsub.s32 %v2454, %v2456
        %v2458 = vrot.slane %v2444, %v2457
        %v2459 = vcombine.low %v2435, %v2451
        %v2460 = vcombine.high %v2435, %v2451
        %v2461 = vcombine.low %v2442, %v2458
        %v2462 = vcombine.high %v2442, %v2458
        %2464 = vrot.lane.b32.xlu0 %v2460, 8
        %v2465 = vpop.permute.xlu0 %2464
        %2468 = vrot.lane.b32.xlu0 %v2461, 16
        %v2469 = vpop.permute.xlu0 %2468
        %2472 = vrot.lane.b32.xlu0 %v2462, 24
        %v2473 = vpop.permute.xlu0 %2472
        %v2475 = vsel %vm1678, %v2459, %v2465
        %vm2476 = vcmask 130048
        %v2477 = vsel %vm2476, %v2475, %v2469
        %vm2478 = vcmask 195584
        %v2479 = vsel %vm2478, %v2477, %v2473
        %v2480 = vpack.c.bf16 %v2479, %v2479
        %v2481 = vld [vmem:[%s1094] sm:$0xf]
        %v2482 = vld [vmem:[%s1094 + $0x4] sm:$0xf]
        %v2483 = vld [vmem:[%s1094 + $0x8] sm:$0xf]
        %v2484 = vld [vmem:[%s1094 + $0xc] sm:$0xf]
        %v2485 = vld [vmem:[%s1097] sm:$0x1]
        %v2487 = vlaneseq
        %v2488 = vshrl.u32 %v2487, 7
        %v2489 = vsub.s32 0, %v2488
        %v2490 = vrot.slane %v2485, %v2489
        %v2496 = vunpack.c.l.b16 %v2481
        %v2497 = vunpack.c.l.b16 %v2482
        %v2498 = vunpack.c.l.b16 %v2483
        %v2499 = vunpack.c.l.b16 %v2484
        %v2500 = vpack.c.b16 %v2497, %v2496
        %v2501 = vpack.c.b16 %v2499, %v2498
        %v2505 = vsel %vm1192, %v2480, 0
        %2507 = vmatprep.subr.bf16.mxu0 0
        %2508 = vmatpush1.bf16.msra.mxu0 0
        %2509 = vmatprep.subr.bf16.mxu0 0
        %2510 = vmatpush1.bf16.msra.mxu0 0
        %2511 = vmatprep.subr.bf16.mxu0 0
        %2512 = vmatpush1.bf16.msra.mxu0 0
        %2513 = vmatprep.subr.bf16.mxu0 0
        %2514 = vmatpush1.bf16.msra.mxu0 0
        %2515 = vmatprep.subr.bf16.mxu0 0
        %2516 = vmatpush1.bf16.msra.mxu0 0
        %2517 = vmatprep.subr.bf16.mxu0 0
        %2518 = vmatpush1.bf16.msra.mxu0 0
        %2519 = vmatprep.subr.bf16.mxu0 0
        %2520 = vmatpush1.bf16.msra.mxu0 %v2501
        %2521 = vmatprep.subr.bf16.mxu0 0
        %2522 = vmatpush1.bf16.msra.mxu0 %v2500
        %2523 = vmatprep.subr.bf16.mxu0 0
        %2524 = vmatpush2.bf16.msra.mxu0 0
        %2525 = vmatprep.subr.bf16.mxu0 0
        %2526 = vmatpush2.bf16.msra.mxu0 0
        %2527 = vmatprep.subr.bf16.mxu0 0
        %2528 = vmatpush2.bf16.msra.mxu0 0
        %2529 = vmatprep.subr.bf16.mxu0 0
        %2530 = vmatpush2.bf16.msra.mxu0 0
        %2531 = vmatprep.subr.bf16.mxu0 0
        %2532 = vmatpush2.bf16.msra.mxu0 0
        %2533 = vmatprep.subr.bf16.mxu0 0
        %2534 = vmatpush2.bf16.msra.mxu0 0
        %2535 = vmatprep.subr.bf16.mxu0 0
        %2536 = vmatpush2.bf16.msra.mxu0 0
        %2537 = vmatprep.subr.bf16.mxu0 0
        %2538 = vmatpush2.bf16.msra.mxu0 0
        %2539 = vmatprep.mubr.bf16.mxu0 0
        %2540 = vmatmul.mubr.bf16.gmra.mxu0 %v2505
        %v2541 = vpop.f32.mrf.mxu0
        %v2542 = vadd.f32 %v2490, %v2541
        %v2543 = vpop.f32.mrf.mxu0
        %v2544 = vpop.f32.mrf.mxu0
        %v2545 = vpop.f32.mrf.mxu0
        %2546 = vdwg.mxu0
        %v2547 = vadd.f32 %v1166, %v2542
        %v2548 = vld [vmem:[%s1100] sm:$0x1]
        %v2549 = vld [vmem:[%s1103] sm:$0x1]
        %v2550 = vsel %vm1192, %v2547, 0.0
        %2551 = vadd.xlane.f32.xlu0 %v2550
        %v2552 = vpop.xlane.xlu0 %2551
        %v2553 = vrcp.pop 32.0
        %v2554 = vmul.f32 %v2552, %v2553
        %v2555 = vsub.f32 %v2547, %v2554
        %v2556 = vmul.f32 %v2555, %v2555
        %v2557 = vsel %vm1192, %v2556, 0.0
        %2558 = vadd.xlane.f32.xlu0 %v2557
        %v2559 = vpop.xlane.xlu0 %2558
        %v2560 = vmul.f32 %v2559, %v2553
        %v2561 = vadd.f32 %v2560, 1e-05
        %v2562 = vrsqrt.pop %v2561
        %v2563 = vmul.f32 %v2555, %v2562
        %v2565 = vlaneseq
        %v2566 = vshrl.u32 %v2565, 7
        %v2567 = vsub.s32 0, %v2566
        %v2568 = vrot.slane %v2548, %v2567
        %v2570 = vmul.f32 %v2563, %v2568
        %v2572 = vlaneseq
        %v2573 = vshrl.u32 %v2572, 7
        %v2574 = vsub.s32 0, %v2573
        %v2575 = vrot.slane %v2549, %v2574
        %v2577 = vadd.f32 %v2570, %v2575
        %v2578 = vpack.c.bf16 %v2577, %v2577
        %v2579 = vld [vmem:[%s1108] sm:$0xf]
        %v2580 = vld [vmem:[%s1108 + $0x4] sm:$0xf]
        %v2581 = vld [vmem:[%s1108 + $0x8] sm:$0xf]
        %v2582 = vld [vmem:[%s1108 + $0xc] sm:$0xf]
        %v2583 = vld [vmem:[%s1111] sm:$0x1]
        %v2585 = vlaneseq
        %v2586 = vshrl.u32 %v2585, 7
        %v2587 = vsub.s32 0, %v2586
        %v2588 = vrot.slane %v2583, %v2587
        %v2594 = vunpack.c.l.b16 %v2579
        %v2595 = vunpack.c.l.b16 %v2580
        %v2596 = vunpack.c.l.b16 %v2581
        %v2597 = vunpack.c.l.b16 %v2582
        %v2598 = vpack.c.b16 %v2595, %v2594
        %v2599 = vpack.c.b16 %v2597, %v2596
        %v2603 = vsel %vm1192, %v2578, 0
        %2605 = vmatprep.subr.bf16.mxu0 0
        %2606 = vmatpush1.bf16.msra.mxu0 0
        %2607 = vmatprep.subr.bf16.mxu0 0
        %2608 = vmatpush1.bf16.msra.mxu0 0
        %2609 = vmatprep.subr.bf16.mxu0 0
        %2610 = vmatpush1.bf16.msra.mxu0 0
        %2611 = vmatprep.subr.bf16.mxu0 0
        %2612 = vmatpush1.bf16.msra.mxu0 0
        %2613 = vmatprep.subr.bf16.mxu0 0
        %2614 = vmatpush1.bf16.msra.mxu0 0
        %2615 = vmatprep.subr.bf16.mxu0 0
        %2616 = vmatpush1.bf16.msra.mxu0 0
        %2617 = vmatprep.subr.bf16.mxu0 0
        %2618 = vmatpush1.bf16.msra.mxu0 %v2599
        %2619 = vmatprep.subr.bf16.mxu0 0
        %2620 = vmatpush1.bf16.msra.mxu0 %v2598
        %2621 = vmatprep.subr.bf16.mxu0 0
        %2622 = vmatpush2.bf16.msra.mxu0 0
        %2623 = vmatprep.subr.bf16.mxu0 0
        %2624 = vmatpush2.bf16.msra.mxu0 0
        %2625 = vmatprep.subr.bf16.mxu0 0
        %2626 = vmatpush2.bf16.msra.mxu0 0
        %2627 = vmatprep.subr.bf16.mxu0 0
        %2628 = vmatpush2.bf16.msra.mxu0 0
        %2629 = vmatprep.subr.bf16.mxu0 0
        %2630 = vmatpush2.bf16.msra.mxu0 0
        %2631 = vmatprep.subr.bf16.mxu0 0
        %2632 = vmatpush2.bf16.msra.mxu0 0
        %2633 = vmatprep.subr.bf16.mxu0 0
        %2634 = vmatpush2.bf16.msra.mxu0 0
        %2635 = vmatprep.subr.bf16.mxu0 0
        %2636 = vmatpush2.bf16.msra.mxu0 0
        %2637 = vmatprep.mubr.bf16.mxu0 0
        %2638 = vmatmul.mubr.bf16.gmra.mxu0 %v2603
        %v2639 = vpop.f32.mrf.mxu0
        %v2640 = vadd.f32 %v2588, %v2639
        %v2641 = vpop.f32.mrf.mxu0
        %v2642 = vpop.f32.mrf.mxu0
        %v2643 = vpop.f32.mrf.mxu0
        %2644 = vdwg.mxu0
        %v2645 = vld [vmem:[%s1081] sm:$0xff]
        %v2646 = vpack.c.bf16 %v2645, %v2645
        %v2647 = vld [vmem:[%s1116] sm:$0xf]
        %v2648 = vld [vmem:[%s1116 + $0x4] sm:$0xf]
        %v2649 = vld [vmem:[%s1116 + $0x8] sm:$0xf]
        %v2650 = vld [vmem:[%s1116 + $0xc] sm:$0xf]
        %v2651 = vld [vmem:[%s1119] sm:$0x1]
        %v2653 = vlaneseq
        %v2654 = vshrl.u32 %v2653, 7
        %v2655 = vsub.s32 0, %v2654
        %v2656 = vrot.slane %v2651, %v2655
        %v2662 = vunpack.c.l.b16 %v2647
        %v2663 = vunpack.c.l.b16 %v2648
        %v2664 = vunpack.c.l.b16 %v2649
        %v2665 = vunpack.c.l.b16 %v2650
        %v2666 = vpack.c.b16 %v2663, %v2662
        %v2667 = vpack.c.b16 %v2665, %v2664
        %v2671 = vsel %vm1192, %v2646, 0
        %2673 = vmatprep.subr.bf16.mxu0 0
        %2674 = vmatpush1.bf16.msra.mxu0 0
        %2675 = vmatprep.subr.bf16.mxu0 0
        %2676 = vmatpush1.bf16.msra.mxu0 0
        %2677 = vmatprep.subr.bf16.mxu0 0
        %2678 = vmatpush1.bf16.msra.mxu0 0
        %2679 = vmatprep.subr.bf16.mxu0 0
        %2680 = vmatpush1.bf16.msra.mxu0 0
        %2681 = vmatprep.subr.bf16.mxu0 0
        %2682 = vmatpush1.bf16.msra.mxu0 0
        %2683 = vmatprep.subr.bf16.mxu0 0
        %2684 = vmatpush1.bf16.msra.mxu0 0
        %2685 = vmatprep.subr.bf16.mxu0 0
        %2686 = vmatpush1.bf16.msra.mxu0 %v2667
        %2687 = vmatprep.subr.bf16.mxu0 0
        %2688 = vmatpush1.bf16.msra.mxu0 %v2666
        %2689 = vmatprep.subr.bf16.mxu0 0
        %2690 = vmatpush2.bf16.msra.mxu0 0
        %2691 = vmatprep.subr.bf16.mxu0 0
        %2692 = vmatpush2.bf16.msra.mxu0 0
        %2693 = vmatprep.subr.bf16.mxu0 0
        %2694 = vmatpush2.bf16.msra.mxu0 0
        %2695 = vmatprep.subr.bf16.mxu0 0
        %2696 = vmatpush2.bf16.msra.mxu0 0
        %2697 = vmatprep.subr.bf16.mxu0 0
        %2698 = vmatpush2.bf16.msra.mxu0 0
        %2699 = vmatprep.subr.bf16.mxu0 0
        %2700 = vmatpush2.bf16.msra.mxu0 0
        %2701 = vmatprep.subr.bf16.mxu0 0
        %2702 = vmatpush2.bf16.msra.mxu0 0
        %2703 = vmatprep.subr.bf16.mxu0 0
        %2704 = vmatpush2.bf16.msra.mxu0 0
        %2705 = vmatprep.mubr.bf16.mxu0 0
        %2706 = vmatmul.mubr.bf16.gmra.mxu0 %v2671
        %v2707 = vpop.f32.mrf.mxu0
        %v2708 = vadd.f32 %v2656, %v2707
        %v2709 = vpop.f32.mrf.mxu0
        %v2710 = vpop.f32.mrf.mxu0
        %v2711 = vpop.f32.mrf.mxu0
        %2712 = vdwg.mxu0
        %2714 = vrot.lane.b32.xlu0 %v2640, 120
        %v2715 = vpop.permute.xlu0 %2714
        %2717 = vrot.lane.b32.xlu0 %v2640, 112
        %v2718 = vpop.permute.xlu0 %2717
        %2720 = vrot.lane.b32.xlu0 %v2640, 104
        %v2721 = vpop.permute.xlu0 %2720
        %v2723 = vcombine.low %v2640, %v2718
        %v2724 = vcombine.high %v2640, %v2718
        %v2726 = vunpack.c.l.s4 1983009808
        %v2727 = vunpack.c.0.s8 %v2726
        %v2728 = vlaneseq
        %v2729 = vshrl.u32 %v2728, 7
        %v2730 = vsub.s32 %v2727, %v2729
        %v2731 = vrot.slane %v2723, %v2730
        %v2733 = vunpack.c.l.s4 1983009808
        %v2734 = vunpack.c.0.s8 %v2733
        %v2735 = vlaneseq
        %v2736 = vshrl.u32 %v2735, 7
        %v2737 = vsub.s32 %v2734, %v2736
        %v2738 = vrot.slane %v2724, %v2737
        %v2739 = vcombine.low %v2715, %v2721
        %v2740 = vcombine.high %v2715, %v2721
        %v2742 = vunpack.c.l.s4 1983009808
        %v2743 = vunpack.c.0.s8 %v2742
        %v2744 = vlaneseq
        %v2745 = vshrl.u32 %v2744, 7
        %v2746 = vsub.s32 %v2743, %v2745
        %v2747 = vrot.slane %v2739, %v2746
        %v2749 = vunpack.c.l.s4 1983009808
        %v2750 = vunpack.c.0.s8 %v2749
        %v2751 = vlaneseq
        %v2752 = vshrl.u32 %v2751, 7
        %v2753 = vsub.s32 %v2750, %v2752
        %v2754 = vrot.slane %v2740, %v2753
        %v2755 = vcombine.low %v2731, %v2747
        %v2756 = vcombine.high %v2731, %v2747
        %v2758 = vunpack.c.l.s4 1934713408
        %v2759 = vunpack.c.0.s8 %v2758
        %v2760 = vlaneseq
        %v2761 = vshrl.u32 %v2760, 7
        %v2762 = vsub.s32 %v2759, %v2761
        %v2763 = vrot.slane %v2755, %v2762
        %v2765 = vunpack.c.l.s4 1934713408
        %v2766 = vunpack.c.0.s8 %v2765
        %v2767 = vlaneseq
        %v2768 = vshrl.u32 %v2767, 7
        %v2769 = vsub.s32 %v2766, %v2768
        %v2770 = vrot.slane %v2756, %v2769
        %v2771 = vcombine.low %v2738, %v2754
        %v2772 = vcombine.high %v2738, %v2754
        %v2774 = vunpack.c.l.s4 1934713408
        %v2775 = vunpack.c.0.s8 %v2774
        %v2776 = vlaneseq
        %v2777 = vshrl.u32 %v2776, 7
        %v2778 = vsub.s32 %v2775, %v2777
        %v2779 = vrot.slane %v2771, %v2778
        %v2781 = vunpack.c.l.s4 1934713408
        %v2782 = vunpack.c.0.s8 %v2781
        %v2783 = vlaneseq
        %v2784 = vshrl.u32 %v2783, 7
        %v2785 = vsub.s32 %v2782, %v2784
        %v2786 = vrot.slane %v2772, %v2785
        %v2787 = vcombine.high %v2763, 0.0
        %v2788 = vcombine.high %v2770, 0.0
        %v2789 = vcombine.high %v2779, 0.0
        %v2790 = vcombine.high %v2786, 0.0
        %v2791 = vcombine.low %v2763, %v2770
        %v2793 = vunpack.c.l.s4 1983009808
        %v2794 = vunpack.c.0.s8 %v2793
        %v2795 = vlaneseq
        %v2796 = vshrl.u32 %v2795, 7
        %v2797 = vsub.s32 %v2794, %v2796
        %v2798 = vrot.slane %v2791, %v2797
        %v2799 = vcombine.low %v2787, %v2788
        %v2801 = vunpack.c.l.s4 1983009808
        %v2802 = vunpack.c.0.s8 %v2801
        %v2803 = vlaneseq
        %v2804 = vshrl.u32 %v2803, 7
        %v2805 = vsub.s32 %v2802, %v2804
        %v2806 = vrot.slane %v2799, %v2805
        %v2807 = vcombine.low %v2779, %v2786
        %v2809 = vunpack.c.l.s4 1983009808
        %v2810 = vunpack.c.0.s8 %v2809
        %v2811 = vlaneseq
        %v2812 = vshrl.u32 %v2811, 7
        %v2813 = vsub.s32 %v2810, %v2812
        %v2814 = vrot.slane %v2807, %v2813
        %v2815 = vcombine.low %v2789, %v2790
        %v2817 = vunpack.c.l.s4 1983009808
        %v2818 = vunpack.c.0.s8 %v2817
        %v2819 = vlaneseq
        %v2820 = vshrl.u32 %v2819, 7
        %v2821 = vsub.s32 %v2818, %v2820
        %v2822 = vrot.slane %v2815, %v2821
        %v2823 = vcombine.low %v2798, %v2806
        %v2824 = vcombine.high %v2798, %v2806
        %v2826 = vunpack.c.l.s4 1934713408
        %v2827 = vunpack.c.0.s8 %v2826
        %v2828 = vlaneseq
        %v2829 = vshrl.u32 %v2828, 7
        %v2830 = vsub.s32 %v2827, %v2829
        %v2831 = vrot.slane %v2823, %v2830
        %v2833 = vunpack.c.l.s4 1934713408
        %v2834 = vunpack.c.0.s8 %v2833
        %v2835 = vlaneseq
        %v2836 = vshrl.u32 %v2835, 7
        %v2837 = vsub.s32 %v2834, %v2836
        %v2838 = vrot.slane %v2824, %v2837
        %v2839 = vcombine.low %v2814, %v2822
        %v2840 = vcombine.high %v2814, %v2822
        %v2842 = vunpack.c.l.s4 1934713408
        %v2843 = vunpack.c.0.s8 %v2842
        %v2844 = vlaneseq
        %v2845 = vshrl.u32 %v2844, 7
        %v2846 = vsub.s32 %v2843, %v2845
        %v2847 = vrot.slane %v2839, %v2846
        %v2849 = vunpack.c.l.s4 1934713408
        %v2850 = vunpack.c.0.s8 %v2849
        %v2851 = vlaneseq
        %v2852 = vshrl.u32 %v2851, 7
        %v2853 = vsub.s32 %v2850, %v2852
        %v2854 = vrot.slane %v2840, %v2853
        %v2855 = vcombine.low %v2831, %v2847
        %v2856 = vcombine.high %v2831, %v2847
        %v2857 = vcombine.low %v2838, %v2854
        %v2858 = vcombine.high %v2838, %v2854
        %2860 = vrot.lane.b32.xlu0 %v2708, 120
        %v2861 = vpop.permute.xlu0 %2860
        %2863 = vrot.lane.b32.xlu0 %v2708, 112
        %v2864 = vpop.permute.xlu0 %2863
        %2866 = vrot.lane.b32.xlu0 %v2708, 104
        %v2867 = vpop.permute.xlu0 %2866
        %v2869 = vcombine.low %v2708, %v2864
        %v2870 = vcombine.high %v2708, %v2864
        %v2872 = vunpack.c.l.s4 1983009808
        %v2873 = vunpack.c.0.s8 %v2872
        %v2874 = vlaneseq
        %v2875 = vshrl.u32 %v2874, 7
        %v2876 = vsub.s32 %v2873, %v2875
        %v2877 = vrot.slane %v2869, %v2876
        %v2879 = vunpack.c.l.s4 1983009808
        %v2880 = vunpack.c.0.s8 %v2879
        %v2881 = vlaneseq
        %v2882 = vshrl.u32 %v2881, 7
        %v2883 = vsub.s32 %v2880, %v2882
        %v2884 = vrot.slane %v2870, %v2883
        %v2885 = vcombine.low %v2861, %v2867
        %v2886 = vcombine.high %v2861, %v2867
        %v2888 = vunpack.c.l.s4 1983009808
        %v2889 = vunpack.c.0.s8 %v2888
        %v2890 = vlaneseq
        %v2891 = vshrl.u32 %v2890, 7
        %v2892 = vsub.s32 %v2889, %v2891
        %v2893 = vrot.slane %v2885, %v2892
        %v2895 = vunpack.c.l.s4 1983009808
        %v2896 = vunpack.c.0.s8 %v2895
        %v2897 = vlaneseq
        %v2898 = vshrl.u32 %v2897, 7
        %v2899 = vsub.s32 %v2896, %v2898
        %v2900 = vrot.slane %v2886, %v2899
        %v2901 = vcombine.low %v2877, %v2893
        %v2902 = vcombine.high %v2877, %v2893
        %v2904 = vunpack.c.l.s4 1934713408
        %v2905 = vunpack.c.0.s8 %v2904
        %v2906 = vlaneseq
        %v2907 = vshrl.u32 %v2906, 7
        %v2908 = vsub.s32 %v2905, %v2907
        %v2909 = vrot.slane %v2901, %v2908
        %v2911 = vunpack.c.l.s4 1934713408
        %v2912 = vunpack.c.0.s8 %v2911
        %v2913 = vlaneseq
        %v2914 = vshrl.u32 %v2913, 7
        %v2915 = vsub.s32 %v2912, %v2914
        %v2916 = vrot.slane %v2902, %v2915
        %v2917 = vcombine.low %v2884, %v2900
        %v2918 = vcombine.high %v2884, %v2900
        %v2920 = vunpack.c.l.s4 1934713408
        %v2921 = vunpack.c.0.s8 %v2920
        %v2922 = vlaneseq
        %v2923 = vshrl.u32 %v2922, 7
        %v2924 = vsub.s32 %v2921, %v2923
        %v2925 = vrot.slane %v2917, %v2924
        %v2927 = vunpack.c.l.s4 1934713408
        %v2928 = vunpack.c.0.s8 %v2927
        %v2929 = vlaneseq
        %v2930 = vshrl.u32 %v2929, 7
        %v2931 = vsub.s32 %v2928, %v2930
        %v2932 = vrot.slane %v2918, %v2931
        %v2933 = vcombine.high %v2909, 0.0
        %v2934 = vcombine.high %v2916, 0.0
        %v2935 = vcombine.high %v2925, 0.0
        %v2936 = vcombine.high %v2932, 0.0
        %v2937 = vcombine.low %v2909, %v2916
        %v2939 = vunpack.c.l.s4 1983009808
        %v2940 = vunpack.c.0.s8 %v2939
        %v2941 = vlaneseq
        %v2942 = vshrl.u32 %v2941, 7
        %v2943 = vsub.s32 %v2940, %v2942
        %v2944 = vrot.slane %v2937, %v2943
        %v2945 = vcombine.low %v2933, %v2934
        %v2947 = vunpack.c.l.s4 1983009808
        %v2948 = vunpack.c.0.s8 %v2947
        %v2949 = vlaneseq
        %v2950 = vshrl.u32 %v2949, 7
        %v2951 = vsub.s32 %v2948, %v2950
        %v2952 = vrot.slane %v2945, %v2951
        %v2953 = vcombine.low %v2925, %v2932
        %v2955 = vunpack.c.l.s4 1983009808
        %v2956 = vunpack.c.0.s8 %v2955
        %v2957 = vlaneseq
        %v2958 = vshrl.u32 %v2957, 7
        %v2959 = vsub.s32 %v2956, %v2958
        %v2960 = vrot.slane %v2953, %v2959
        %v2961 = vcombine.low %v2935, %v2936
        %v2963 = vunpack.c.l.s4 1983009808
        %v2964 = vunpack.c.0.s8 %v2963
        %v2965 = vlaneseq
        %v2966 = vshrl.u32 %v2965, 7
        %v2967 = vsub.s32 %v2964, %v2966
        %v2968 = vrot.slane %v2961, %v2967
        %v2969 = vcombine.low %v2944, %v2952
        %v2970 = vcombine.high %v2944, %v2952
        %v2972 = vunpack.c.l.s4 1934713408
        %v2973 = vunpack.c.0.s8 %v2972
        %v2974 = vlaneseq
        %v2975 = vshrl.u32 %v2974, 7
        %v2976 = vsub.s32 %v2973, %v2975
        %v2977 = vrot.slane %v2969, %v2976
        %v2979 = vunpack.c.l.s4 1934713408
        %v2980 = vunpack.c.0.s8 %v2979
        %v2981 = vlaneseq
        %v2982 = vshrl.u32 %v2981, 7
        %v2983 = vsub.s32 %v2980, %v2982
        %v2984 = vrot.slane %v2970, %v2983
        %v2985 = vcombine.low %v2960, %v2968
        %v2986 = vcombine.high %v2960, %v2968
        %v2988 = vunpack.c.l.s4 1934713408
        %v2989 = vunpack.c.0.s8 %v2988
        %v2990 = vlaneseq
        %v2991 = vshrl.u32 %v2990, 7
        %v2992 = vsub.s32 %v2989, %v2991
        %v2993 = vrot.slane %v2985, %v2992
        %v2995 = vunpack.c.l.s4 1934713408
        %v2996 = vunpack.c.0.s8 %v2995
        %v2997 = vlaneseq
        %v2998 = vshrl.u32 %v2997, 7
        %v2999 = vsub.s32 %v2996, %v2998
        %v3000 = vrot.slane %v2986, %v2999
        %v3001 = vcombine.low %v2977, %v2993
        %v3002 = vcombine.high %v2977, %v2993
        %v3003 = vcombine.low %v2984, %v3000
        %v3004 = vcombine.high %v2984, %v3000
        %3005 = vrot.lane.b32.xlu0 %v2708, 96
        %v3006 = vpop.permute.xlu0 %3005
        %3007 = vrot.lane.b32.xlu0 %v2861, 96
        %v3008 = vpop.permute.xlu0 %3007
        %3009 = vrot.lane.b32.xlu0 %v2864, 96
        %v3010 = vpop.permute.xlu0 %3009
        %3011 = vrot.lane.b32.xlu0 %v2867, 96
        %v3012 = vpop.permute.xlu0 %3011
        %v3017 = vcombine.low %v3006, %v3010
        %v3018 = vcombine.high %v3006, %v3010
        %v3020 = vunpack.c.l.s4 1983009808
        %v3021 = vunpack.c.0.s8 %v3020
        %v3022 = vlaneseq
        %v3023 = vshrl.u32 %v3022, 7
        %v3024 = vsub.s32 %v3021, %v3023
        %v3025 = vrot.slane %v3017, %v3024
        %v3027 = vunpack.c.l.s4 1983009808
        %v3028 = vunpack.c.0.s8 %v3027
        %v3029 = vlaneseq
        %v3030 = vshrl.u32 %v3029, 7
        %v3031 = vsub.s32 %v3028, %v3030
        %v3032 = vrot.slane %v3018, %v3031
        %v3033 = vcombine.low %v3008, %v3012
        %v3034 = vcombine.high %v3008, %v3012
        %v3036 = vunpack.c.l.s4 1983009808
        %v3037 = vunpack.c.0.s8 %v3036
        %v3038 = vlaneseq
        %v3039 = vshrl.u32 %v3038, 7
        %v3040 = vsub.s32 %v3037, %v3039
        %v3041 = vrot.slane %v3033, %v3040
        %v3043 = vunpack.c.l.s4 1983009808
        %v3044 = vunpack.c.0.s8 %v3043
        %v3045 = vlaneseq
        %v3046 = vshrl.u32 %v3045, 7
        %v3047 = vsub.s32 %v3044, %v3046
        %v3048 = vrot.slane %v3034, %v3047
        %v3049 = vcombine.low %v3025, %v3041
        %v3050 = vcombine.high %v3025, %v3041
        %v3052 = vunpack.c.l.s4 1934713408
        %v3053 = vunpack.c.0.s8 %v3052
        %v3054 = vlaneseq
        %v3055 = vshrl.u32 %v3054, 7
        %v3056 = vsub.s32 %v3053, %v3055
        %v3057 = vrot.slane %v3049, %v3056
        %v3059 = vunpack.c.l.s4 1934713408
        %v3060 = vunpack.c.0.s8 %v3059
        %v3061 = vlaneseq
        %v3062 = vshrl.u32 %v3061, 7
        %v3063 = vsub.s32 %v3060, %v3062
        %v3064 = vrot.slane %v3050, %v3063
        %v3065 = vcombine.low %v3032, %v3048
        %v3066 = vcombine.high %v3032, %v3048
        %v3068 = vunpack.c.l.s4 1934713408
        %v3069 = vunpack.c.0.s8 %v3068
        %v3070 = vlaneseq
        %v3071 = vshrl.u32 %v3070, 7
        %v3072 = vsub.s32 %v3069, %v3071
        %v3073 = vrot.slane %v3065, %v3072
        %v3075 = vunpack.c.l.s4 1934713408
        %v3076 = vunpack.c.0.s8 %v3075
        %v3077 = vlaneseq
        %v3078 = vshrl.u32 %v3077, 7
        %v3079 = vsub.s32 %v3076, %v3078
        %v3080 = vrot.slane %v3066, %v3079
        %v3081 = vcombine.high %v3057, 0.0
        %v3082 = vcombine.high %v3064, 0.0
        %v3083 = vcombine.high %v3073, 0.0
        %v3084 = vcombine.high %v3080, 0.0
        %v3085 = vcombine.low %v3057, %v3064
        %v3087 = vunpack.c.l.s4 1983009808
        %v3088 = vunpack.c.0.s8 %v3087
        %v3089 = vlaneseq
        %v3090 = vshrl.u32 %v3089, 7
        %v3091 = vsub.s32 %v3088, %v3090
        %v3092 = vrot.slane %v3085, %v3091
        %v3093 = vcombine.low %v3081, %v3082
        %v3095 = vunpack.c.l.s4 1983009808
        %v3096 = vunpack.c.0.s8 %v3095
        %v3097 = vlaneseq
        %v3098 = vshrl.u32 %v3097, 7
        %v3099 = vsub.s32 %v3096, %v3098
        %v3100 = vrot.slane %v3093, %v3099
        %v3101 = vcombine.low %v3073, %v3080
        %v3103 = vunpack.c.l.s4 1983009808
        %v3104 = vunpack.c.0.s8 %v3103
        %v3105 = vlaneseq
        %v3106 = vshrl.u32 %v3105, 7
        %v3107 = vsub.s32 %v3104, %v3106
        %v3108 = vrot.slane %v3101, %v3107
        %v3109 = vcombine.low %v3083, %v3084
        %v3111 = vunpack.c.l.s4 1983009808
        %v3112 = vunpack.c.0.s8 %v3111
        %v3113 = vlaneseq
        %v3114 = vshrl.u32 %v3113, 7
        %v3115 = vsub.s32 %v3112, %v3114
        %v3116 = vrot.slane %v3109, %v3115
        %v3117 = vcombine.low %v3092, %v3100
        %v3118 = vcombine.high %v3092, %v3100
        %v3120 = vunpack.c.l.s4 1934713408
        %v3121 = vunpack.c.0.s8 %v3120
        %v3122 = vlaneseq
        %v3123 = vshrl.u32 %v3122, 7
        %v3124 = vsub.s32 %v3121, %v3123
        %v3125 = vrot.slane %v3117, %v3124
        %v3127 = vunpack.c.l.s4 1934713408
        %v3128 = vunpack.c.0.s8 %v3127
        %v3129 = vlaneseq
        %v3130 = vshrl.u32 %v3129, 7
        %v3131 = vsub.s32 %v3128, %v3130
        %v3132 = vrot.slane %v3118, %v3131
        %v3133 = vcombine.low %v3108, %v3116
        %v3134 = vcombine.high %v3108, %v3116
        %v3136 = vunpack.c.l.s4 1934713408
        %v3137 = vunpack.c.0.s8 %v3136
        %v3138 = vlaneseq
        %v3139 = vshrl.u32 %v3138, 7
        %v3140 = vsub.s32 %v3137, %v3139
        %v3141 = vrot.slane %v3133, %v3140
        %v3143 = vunpack.c.l.s4 1934713408
        %v3144 = vunpack.c.0.s8 %v3143
        %v3145 = vlaneseq
        %v3146 = vshrl.u32 %v3145, 7
        %v3147 = vsub.s32 %v3144, %v3146
        %v3148 = vrot.slane %v3134, %v3147
        %v3149 = vcombine.low %v3125, %v3141
        %v3150 = vcombine.high %v3125, %v3141
        %v3151 = vcombine.low %v3132, %v3148
        %v3152 = vcombine.high %v3132, %v3148
        %v3154 = vsel %vm1678, %v2855, 0
        %v3157 = vsel %vm1678, %v3001, 0
        %3159 = vmatprep.subr.mxu0 0.0
        %3160 = vmatpush1.xpose.msra.mxu0 0.0
        %3161 = vmatprep.subr.mxu0 0.0
        %3162 = vmatpush1.xpose.msra.mxu0 0.0
        %3163 = vmatprep.subr.mxu0 0.0
        %3164 = vmatpush1.xpose.msra.mxu0 0.0
        %3165 = vmatprep.subr.mxu0 0.0
        %3166 = vmatpush1.xpose.msra.mxu0 0.0
        %3167 = vmatprep.subr.mxu0 0.0
        %3168 = vmatpush1.xpose.msra.mxu0 0.0
        %3169 = vmatprep.subr.mxu0 0.0
        %3170 = vmatpush1.xpose.msra.mxu0 0.0
        %3171 = vmatprep.subr.mxu0 0.0
        %3172 = vmatpush1.xpose.msra.mxu0 0.0
        %3173 = vmatprep.subr.mxu0 0.0
        %3174 = vmatpush1.xpose.msra.mxu0 0.0
        %3175 = vmatprep.subr.mxu0 0.0
        %3176 = vmatpush1.xpose.msra.mxu0 0.0
        %3177 = vmatprep.subr.mxu0 0.0
        %3178 = vmatpush1.xpose.msra.mxu0 0.0
        %3179 = vmatprep.subr.mxu0 0.0
        %3180 = vmatpush1.xpose.msra.mxu0 0.0
        %3181 = vmatprep.subr.mxu0 0.0
        %3182 = vmatpush1.xpose.msra.mxu0 0.0
        %3183 = vmatprep.subr.mxu0 0.0
        %3184 = vmatpush1.xpose.msra.mxu0 0.0
        %3185 = vmatprep.subr.mxu0 0.0
        %3186 = vmatpush1.xpose.msra.mxu0 0.0
        %3187 = vmatprep.subr.mxu0 0.0
        %3188 = vmatpush1.xpose.msra.mxu0 0.0
        %3189 = vmatprep.subr.mxu0 0.0
        %3190 = vmatpush1.xpose.msra.mxu0 %v3157
        %3191 = vmatprep.subr.mxu0 0.0
        %3192 = vmatpush2.xpose.msra.mxu0 0.0
        %3193 = vmatprep.subr.mxu0 0.0
        %3194 = vmatpush2.xpose.msra.mxu0 0.0
        %3195 = vmatprep.subr.mxu0 0.0
        %3196 = vmatpush2.xpose.msra.mxu0 0.0
        %3197 = vmatprep.subr.mxu0 0.0
        %3198 = vmatpush2.xpose.msra.mxu0 0.0
        %3199 = vmatprep.subr.mxu0 0.0
        %3200 = vmatpush2.xpose.msra.mxu0 0.0
        %3201 = vmatprep.subr.mxu0 0.0
        %3202 = vmatpush2.xpose.msra.mxu0 0.0
        %3203 = vmatprep.subr.mxu0 0.0
        %3204 = vmatpush2.xpose.msra.mxu0 0.0
        %3205 = vmatprep.subr.mxu0 0.0
        %3206 = vmatpush2.xpose.msra.mxu0 0.0
        %3207 = vmatprep.subr.mxu0 0.0
        %3208 = vmatpush2.xpose.msra.mxu0 0.0
        %3209 = vmatprep.subr.mxu0 0.0
        %3210 = vmatpush2.xpose.msra.mxu0 0.0
        %3211 = vmatprep.subr.mxu0 0.0
        %3212 = vmatpush2.xpose.msra.mxu0 0.0
        %3213 = vmatprep.subr.mxu0 0.0
        %3214 = vmatpush2.xpose.msra.mxu0 0.0
        %3215 = vmatprep.subr.mxu0 0.0
        %3216 = vmatpush2.xpose.msra.mxu0 0.0
        %3217 = vmatprep.subr.mxu0 0.0
        %3218 = vmatpush2.xpose.msra.mxu0 0.0
        %3219 = vmatprep.subr.mxu0 0.0
        %3220 = vmatpush2.xpose.msra.mxu0 0.0
        %3221 = vmatprep.subr.mxu0 0.0
        %3222 = vmatpush2.xpose.msra.mxu0 0.0
        %3223 = vmatprep.mubr.f32.mxu0 0.0
        %3224 = vmatmul.mubr.f32.gmra.mxu0 %v3154
        %v3225 = vpop.f32.mrf.mxu0
        %v3226 = vadd.f32 0.0, %v3225
        %v3227 = vpop.f32.mrf.mxu0
        %3228 = vdwg.mxu0
        %v3230 = vsel %vm1678, %v2856, 0
        %v3233 = vsel %vm1678, %v3002, 0
        %3235 = vmatprep.subr.mxu0 0.0
        %3236 = vmatpush1.xpose.msra.mxu0 0.0
        %3237 = vmatprep.subr.mxu0 0.0
        %3238 = vmatpush1.xpose.msra.mxu0 0.0
        %3239 = vmatprep.subr.mxu0 0.0
        %3240 = vmatpush1.xpose.msra.mxu0 0.0
        %3241 = vmatprep.subr.mxu0 0.0
        %3242 = vmatpush1.xpose.msra.mxu0 0.0
        %3243 = vmatprep.subr.mxu0 0.0
        %3244 = vmatpush1.xpose.msra.mxu0 0.0
        %3245 = vmatprep.subr.mxu0 0.0
        %3246 = vmatpush1.xpose.msra.mxu0 0.0
        %3247 = vmatprep.subr.mxu0 0.0
        %3248 = vmatpush1.xpose.msra.mxu0 0.0
        %3249 = vmatprep.subr.mxu0 0.0
        %3250 = vmatpush1.xpose.msra.mxu0 0.0
        %3251 = vmatprep.subr.mxu0 0.0
        %3252 = vmatpush1.xpose.msra.mxu0 0.0
        %3253 = vmatprep.subr.mxu0 0.0
        %3254 = vmatpush1.xpose.msra.mxu0 0.0
        %3255 = vmatprep.subr.mxu0 0.0
        %3256 = vmatpush1.xpose.msra.mxu0 0.0
        %3257 = vmatprep.subr.mxu0 0.0
        %3258 = vmatpush1.xpose.msra.mxu0 0.0
        %3259 = vmatprep.subr.mxu0 0.0
        %3260 = vmatpush1.xpose.msra.mxu0 0.0
        %3261 = vmatprep.subr.mxu0 0.0
        %3262 = vmatpush1.xpose.msra.mxu0 0.0
        %3263 = vmatprep.subr.mxu0 0.0
        %3264 = vmatpush1.xpose.msra.mxu0 0.0
        %3265 = vmatprep.subr.mxu0 0.0
        %3266 = vmatpush1.xpose.msra.mxu0 %v3233
        %3267 = vmatprep.subr.mxu0 0.0
        %3268 = vmatpush2.xpose.msra.mxu0 0.0
        %3269 = vmatprep.subr.mxu0 0.0
        %3270 = vmatpush2.xpose.msra.mxu0 0.0
        %3271 = vmatprep.subr.mxu0 0.0
        %3272 = vmatpush2.xpose.msra.mxu0 0.0
        %3273 = vmatprep.subr.mxu0 0.0
        %3274 = vmatpush2.xpose.msra.mxu0 0.0
        %3275 = vmatprep.subr.mxu0 0.0
        %3276 = vmatpush2.xpose.msra.mxu0 0.0
        %3277 = vmatprep.subr.mxu0 0.0
        %3278 = vmatpush2.xpose.msra.mxu0 0.0
        %3279 = vmatprep.subr.mxu0 0.0
        %3280 = vmatpush2.xpose.msra.mxu0 0.0
        %3281 = vmatprep.subr.mxu0 0.0
        %3282 = vmatpush2.xpose.msra.mxu0 0.0
        %3283 = vmatprep.subr.mxu0 0.0
        %3284 = vmatpush2.xpose.msra.mxu0 0.0
        %3285 = vmatprep.subr.mxu0 0.0
        %3286 = vmatpush2.xpose.msra.mxu0 0.0
        %3287 = vmatprep.subr.mxu0 0.0
        %3288 = vmatpush2.xpose.msra.mxu0 0.0
        %3289 = vmatprep.subr.mxu0 0.0
        %3290 = vmatpush2.xpose.msra.mxu0 0.0
        %3291 = vmatprep.subr.mxu0 0.0
        %3292 = vmatpush2.xpose.msra.mxu0 0.0
        %3293 = vmatprep.subr.mxu0 0.0
        %3294 = vmatpush2.xpose.msra.mxu0 0.0
        %3295 = vmatprep.subr.mxu0 0.0
        %3296 = vmatpush2.xpose.msra.mxu0 0.0
        %3297 = vmatprep.subr.mxu0 0.0
        %3298 = vmatpush2.xpose.msra.mxu0 0.0
        %3299 = vmatprep.mubr.f32.mxu0 0.0
        %3300 = vmatmul.mubr.f32.gmra.mxu0 %v3230
        %v3301 = vpop.f32.mrf.mxu0
        %v3302 = vadd.f32 0.0, %v3301
        %v3303 = vpop.f32.mrf.mxu0
        %3304 = vdwg.mxu0
        %v3306 = vsel %vm1678, %v2857, 0
        %v3309 = vsel %vm1678, %v3003, 0
        %3311 = vmatprep.subr.mxu0 0.0
        %3312 = vmatpush1.xpose.msra.mxu0 0.0
        %3313 = vmatprep.subr.mxu0 0.0
        %3314 = vmatpush1.xpose.msra.mxu0 0.0
        %3315 = vmatprep.subr.mxu0 0.0
        %3316 = vmatpush1.xpose.msra.mxu0 0.0
        %3317 = vmatprep.subr.mxu0 0.0
        %3318 = vmatpush1.xpose.msra.mxu0 0.0
        %3319 = vmatprep.subr.mxu0 0.0
        %3320 = vmatpush1.xpose.msra.mxu0 0.0
        %3321 = vmatprep.subr.mxu0 0.0
        %3322 = vmatpush1.xpose.msra.mxu0 0.0
        %3323 = vmatprep.subr.mxu0 0.0
        %3324 = vmatpush1.xpose.msra.mxu0 0.0
        %3325 = vmatprep.subr.mxu0 0.0
        %3326 = vmatpush1.xpose.msra.mxu0 0.0
        %3327 = vmatprep.subr.mxu0 0.0
        %3328 = vmatpush1.xpose.msra.mxu0 0.0
        %3329 = vmatprep.subr.mxu0 0.0
        %3330 = vmatpush1.xpose.msra.mxu0 0.0
        %3331 = vmatprep.subr.mxu0 0.0
        %3332 = vmatpush1.xpose.msra.mxu0 0.0
        %3333 = vmatprep.subr.mxu0 0.0
        %3334 = vmatpush1.xpose.msra.mxu0 0.0
        %3335 = vmatprep.subr.mxu0 0.0
        %3336 = vmatpush1.xpose.msra.mxu0 0.0
        %3337 = vmatprep.subr.mxu0 0.0
        %3338 = vmatpush1.xpose.msra.mxu0 0.0
        %3339 = vmatprep.subr.mxu0 0.0
        %3340 = vmatpush1.xpose.msra.mxu0 0.0
        %3341 = vmatprep.subr.mxu0 0.0
        %3342 = vmatpush1.xpose.msra.mxu0 %v3309
        %3343 = vmatprep.subr.mxu0 0.0
        %3344 = vmatpush2.xpose.msra.mxu0 0.0
        %3345 = vmatprep.subr.mxu0 0.0
        %3346 = vmatpush2.xpose.msra.mxu0 0.0
        %3347 = vmatprep.subr.mxu0 0.0
        %3348 = vmatpush2.xpose.msra.mxu0 0.0
        %3349 = vmatprep.subr.mxu0 0.0
        %3350 = vmatpush2.xpose.msra.mxu0 0.0
        %3351 = vmatprep.subr.mxu0 0.0
        %3352 = vmatpush2.xpose.msra.mxu0 0.0
        %3353 = vmatprep.subr.mxu0 0.0
        %3354 = vmatpush2.xpose.msra.mxu0 0.0
        %3355 = vmatprep.subr.mxu0 0.0
        %3356 = vmatpush2.xpose.msra.mxu0 0.0
        %3357 = vmatprep.subr.mxu0 0.0
        %3358 = vmatpush2.xpose.msra.mxu0 0.0
        %3359 = vmatprep.subr.mxu0 0.0
        %3360 = vmatpush2.xpose.msra.mxu0 0.0
        %3361 = vmatprep.subr.mxu0 0.0
        %3362 = vmatpush2.xpose.msra.mxu0 0.0
        %3363 = vmatprep.subr.mxu0 0.0
        %3364 = vmatpush2.xpose.msra.mxu0 0.0
        %3365 = vmatprep.subr.mxu0 0.0
        %3366 = vmatpush2.xpose.msra.mxu0 0.0
        %3367 = vmatprep.subr.mxu0 0.0
        %3368 = vmatpush2.xpose.msra.mxu0 0.0
        %3369 = vmatprep.subr.mxu0 0.0
        %3370 = vmatpush2.xpose.msra.mxu0 0.0
        %3371 = vmatprep.subr.mxu0 0.0
        %3372 = vmatpush2.xpose.msra.mxu0 0.0
        %3373 = vmatprep.subr.mxu0 0.0
        %3374 = vmatpush2.xpose.msra.mxu0 0.0
        %3375 = vmatprep.mubr.f32.mxu0 0.0
        %3376 = vmatmul.mubr.f32.gmra.mxu0 %v3306
        %v3377 = vpop.f32.mrf.mxu0
        %v3378 = vadd.f32 0.0, %v3377
        %v3379 = vpop.f32.mrf.mxu0
        %3380 = vdwg.mxu0
        %v3382 = vsel %vm1678, %v2858, 0
        %v3385 = vsel %vm1678, %v3004, 0
        %3387 = vmatprep.subr.mxu0 0.0
        %3388 = vmatpush1.xpose.msra.mxu0 0.0
        %3389 = vmatprep.subr.mxu0 0.0
        %3390 = vmatpush1.xpose.msra.mxu0 0.0
        %3391 = vmatprep.subr.mxu0 0.0
        %3392 = vmatpush1.xpose.msra.mxu0 0.0
        %3393 = vmatprep.subr.mxu0 0.0
        %3394 = vmatpush1.xpose.msra.mxu0 0.0
        %3395 = vmatprep.subr.mxu0 0.0
        %3396 = vmatpush1.xpose.msra.mxu0 0.0
        %3397 = vmatprep.subr.mxu0 0.0
        %3398 = vmatpush1.xpose.msra.mxu0 0.0
        %3399 = vmatprep.subr.mxu0 0.0
        %3400 = vmatpush1.xpose.msra.mxu0 0.0
        %3401 = vmatprep.subr.mxu0 0.0
        %3402 = vmatpush1.xpose.msra.mxu0 0.0
        %3403 = vmatprep.subr.mxu0 0.0
        %3404 = vmatpush1.xpose.msra.mxu0 0.0
        %3405 = vmatprep.subr.mxu0 0.0
        %3406 = vmatpush1.xpose.msra.mxu0 0.0
        %3407 = vmatprep.subr.mxu0 0.0
        %3408 = vmatpush1.xpose.msra.mxu0 0.0
        %3409 = vmatprep.subr.mxu0 0.0
        %3410 = vmatpush1.xpose.msra.mxu0 0.0
        %3411 = vmatprep.subr.mxu0 0.0
        %3412 = vmatpush1.xpose.msra.mxu0 0.0
        %3413 = vmatprep.subr.mxu0 0.0
        %3414 = vmatpush1.xpose.msra.mxu0 0.0
        %3415 = vmatprep.subr.mxu0 0.0
        %3416 = vmatpush1.xpose.msra.mxu0 0.0
        %3417 = vmatprep.subr.mxu0 0.0
        %3418 = vmatpush1.xpose.msra.mxu0 %v3385
        %3419 = vmatprep.subr.mxu0 0.0
        %3420 = vmatpush2.xpose.msra.mxu0 0.0
        %3421 = vmatprep.subr.mxu0 0.0
        %3422 = vmatpush2.xpose.msra.mxu0 0.0
        %3423 = vmatprep.subr.mxu0 0.0
        %3424 = vmatpush2.xpose.msra.mxu0 0.0
        %3425 = vmatprep.subr.mxu0 0.0
        %3426 = vmatpush2.xpose.msra.mxu0 0.0
        %3427 = vmatprep.subr.mxu0 0.0
        %3428 = vmatpush2.xpose.msra.mxu0 0.0
        %3429 = vmatprep.subr.mxu0 0.0
        %3430 = vmatpush2.xpose.msra.mxu0 0.0
        %3431 = vmatprep.subr.mxu0 0.0
        %3432 = vmatpush2.xpose.msra.mxu0 0.0
        %3433 = vmatprep.subr.mxu0 0.0
        %3434 = vmatpush2.xpose.msra.mxu0 0.0
        %3435 = vmatprep.subr.mxu0 0.0
        %3436 = vmatpush2.xpose.msra.mxu0 0.0
        %3437 = vmatprep.subr.mxu0 0.0
        %3438 = vmatpush2.xpose.msra.mxu0 0.0
        %3439 = vmatprep.subr.mxu0 0.0
        %3440 = vmatpush2.xpose.msra.mxu0 0.0
        %3441 = vmatprep.subr.mxu0 0.0
        %3442 = vmatpush2.xpose.msra.mxu0 0.0
        %3443 = vmatprep.subr.mxu0 0.0
        %3444 = vmatpush2.xpose.msra.mxu0 0.0
        %3445 = vmatprep.subr.mxu0 0.0
        %3446 = vmatpush2.xpose.msra.mxu0 0.0
        %3447 = vmatprep.subr.mxu0 0.0
        %3448 = vmatpush2.xpose.msra.mxu0 0.0
        %3449 = vmatprep.subr.mxu0 0.0
        %3450 = vmatpush2.xpose.msra.mxu0 0.0
        %3451 = vmatprep.mubr.f32.mxu0 0.0
        %3452 = vmatmul.mubr.f32.gmra.mxu0 %v3382
        %v3453 = vpop.f32.mrf.mxu0
        %v3454 = vadd.f32 0.0, %v3453
        %v3455 = vpop.f32.mrf.mxu0
        %3456 = vdwg.mxu0
        %v3457 = vmul.f32 %v3226, 0.35355338
        %v3458 = vmul.f32 %v3302, 0.35355338
        %v3459 = vmul.f32 %v3378, 0.35355338
        %v3460 = vmul.f32 %v3454, 0.35355338
        %v3461 = vsel %vm1678, %v3457, -inf
        %3462 = vmax.xlane.f32.xlu0 %v3461
        %v3463 = vpop.xlane.xlu0 %3462
        %v3464 = vsel %vm1678, %v3458, -inf
        %3465 = vmax.xlane.f32.xlu0 %v3464
        %v3466 = vpop.xlane.xlu0 %3465
        %v3467 = vsel %vm1678, %v3459, -inf
        %3468 = vmax.xlane.f32.xlu0 %v3467
        %v3469 = vpop.xlane.xlu0 %3468
        %v3470 = vsel %vm1678, %v3460, -inf
        %3471 = vmax.xlane.f32.xlu0 %v3470
        %v3472 = vpop.xlane.xlu0 %3471
        %v3473 = vsub.f32 %v3457, %v3463
        %v3474 = vsub.f32 %v3458, %v3466
        %v3475 = vsub.f32 %v3459, %v3469
        %v3476 = vsub.f32 %v3460, %v3472
        %v3477 = vmul.f32 %v3473, 1.442695
        %v3478 = vpow.pop %v3477
        %v3479 = vmul.f32 %v3474, 1.442695
        %v3480 = vpow.pop %v3479
        %v3481 = vmul.f32 %v3475, 1.442695
        %v3482 = vpow.pop %v3481
        %v3483 = vmul.f32 %v3476, 1.442695
        %v3484 = vpow.pop %v3483
        %v3485 = vsel %vm1678, %v3478, 0.0
        %3486 = vadd.xlane.f32.xlu0 %v3485
        %v3487 = vpop.xlane.xlu0 %3486
        %v3488 = vsel %vm1678, %v3480, 0.0
        %3489 = vadd.xlane.f32.xlu0 %v3488
        %v3490 = vpop.xlane.xlu0 %3489
        %v3491 = vsel %vm1678, %v3482, 0.0
        %3492 = vadd.xlane.f32.xlu0 %v3491
        %v3493 = vpop.xlane.xlu0 %3492
        %v3494 = vsel %vm1678, %v3484, 0.0
        %3495 = vadd.xlane.f32.xlu0 %v3494
        %v3496 = vpop.xlane.xlu0 %3495
        %v3497 = vrcp.pop %v3487
        %v3498 = vmul.f32 %v3478, %v3497
        %v3499 = vrcp.pop %v3490
        %v3500 = vmul.f32 %v3480, %v3499
        %v3501 = vrcp.pop %v3493
        %v3502 = vmul.f32 %v3482, %v3501
        %v3503 = vrcp.pop %v3496
        %v3504 = vmul.f32 %v3484, %v3503
        %v3506 = vsel %vm1678, %v3498, 0
        %3508 = vmatprep.subr.mxu0 0.0
        %3509 = vmatpush1.msra.mxu0 0.0
        %3510 = vmatprep.subr.mxu0 0.0
        %3511 = vmatpush1.msra.mxu0 0.0
        %3512 = vmatprep.subr.mxu0 0.0
        %3513 = vmatpush1.msra.mxu0 0.0
        %3514 = vmatprep.subr.mxu0 0.0
        %3515 = vmatpush1.msra.mxu0 0.0
        %3516 = vmatprep.subr.mxu0 0.0
        %3517 = vmatpush1.msra.mxu0 0.0
        %3518 = vmatprep.subr.mxu0 0.0
        %3519 = vmatpush1.msra.mxu0 0.0
        %3520 = vmatprep.subr.mxu0 0.0
        %3521 = vmatpush1.msra.mxu0 0.0
        %3522 = vmatprep.subr.mxu0 0.0
        %3523 = vmatpush1.msra.mxu0 0.0
        %3524 = vmatprep.subr.mxu0 0.0
        %3525 = vmatpush1.msra.mxu0 0.0
        %3526 = vmatprep.subr.mxu0 0.0
        %3527 = vmatpush1.msra.mxu0 0.0
        %3528 = vmatprep.subr.mxu0 0.0
        %3529 = vmatpush1.msra.mxu0 0.0
        %3530 = vmatprep.subr.mxu0 0.0
        %3531 = vmatpush1.msra.mxu0 0.0
        %3532 = vmatprep.subr.mxu0 0.0
        %3533 = vmatpush1.msra.mxu0 0.0
        %3534 = vmatprep.subr.mxu0 0.0
        %3535 = vmatpush1.msra.mxu0 0.0
        %3536 = vmatprep.subr.mxu0 0.0
        %3537 = vmatpush1.msra.mxu0 0.0
        %3538 = vmatprep.subr.mxu0 0.0
        %3539 = vmatpush1.msra.mxu0 %v3149
        %3540 = vmatprep.subr.mxu0 0.0
        %3541 = vmatpush2.msra.mxu0 0.0
        %3542 = vmatprep.subr.mxu0 0.0
        %3543 = vmatpush2.msra.mxu0 0.0
        %3544 = vmatprep.subr.mxu0 0.0
        %3545 = vmatpush2.msra.mxu0 0.0
        %3546 = vmatprep.subr.mxu0 0.0
        %3547 = vmatpush2.msra.mxu0 0.0
        %3548 = vmatprep.subr.mxu0 0.0
        %3549 = vmatpush2.msra.mxu0 0.0
        %3550 = vmatprep.subr.mxu0 0.0
        %3551 = vmatpush2.msra.mxu0 0.0
        %3552 = vmatprep.subr.mxu0 0.0
        %3553 = vmatpush2.msra.mxu0 0.0
        %3554 = vmatprep.subr.mxu0 0.0
        %3555 = vmatpush2.msra.mxu0 0.0
        %3556 = vmatprep.subr.mxu0 0.0
        %3557 = vmatpush2.msra.mxu0 0.0
        %3558 = vmatprep.subr.mxu0 0.0
        %3559 = vmatpush2.msra.mxu0 0.0
        %3560 = vmatprep.subr.mxu0 0.0
        %3561 = vmatpush2.msra.mxu0 0.0
        %3562 = vmatprep.subr.mxu0 0.0
        %3563 = vmatpush2.msra.mxu0 0.0
        %3564 = vmatprep.subr.mxu0 0.0
        %3565 = vmatpush2.msra.mxu0 0.0
        %3566 = vmatprep.subr.mxu0 0.0
        %3567 = vmatpush2.msra.mxu0 0.0
        %3568 = vmatprep.subr.mxu0 0.0
        %3569 = vmatpush2.msra.mxu0 0.0
        %3570 = vmatprep.subr.mxu0 0.0
        %3571 = vmatpush2.msra.mxu0 0.0
        %3572 = vmatprep.mubr.f32.mxu0 0.0
        %3573 = vmatmul.mubr.f32.gmra.mxu0 %v3506
        %v3574 = vpop.f32.mrf.mxu0
        %v3575 = vadd.f32 0.0, %v3574
        %v3576 = vpop.f32.mrf.mxu0
        %3577 = vdwg.mxu0
        %v3579 = vsel %vm1678, %v3500, 0
        %3581 = vmatprep.subr.mxu0 0.0
        %3582 = vmatpush1.msra.mxu0 0.0
        %3583 = vmatprep.subr.mxu0 0.0
        %3584 = vmatpush1.msra.mxu0 0.0
        %3585 = vmatprep.subr.mxu0 0.0
        %3586 = vmatpush1.msra.mxu0 0.0
        %3587 = vmatprep.subr.mxu0 0.0
        %3588 = vmatpush1.msra.mxu0 0.0
        %3589 = vmatprep.subr.mxu0 0.0
        %3590 = vmatpush1.msra.mxu0 0.0
        %3591 = vmatprep.subr.mxu0 0.0
        %3592 = vmatpush1.msra.mxu0 0.0
        %3593 = vmatprep.subr.mxu0 0.0
        %3594 = vmatpush1.msra.mxu0 0.0
        %3595 = vmatprep.subr.mxu0 0.0
        %3596 = vmatpush1.msra.mxu0 0.0
        %3597 = vmatprep.subr.mxu0 0.0
        %3598 = vmatpush1.msra.mxu0 0.0
        %3599 = vmatprep.subr.mxu0 0.0
        %3600 = vmatpush1.msra.mxu0 0.0
        %3601 = vmatprep.subr.mxu0 0.0
        %3602 = vmatpush1.msra.mxu0 0.0
        %3603 = vmatprep.subr.mxu0 0.0
        %3604 = vmatpush1.msra.mxu0 0.0
        %3605 = vmatprep.subr.mxu0 0.0
        %3606 = vmatpush1.msra.mxu0 0.0
        %3607 = vmatprep.subr.mxu0 0.0
        %3608 = vmatpush1.msra.mxu0 0.0
        %3609 = vmatprep.subr.mxu0 0.0
        %3610 = vmatpush1.msra.mxu0 0.0
        %3611 = vmatprep.subr.mxu0 0.0
        %3612 = vmatpush1.msra.mxu0 %v3150
        %3613 = vmatprep.subr.mxu0 0.0
        %3614 = vmatpush2.msra.mxu0 0.0
        %3615 = vmatprep.subr.mxu0 0.0
        %3616 = vmatpush2.msra.mxu0 0.0
        %3617 = vmatprep.subr.mxu0 0.0
        %3618 = vmatpush2.msra.mxu0 0.0
        %3619 = vmatprep.subr.mxu0 0.0
        %3620 = vmatpush2.msra.mxu0 0.0
        %3621 = vmatprep.subr.mxu0 0.0
        %3622 = vmatpush2.msra.mxu0 0.0
        %3623 = vmatprep.subr.mxu0 0.0
        %3624 = vmatpush2.msra.mxu0 0.0
        %3625 = vmatprep.subr.mxu0 0.0
        %3626 = vmatpush2.msra.mxu0 0.0
        %3627 = vmatprep.subr.mxu0 0.0
        %3628 = vmatpush2.msra.mxu0 0.0
        %3629 = vmatprep.subr.mxu0 0.0
        %3630 = vmatpush2.msra.mxu0 0.0
        %3631 = vmatprep.subr.mxu0 0.0
        %3632 = vmatpush2.msra.mxu0 0.0
        %3633 = vmatprep.subr.mxu0 0.0
        %3634 = vmatpush2.msra.mxu0 0.0
        %3635 = vmatprep.subr.mxu0 0.0
        %3636 = vmatpush2.msra.mxu0 0.0
        %3637 = vmatprep.subr.mxu0 0.0
        %3638 = vmatpush2.msra.mxu0 0.0
        %3639 = vmatprep.subr.mxu0 0.0
        %3640 = vmatpush2.msra.mxu0 0.0
        %3641 = vmatprep.subr.mxu0 0.0
        %3642 = vmatpush2.msra.mxu0 0.0
        %3643 = vmatprep.subr.mxu0 0.0
        %3644 = vmatpush2.msra.mxu0 0.0
        %3645 = vmatprep.mubr.f32.mxu0 0.0
        %3646 = vmatmul.mubr.f32.gmra.mxu0 %v3579
        %v3647 = vpop.f32.mrf.mxu0
        %v3648 = vadd.f32 0.0, %v3647
        %v3649 = vpop.f32.mrf.mxu0
        %3650 = vdwg.mxu0
        %v3652 = vsel %vm1678, %v3502, 0
        %3654 = vmatprep.subr.mxu0 0.0
        %3655 = vmatpush1.msra.mxu0 0.0
        %3656 = vmatprep.subr.mxu0 0.0
        %3657 = vmatpush1.msra.mxu0 0.0
        %3658 = vmatprep.subr.mxu0 0.0
        %3659 = vmatpush1.msra.mxu0 0.0
        %3660 = vmatprep.subr.mxu0 0.0
        %3661 = vmatpush1.msra.mxu0 0.0
        %3662 = vmatprep.subr.mxu0 0.0
        %3663 = vmatpush1.msra.mxu0 0.0
        %3664 = vmatprep.subr.mxu0 0.0
        %3665 = vmatpush1.msra.mxu0 0.0
        %3666 = vmatprep.subr.mxu0 0.0
        %3667 = vmatpush1.msra.mxu0 0.0
        %3668 = vmatprep.subr.mxu0 0.0
        %3669 = vmatpush1.msra.mxu0 0.0
        %3670 = vmatprep.subr.mxu0 0.0
        %3671 = vmatpush1.msra.mxu0 0.0
        %3672 = vmatprep.subr.mxu0 0.0
        %3673 = vmatpush1.msra.mxu0 0.0
        %3674 = vmatprep.subr.mxu0 0.0
        %3675 = vmatpush1.msra.mxu0 0.0
        %3676 = vmatprep.subr.mxu0 0.0
        %3677 = vmatpush1.msra.mxu0 0.0
        %3678 = vmatprep.subr.mxu0 0.0
        %3679 = vmatpush1.msra.mxu0 0.0
        %3680 = vmatprep.subr.mxu0 0.0
        %3681 = vmatpush1.msra.mxu0 0.0
        %3682 = vmatprep.subr.mxu0 0.0
        %3683 = vmatpush1.msra.mxu0 0.0
        %3684 = vmatprep.subr.mxu0 0.0
        %3685 = vmatpush1.msra.mxu0 %v3151
        %3686 = vmatprep.subr.mxu0 0.0
        %3687 = vmatpush2.msra.mxu0 0.0
        %3688 = vmatprep.subr.mxu0 0.0
        %3689 = vmatpush2.msra.mxu0 0.0
        %3690 = vmatprep.subr.mxu0 0.0
        %3691 = vmatpush2.msra.mxu0 0.0
        %3692 = vmatprep.subr.mxu0 0.0
        %3693 = vmatpush2.msra.mxu0 0.0
        %3694 = vmatprep.subr.mxu0 0.0
        %3695 = vmatpush2.msra.mxu0 0.0
        %3696 = vmatprep.subr.mxu0 0.0
        %3697 = vmatpush2.msra.mxu0 0.0
        %3698 = vmatprep.subr.mxu0 0.0
        %3699 = vmatpush2.msra.mxu0 0.0
        %3700 = vmatprep.subr.mxu0 0.0
        %3701 = vmatpush2.msra.mxu0 0.0
        %3702 = vmatprep.subr.mxu0 0.0
        %3703 = vmatpush2.msra.mxu0 0.0
        %3704 = vmatprep.subr.mxu0 0.0
        %3705 = vmatpush2.msra.mxu0 0.0
        %3706 = vmatprep.subr.mxu0 0.0
        %3707 = vmatpush2.msra.mxu0 0.0
        %3708 = vmatprep.subr.mxu0 0.0
        %3709 = vmatpush2.msra.mxu0 0.0
        %3710 = vmatprep.subr.mxu0 0.0
        %3711 = vmatpush2.msra.mxu0 0.0
        %3712 = vmatprep.subr.mxu0 0.0
        %3713 = vmatpush2.msra.mxu0 0.0
        %3714 = vmatprep.subr.mxu0 0.0
        %3715 = vmatpush2.msra.mxu0 0.0
        %3716 = vmatprep.subr.mxu0 0.0
        %3717 = vmatpush2.msra.mxu0 0.0
        %3718 = vmatprep.mubr.f32.mxu0 0.0
        %3719 = vmatmul.mubr.f32.gmra.mxu0 %v3652
        %v3720 = vpop.f32.mrf.mxu0
        %v3721 = vadd.f32 0.0, %v3720
        %v3722 = vpop.f32.mrf.mxu0
        %3723 = vdwg.mxu0
        %v3725 = vsel %vm1678, %v3504, 0
        %3727 = vmatprep.subr.mxu0 0.0
        %3728 = vmatpush1.msra.mxu0 0.0
        %3729 = vmatprep.subr.mxu0 0.0
        %3730 = vmatpush1.msra.mxu0 0.0
        %3731 = vmatprep.subr.mxu0 0.0
        %3732 = vmatpush1.msra.mxu0 0.0
        %3733 = vmatprep.subr.mxu0 0.0
        %3734 = vmatpush1.msra.mxu0 0.0
        %3735 = vmatprep.subr.mxu0 0.0
        %3736 = vmatpush1.msra.mxu0 0.0
        %3737 = vmatprep.subr.mxu0 0.0
        %3738 = vmatpush1.msra.mxu0 0.0
        %3739 = vmatprep.subr.mxu0 0.0
        %3740 = vmatpush1.msra.mxu0 0.0
        %3741 = vmatprep.subr.mxu0 0.0
        %3742 = vmatpush1.msra.mxu0 0.0
        %3743 = vmatprep.subr.mxu0 0.0
        %3744 = vmatpush1.msra.mxu0 0.0
        %3745 = vmatprep.subr.mxu0 0.0
        %3746 = vmatpush1.msra.mxu0 0.0
        %3747 = vmatprep.subr.mxu0 0.0
        %3748 = vmatpush1.msra.mxu0 0.0
        %3749 = vmatprep.subr.mxu0 0.0
        %3750 = vmatpush1.msra.mxu0 0.0
        %3751 = vmatprep.subr.mxu0 0.0
        %3752 = vmatpush1.msra.mxu0 0.0
        %3753 = vmatprep.subr.mxu0 0.0
        %3754 = vmatpush1.msra.mxu0 0.0
        %3755 = vmatprep.subr.mxu0 0.0
        %3756 = vmatpush1.msra.mxu0 0.0
        %3757 = vmatprep.subr.mxu0 0.0
        %3758 = vmatpush1.msra.mxu0 %v3152
        %3759 = vmatprep.subr.mxu0 0.0
        %3760 = vmatpush2.msra.mxu0 0.0
        %3761 = vmatprep.subr.mxu0 0.0
        %3762 = vmatpush2.msra.mxu0 0.0
        %3763 = vmatprep.subr.mxu0 0.0
        %3764 = vmatpush2.msra.mxu0 0.0
        %3765 = vmatprep.subr.mxu0 0.0
        %3766 = vmatpush2.msra.mxu0 0.0
        %3767 = vmatprep.subr.mxu0 0.0
        %3768 = vmatpush2.msra.mxu0 0.0
        %3769 = vmatprep.subr.mxu0 0.0
        %3770 = vmatpush2.msra.mxu0 0.0
        %3771 = vmatprep.subr.mxu0 0.0
        %3772 = vmatpush2.msra.mxu0 0.0
        %3773 = vmatprep.subr.mxu0 0.0
        %3774 = vmatpush2.msra.mxu0 0.0
        %3775 = vmatprep.subr.mxu0 0.0
        %3776 = vmatpush2.msra.mxu0 0.0
        %3777 = vmatprep.subr.mxu0 0.0
        %3778 = vmatpush2.msra.mxu0 0.0
        %3779 = vmatprep.subr.mxu0 0.0
        %3780 = vmatpush2.msra.mxu0 0.0
        %3781 = vmatprep.subr.mxu0 0.0
        %3782 = vmatpush2.msra.mxu0 0.0
        %3783 = vmatprep.subr.mxu0 0.0
        %3784 = vmatpush2.msra.mxu0 0.0
        %3785 = vmatprep.subr.mxu0 0.0
        %3786 = vmatpush2.msra.mxu0 0.0
        %3787 = vmatprep.subr.mxu0 0.0
        %3788 = vmatpush2.msra.mxu0 0.0
        %3789 = vmatprep.subr.mxu0 0.0
        %3790 = vmatpush2.msra.mxu0 0.0
        %3791 = vmatprep.mubr.f32.mxu0 0.0
        %3792 = vmatmul.mubr.f32.gmra.mxu0 %v3725
        %v3793 = vpop.f32.mrf.mxu0
        %v3794 = vadd.f32 0.0, %v3793
        %v3795 = vpop.f32.mrf.mxu0
        %3796 = vdwg.mxu0
        %v3797 = vcombine.low %v3575, %v3721
        %v3798 = vcombine.high %v3575, %v3721
        %v3800 = vunpack.c.l.s4 1983009808
        %v3801 = vunpack.c.0.s8 %v3800
        %v3802 = vlaneseq
        %v3803 = vshrl.u32 %v3802, 7
        %v3804 = vsub.s32 %v3801, %v3803
        %v3805 = vrot.slane %v3797, %v3804
        %v3807 = vunpack.c.l.s4 1983009808
        %v3808 = vunpack.c.0.s8 %v3807
        %v3809 = vlaneseq
        %v3810 = vshrl.u32 %v3809, 7
        %v3811 = vsub.s32 %v3808, %v3810
        %v3812 = vrot.slane %v3798, %v3811
        %v3813 = vcombine.low %v3648, %v3794
        %v3814 = vcombine.high %v3648, %v3794
        %v3816 = vunpack.c.l.s4 1983009808
        %v3817 = vunpack.c.0.s8 %v3816
        %v3818 = vlaneseq
        %v3819 = vshrl.u32 %v3818, 7
        %v3820 = vsub.s32 %v3817, %v3819
        %v3821 = vrot.slane %v3813, %v3820
        %v3823 = vunpack.c.l.s4 1983009808
        %v3824 = vunpack.c.0.s8 %v3823
        %v3825 = vlaneseq
        %v3826 = vshrl.u32 %v3825, 7
        %v3827 = vsub.s32 %v3824, %v3826
        %v3828 = vrot.slane %v3814, %v3827
        %v3829 = vcombine.low %v3805, %v3821
        %v3830 = vcombine.high %v3805, %v3821
        %v3832 = vunpack.c.l.s4 1934713408
        %v3833 = vunpack.c.0.s8 %v3832
        %v3834 = vlaneseq
        %v3835 = vshrl.u32 %v3834, 7
        %v3836 = vsub.s32 %v3833, %v3835
        %v3837 = vrot.slane %v3829, %v3836
        %v3839 = vunpack.c.l.s4 1934713408
        %v3840 = vunpack.c.0.s8 %v3839
        %v3841 = vlaneseq
        %v3842 = vshrl.u32 %v3841, 7
        %v3843 = vsub.s32 %v3840, %v3842
        %v3844 = vrot.slane %v3830, %v3843
        %v3845 = vcombine.low %v3812, %v3828
        %v3846 = vcombine.high %v3812, %v3828
        %v3848 = vunpack.c.l.s4 1934713408
        %v3849 = vunpack.c.0.s8 %v3848
        %v3850 = vlaneseq
        %v3851 = vshrl.u32 %v3850, 7
        %v3852 = vsub.s32 %v3849, %v3851
        %v3853 = vrot.slane %v3845, %v3852
        %v3855 = vunpack.c.l.s4 1934713408
        %v3856 = vunpack.c.0.s8 %v3855
        %v3857 = vlaneseq
        %v3858 = vshrl.u32 %v3857, 7
        %v3859 = vsub.s32 %v3856, %v3858
        %v3860 = vrot.slane %v3846, %v3859
        %v3861 = vcombine.high %v3837, 0.0
        %v3862 = vcombine.high %v3844, 0.0
        %v3863 = vcombine.high %v3853, 0.0
        %v3864 = vcombine.high %v3860, 0.0
        %v3865 = vcombine.low %v3837, %v3844
        %v3867 = vunpack.c.l.s4 1983009808
        %v3868 = vunpack.c.0.s8 %v3867
        %v3869 = vlaneseq
        %v3870 = vshrl.u32 %v3869, 7
        %v3871 = vsub.s32 %v3868, %v3870
        %v3872 = vrot.slane %v3865, %v3871
        %v3873 = vcombine.low %v3861, %v3862
        %v3875 = vunpack.c.l.s4 1983009808
        %v3876 = vunpack.c.0.s8 %v3875
        %v3877 = vlaneseq
        %v3878 = vshrl.u32 %v3877, 7
        %v3879 = vsub.s32 %v3876, %v3878
        %v3880 = vrot.slane %v3873, %v3879
        %v3881 = vcombine.low %v3853, %v3860
        %v3883 = vunpack.c.l.s4 1983009808
        %v3884 = vunpack.c.0.s8 %v3883
        %v3885 = vlaneseq
        %v3886 = vshrl.u32 %v3885, 7
        %v3887 = vsub.s32 %v3884, %v3886
        %v3888 = vrot.slane %v3881, %v3887
        %v3889 = vcombine.low %v3863, %v3864
        %v3891 = vunpack.c.l.s4 1983009808
        %v3892 = vunpack.c.0.s8 %v3891
        %v3893 = vlaneseq
        %v3894 = vshrl.u32 %v3893, 7
        %v3895 = vsub.s32 %v3892, %v3894
        %v3896 = vrot.slane %v3889, %v3895
        %v3897 = vcombine.low %v3872, %v3880
        %v3898 = vcombine.high %v3872, %v3880
        %v3900 = vunpack.c.l.s4 1934713408
        %v3901 = vunpack.c.0.s8 %v3900
        %v3902 = vlaneseq
        %v3903 = vshrl.u32 %v3902, 7
        %v3904 = vsub.s32 %v3901, %v3903
        %v3905 = vrot.slane %v3897, %v3904
        %v3907 = vunpack.c.l.s4 1934713408
        %v3908 = vunpack.c.0.s8 %v3907
        %v3909 = vlaneseq
        %v3910 = vshrl.u32 %v3909, 7
        %v3911 = vsub.s32 %v3908, %v3910
        %v3912 = vrot.slane %v3898, %v3911
        %v3913 = vcombine.low %v3888, %v3896
        %v3914 = vcombine.high %v3888, %v3896
        %v3916 = vunpack.c.l.s4 1934713408
        %v3917 = vunpack.c.0.s8 %v3916
        %v3918 = vlaneseq
        %v3919 = vshrl.u32 %v3918, 7
        %v3920 = vsub.s32 %v3917, %v3919
        %v3921 = vrot.slane %v3913, %v3920
        %v3923 = vunpack.c.l.s4 1934713408
        %v3924 = vunpack.c.0.s8 %v3923
        %v3925 = vlaneseq
        %v3926 = vshrl.u32 %v3925, 7
        %v3927 = vsub.s32 %v3924, %v3926
        %v3928 = vrot.slane %v3914, %v3927
        %v3929 = vcombine.low %v3905, %v3921
        %v3930 = vcombine.high %v3905, %v3921
        %v3931 = vcombine.low %v3912, %v3928
        %v3932 = vcombine.high %v3912, %v3928
        %3934 = vrot.lane.b32.xlu0 %v3930, 8
        %v3935 = vpop.permute.xlu0 %3934
        %3938 = vrot.lane.b32.xlu0 %v3931, 16
        %v3939 = vpop.permute.xlu0 %3938
        %3942 = vrot.lane.b32.xlu0 %v3932, 24
        %v3943 = vpop.permute.xlu0 %3942
        %v3945 = vsel %vm1678, %v3929, %v3935
        %v3946 = vsel %vm2476, %v3945, %v3939
        %v3947 = vsel %vm2478, %v3946, %v3943
        %v3948 = vpack.c.bf16 %v3947, %v3947
        %v3949 = vld [vmem:[%s1124] sm:$0xf]
        %v3950 = vld [vmem:[%s1124 + $0x4] sm:$0xf]
        %v3951 = vld [vmem:[%s1124 + $0x8] sm:$0xf]
        %v3952 = vld [vmem:[%s1124 + $0xc] sm:$0xf]
        %v3953 = vld [vmem:[%s1127] sm:$0x1]
        %v3955 = vlaneseq
        %v3956 = vshrl.u32 %v3955, 7
        %v3957 = vsub.s32 0, %v3956
        %v3958 = vrot.slane %v3953, %v3957
        %v3964 = vunpack.c.l.b16 %v3949
        %v3965 = vunpack.c.l.b16 %v3950
        %v3966 = vunpack.c.l.b16 %v3951
        %v3967 = vunpack.c.l.b16 %v3952
        %v3968 = vpack.c.b16 %v3965, %v3964
        %v3969 = vpack.c.b16 %v3967, %v3966
        %v3973 = vsel %vm1192, %v3948, 0
        %3975 = vmatprep.subr.bf16.mxu0 0
        %3976 = vmatpush1.bf16.msra.mxu0 0
        %3977 = vmatprep.subr.bf16.mxu0 0
        %3978 = vmatpush1.bf16.msra.mxu0 0
        %3979 = vmatprep.subr.bf16.mxu0 0
        %3980 = vmatpush1.bf16.msra.mxu0 0
        %3981 = vmatprep.subr.bf16.mxu0 0
        %3982 = vmatpush1.bf16.msra.mxu0 0
        %3983 = vmatprep.subr.bf16.mxu0 0
        %3984 = vmatpush1.bf16.msra.mxu0 0
        %3985 = vmatprep.subr.bf16.mxu0 0
        %3986 = vmatpush1.bf16.msra.mxu0 0
        %3987 = vmatprep.subr.bf16.mxu0 0
        %3988 = vmatpush1.bf16.msra.mxu0 %v3969
        %3989 = vmatprep.subr.bf16.mxu0 0
        %3990 = vmatpush1.bf16.msra.mxu0 %v3968
        %3991 = vmatprep.subr.bf16.mxu0 0
        %3992 = vmatpush2.bf16.msra.mxu0 0
        %3993 = vmatprep.subr.bf16.mxu0 0
        %3994 = vmatpush2.bf16.msra.mxu0 0
        %3995 = vmatprep.subr.bf16.mxu0 0
        %3996 = vmatpush2.bf16.msra.mxu0 0
        %3997 = vmatprep.subr.bf16.mxu0 0
        %3998 = vmatpush2.bf16.msra.mxu0 0
        %3999 = vmatprep.subr.bf16.mxu0 0
        %4000 = vmatpush2.bf16.msra.mxu0 0
        %4001 = vmatprep.subr.bf16.mxu0 0
        %4002 = vmatpush2.bf16.msra.mxu0 0
        %4003 = vmatprep.subr.bf16.mxu0 0
        %4004 = vmatpush2.bf16.msra.mxu0 0
        %4005 = vmatprep.subr.bf16.mxu0 0
        %4006 = vmatpush2.bf16.msra.mxu0 0
        %4007 = vmatprep.mubr.bf16.mxu0 0
        %4008 = vmatmul.mubr.bf16.gmra.mxu0 %v3973
        %v4009 = vpop.f32.mrf.mxu0
        %v4010 = vadd.f32 %v3958, %v4009
        %v4011 = vpop.f32.mrf.mxu0
        %v4012 = vpop.f32.mrf.mxu0
        %v4013 = vpop.f32.mrf.mxu0
        %4014 = vdwg.mxu0
        %v4015 = vadd.f32 %v2577, %v4010
        %v4016 = vld [vmem:[%s1130] sm:$0x1]
        %v4017 = vld [vmem:[%s1133] sm:$0x1]
        %v4018 = vsel %vm1192, %v4015, 0.0
        %4019 = vadd.xlane.f32.xlu0 %v4018
        %v4020 = vpop.xlane.xlu0 %4019
        %v4021 = vmul.f32 %v4020, %v2553
        %v4022 = vsub.f32 %v4015, %v4021
        %v4023 = vmul.f32 %v4022, %v4022
        %v4024 = vsel %vm1192, %v4023, 0.0
        %4025 = vadd.xlane.f32.xlu0 %v4024
        %v4026 = vpop.xlane.xlu0 %4025
        %v4027 = vmul.f32 %v4026, %v2553
        %v4028 = vadd.f32 %v4027, 1e-05
        %v4029 = vrsqrt.pop %v4028
        %v4030 = vmul.f32 %v4022, %v4029
        %v4032 = vlaneseq
        %v4033 = vshrl.u32 %v4032, 7
        %v4034 = vsub.s32 0, %v4033
        %v4035 = vrot.slane %v4016, %v4034
        %v4037 = vmul.f32 %v4030, %v4035
        %v4039 = vlaneseq
        %v4040 = vshrl.u32 %v4039, 7
        %v4041 = vsub.s32 0, %v4040
        %v4042 = vrot.slane %v4017, %v4041
        %v4044 = vadd.f32 %v4037, %v4042
        %v4045 = vpack.c.bf16 %v4044, %v4044
        %v4046 = vld [vmem:[%s1138] sm:$0xf]
        %v4047 = vld [vmem:[%s1138 + $0x4] sm:$0xf]
        %v4048 = vld [vmem:[%s1138 + $0x8] sm:$0xf]
        %v4049 = vld [vmem:[%s1138 + $0xc] sm:$0xf]
        %v4050 = vld [vmem:[%s1141] sm:$0x1]
        %v4052 = vlaneseq
        %v4053 = vshrl.u32 %v4052, 7
        %v4054 = vsub.s32 0, %v4053
        %v4055 = vrot.slane %v4050, %v4054
        %v4061 = vunpack.c.l.b16 %v4046
        %v4062 = vunpack.c.l.b16 %v4047
        %v4063 = vunpack.c.l.b16 %v4048
        %v4064 = vunpack.c.l.b16 %v4049
        %v4065 = vpack.c.b16 %v4062, %v4061
        %v4066 = vpack.c.b16 %v4064, %v4063
        %v4070 = vsel %vm1192, %v4045, 0
        %4072 = vmatprep.subr.bf16.mxu0 0
        %4073 = vmatpush1.bf16.msra.mxu0 0
        %4074 = vmatprep.subr.bf16.mxu0 0
        %4075 = vmatpush1.bf16.msra.mxu0 0
        %4076 = vmatprep.subr.bf16.mxu0 0
        %4077 = vmatpush1.bf16.msra.mxu0 0
        %4078 = vmatprep.subr.bf16.mxu0 0
        %4079 = vmatpush1.bf16.msra.mxu0 0
        %4080 = vmatprep.subr.bf16.mxu0 0
        %4081 = vmatpush1.bf16.msra.mxu0 0
        %4082 = vmatprep.subr.bf16.mxu0 0
        %4083 = vmatpush1.bf16.msra.mxu0 0
        %4084 = vmatprep.subr.bf16.mxu0 0
        %4085 = vmatpush1.bf16.msra.mxu0 %v4066
        %4086 = vmatprep.subr.bf16.mxu0 0
        %4087 = vmatpush1.bf16.msra.mxu0 %v4065
        %4088 = vmatprep.subr.bf16.mxu0 0
        %4089 = vmatpush2.bf16.msra.mxu0 0
        %4090 = vmatprep.subr.bf16.mxu0 0
        %4091 = vmatpush2.bf16.msra.mxu0 0
        %4092 = vmatprep.subr.bf16.mxu0 0
        %4093 = vmatpush2.bf16.msra.mxu0 0
        %4094 = vmatprep.subr.bf16.mxu0 0
        %4095 = vmatpush2.bf16.msra.mxu0 0
        %4096 = vmatprep.subr.bf16.mxu0 0
        %4097 = vmatpush2.bf16.msra.mxu0 0
        %4098 = vmatprep.subr.bf16.mxu0 0
        %4099 = vmatpush2.bf16.msra.mxu0 0
        %4100 = vmatprep.subr.bf16.mxu0 0
        %4101 = vmatpush2.bf16.msra.mxu0 0
        %4102 = vmatprep.subr.bf16.mxu0 0
        %4103 = vmatpush2.bf16.msra.mxu0 0
        %4104 = vmatprep.mubr.bf16.mxu0 0
        %4105 = vmatmul.mubr.bf16.gmra.mxu0 %v4070
        %v4106 = vpop.f32.mrf.mxu0
        %v4107 = vadd.f32 %v4055, %v4106
        %v4108 = vpop.f32.mrf.mxu0
        %v4109 = vpop.f32.mrf.mxu0
        %v4110 = vpop.f32.mrf.mxu0
        %4111 = vdwg.mxu0
        %v4112 = vmax.f32 %v4107, 0.0
        %v4113 = vpack.c.bf16 %v4112, %v4112
        %v4114 = vld [vmem:[%s1146] sm:$0xf]
        %v4115 = vld [vmem:[%s1146 + $0x4] sm:$0xf]
        %v4116 = vld [vmem:[%s1146 + $0x8] sm:$0xf]
        %v4117 = vld [vmem:[%s1146 + $0xc] sm:$0xf]
        %v4118 = vld [vmem:[%s1146 + $0x10] sm:$0xf]
        %v4119 = vld [vmem:[%s1146 + $0x14] sm:$0xf]
        %v4120 = vld [vmem:[%s1146 + $0x18] sm:$0xf]
        %v4121 = vld [vmem:[%s1146 + $0x1c] sm:$0xf]
        %v4122 = vld [vmem:[%s1149] sm:$0x1]
        %v4124 = vlaneseq
        %v4125 = vshrl.u32 %v4124, 7
        %v4126 = vsub.s32 0, %v4125
        %v4127 = vrot.slane %v4122, %v4126
        %v4137 = vunpack.c.l.b16 %v4114
        %v4138 = vunpack.c.l.b16 %v4115
        %v4139 = vunpack.c.l.b16 %v4116
        %v4140 = vunpack.c.l.b16 %v4117
        %v4141 = vunpack.c.l.b16 %v4118
        %v4142 = vunpack.c.l.b16 %v4119
        %v4143 = vunpack.c.l.b16 %v4120
        %v4144 = vunpack.c.l.b16 %v4121
        %v4145 = vpack.c.b16 %v4138, %v4137
        %v4146 = vpack.c.b16 %v4140, %v4139
        %v4147 = vpack.c.b16 %v4142, %v4141
        %v4148 = vpack.c.b16 %v4144, %v4143
        %vm4153 = vcmask 523264
        %v4155 = vsel %vm4153, %v4113, 0
        %4157 = vmatprep.subr.bf16.mxu0 0
        %4158 = vmatpush1.bf16.msra.mxu0 0
        %4159 = vmatprep.subr.bf16.mxu0 0
        %4160 = vmatpush1.bf16.msra.mxu0 0
        %4161 = vmatprep.subr.bf16.mxu0 0
        %4162 = vmatpush1.bf16.msra.mxu0 0
        %4163 = vmatprep.subr.bf16.mxu0 0
        %4164 = vmatpush1.bf16.msra.mxu0 0
        %4165 = vmatprep.subr.bf16.mxu0 0
        %4166 = vmatpush1.bf16.msra.mxu0 %v4148
        %4167 = vmatprep.subr.bf16.mxu0 0
        %4168 = vmatpush1.bf16.msra.mxu0 %v4147
        %4169 = vmatprep.subr.bf16.mxu0 0
        %4170 = vmatpush1.bf16.msra.mxu0 %v4146
        %4171 = vmatprep.subr.bf16.mxu0 0
        %4172 = vmatpush1.bf16.msra.mxu0 %v4145
        %4173 = vmatprep.subr.bf16.mxu0 0
        %4174 = vmatpush2.bf16.msra.mxu0 0
        %4175 = vmatprep.subr.bf16.mxu0 0
        %4176 = vmatpush2.bf16.msra.mxu0 0
        %4177 = vmatprep.subr.bf16.mxu0 0
        %4178 = vmatpush2.bf16.msra.mxu0 0
        %4179 = vmatprep.subr.bf16.mxu0 0
        %4180 = vmatpush2.bf16.msra.mxu0 0
        %4181 = vmatprep.subr.bf16.mxu0 0
        %4182 = vmatpush2.bf16.msra.mxu0 0
        %4183 = vmatprep.subr.bf16.mxu0 0
        %4184 = vmatpush2.bf16.msra.mxu0 0
        %4185 = vmatprep.subr.bf16.mxu0 0
        %4186 = vmatpush2.bf16.msra.mxu0 0
        %4187 = vmatprep.subr.bf16.mxu0 0
        %4188 = vmatpush2.bf16.msra.mxu0 0
        %4189 = vmatprep.mubr.bf16.mxu0 0
        %4190 = vmatmul.mubr.bf16.gmra.mxu0 %v4155
        %v4191 = vpop.f32.mrf.mxu0
        %v4192 = vadd.f32 %v4127, %v4191
        %v4193 = vpop.f32.mrf.mxu0
        %v4194 = vpop.f32.mrf.mxu0
        %v4195 = vpop.f32.mrf.mxu0
        %4196 = vdwg.mxu0
        %v4197 = vadd.f32 %v4044, %v4192
        %v4198 = vld [vmem:[%s1152] sm:$0x1]
        %v4199 = vld [vmem:[%s1155] sm:$0x1]
        %v4200 = vsel %vm1192, %v4197, 0.0
        %4201 = vadd.xlane.f32.xlu0 %v4200
        %v4202 = vpop.xlane.xlu0 %4201
        %v4203 = vmul.f32 %v4202, %v2553
        %v4204 = vsub.f32 %v4197, %v4203
        %v4205 = vmul.f32 %v4204, %v4204
        %v4206 = vsel %vm1192, %v4205, 0.0
        %4207 = vadd.xlane.f32.xlu0 %v4206
        %v4208 = vpop.xlane.xlu0 %4207
        %v4209 = vmul.f32 %v4208, %v2553
        %v4210 = vadd.f32 %v4209, 1e-05
        %v4211 = vrsqrt.pop %v4210
        %v4212 = vmul.f32 %v4204, %v4211
        %v4214 = vlaneseq
        %v4215 = vshrl.u32 %v4214, 7
        %v4216 = vsub.s32 0, %v4215
        %v4217 = vrot.slane %v4198, %v4216
        %v4219 = vmul.f32 %v4212, %v4217
        %v4221 = vlaneseq
        %v4222 = vshrl.u32 %v4221, 7
        %v4223 = vsub.s32 0, %v4222
        %v4224 = vrot.slane %v4199, %v4223
        %v4226 = vadd.f32 %v4219, %v4224
        %4227 = vst.msk [vmem:[%s1059] sm:$0xff] %vm1192, %v4226
        %p4228 = scmp.eq.s32.totalorder %s49, 1
        // Predicated region
        $region121: #{decoder_forward.1} parent=115 // pred_check
          %p4229 = pneg %p4228
        $region122: #{decoder_forward.1} parent=115 // pred_check_branch
          %4231 = sbr.rel (%p4229) target = $region124
        $region123: #{decoder_forward.1} parent=115 // pred_region
          %4232 = vst.msk [vmem:[%s1066] sm:$0xff] %vm1678, %v2028
          %4233 = vst.msk [vmem:[%s1066 + $0x8] sm:$0xff] %vm1678, %v2030
          %4234 = vst.msk [vmem:[%s1066 + $0x10] sm:$0xff] %vm1678, %v2032
          %4235 = vst.msk [vmem:[%s1066 + $0x18] sm:$0xff] %vm1678, %v2034
          %4236 = vst.msk [vmem:[%s1073] sm:$0xff] %vm1678, %v3498
          %4237 = vst.msk [vmem:[%s1073 + $0x8] sm:$0xff] %vm1678, %v3500
          %4238 = vst.msk [vmem:[%s1073 + $0x10] sm:$0xff] %vm1678, %v3502
          %4239 = vst.msk [vmem:[%s1073 + $0x18] sm:$0xff] %vm1678, %v3504
        $region124: #{decoder_forward.1} parent=115 // pred_fallthru
          _
        %s4240 = sand.u32 %s678, 1
        %s4241 = scalar_lea.sflag [#allocation3], %s4240
        %s4242 = sand.u32 %s678, 1
        %s4243 = smul.addr %s4242, 8
        %s4244 = scalar_lea.vmem [#allocation2], %s4243
        %s4245 = sand.u32 %s44, 1
        %s4246 = scalar_lea.sflag [#allocation5], %s4245
        %s4247 = sand.u32 %s704, 1
        %s4248 = smul.addr %s4247, 32
        %s4249 = scalar_lea.vmem [#allocation4], %s4248
        %s4250 = sand.u32 %s44, 1
        %s4251 = scalar_lea.sflag [#allocation5], %s4250
        %s4252 = sand.u32 %s730, 1
        %s4253 = smul.addr %s4252, 32
        %s4254 = scalar_lea.vmem [#allocation6], %s4253
        // Predicated region
        $region125: #{decoder_forward.1} parent=115 // pred_check
          %p4255 = pneg %p688
        $region126: #{decoder_forward.1} parent=115 // pred_check_branch
          %4257 = sbr.rel (%p4255) target = $region128
        $region127: #{decoder_forward.1} parent=115 // pred_region
          %s4259 = ssub.s32 128, 128
          %4260 = vsyncadd %s4241, %s4259
          %s4261 = smul.addr %s48, 128
          %s4262 = scalar_lea.hbm %s24, %s4261
          %s4264 = sshll.u32 %s4244, 4
          %s4265 = int_to_ptr.vmem [resolvable:$true] %s4264
          %4267 = dma.vmem_to_hbm [thread:$0]  %s4265, 128, %s4262, %s4241
        $region128: #{decoder_forward.1} parent=115 // pred_fallthru
          _
        // Predicated region
        $region129: #{decoder_forward.1} parent=115 // pred_check
          %p4268 = pneg %p714
        $region130: #{decoder_forward.1} parent=115 // pred_check_branch
          %4270 = sbr.rel (%p4268) target = $region132
        $region131: #{decoder_forward.1} parent=115 // pred_region
          %s4272 = ssub.s32 512, 512
          %4273 = vsyncadd %s4246, %s4272
          %s4274 = smul.addr %s48, 4
          %s4275 = smul.addr %s4274, 128
          %s4276 = scalar_lea.hbm %s25, %s4275
          %s4277 = sshll.u32 %s4249, 4
          %s4278 = int_to_ptr.vmem [resolvable:$true] %s4277
          %4283 = dma.vmem_to_hbm [thread:$0]  %s4278, 512, %s4276, %s4246, 128, 128, 8
        $region132: #{decoder_forward.1} parent=115 // pred_fallthru
          _
        // Predicated region
        $region133: #{decoder_forward.1} parent=115 // pred_check
          %p4284 = pneg %p740
        $region134: #{decoder_forward.1} parent=115 // pred_check_branch
          %4286 = sbr.rel (%p4284) target = $region136
        $region135: #{decoder_forward.1} parent=115 // pred_region
          %s4288 = ssub.s32 512, 512
          %4289 = vsyncadd %s4251, %s4288
          %s4290 = smul.addr %s48, 4
          %s4291 = smul.addr %s4290, 128
          %s4292 = scalar_lea.hbm %s26, %s4291
          %s4293 = sshll.u32 %s4254, 4
          %s4294 = int_to_ptr.vmem [resolvable:$true] %s4293
          %4299 = dma.vmem_to_hbm [thread:$0]  %s4294, 512, %s4292, %s4251, 128, 128, 8
        $region136: #{decoder_forward.1} parent=115 // pred_fallthru
          _
      $region116: #{decoder_forward.1} parent=5 // pred_fallthru
        _
      %p4300 = scmp.le.s32.totalorder 2, %s39
      // Predicated region
      $region137: #{decoder_forward.1} parent=5 // pred_check
        %p4301 = pneg %p4300
      $region138: #{decoder_forward.1} parent=5 // pred_check_branch
        %4303 = sbr.rel (%p4301) target = $region140
      $region139: #{decoder_forward.1} parent=5 // pred_region
        %s4304 = ssub.s32 %s39, 2
        // Predicated region
        $region141: #{decoder_forward.1} parent=139 // pred_check
          %p4305 = pneg %p694
        $region142: #{decoder_forward.1} parent=139 // pred_check_branch
          %4307 = sbr.rel (%p4305) target = $region144
        $region143: #{decoder_forward.1} parent=139 // pred_region
          %s4308 = sand.u32 %s679, 1
          %s4309 = scalar_lea.sflag [#allocation3], %s4308
          %s4310 = sand.u32 %s679, 1
          %s4311 = smul.addr %s4310, 8
          %s4312 = scalar_lea.vmem [#allocation2], %s4311
          %4313 = dma.done %s4309, 128
        $region144: #{decoder_forward.1} parent=139 // pred_fallthru
          _
        // Predicated region
        $region145: #{decoder_forward.1} parent=139 // pred_check
          %p4314 = pneg %p720
        $region146: #{decoder_forward.1} parent=139 // pred_check_branch
          %4316 = sbr.rel (%p4314) target = $region148
        $region147: #{decoder_forward.1} parent=139 // pred_region
          %s4317 = sand.u32 %s45, 1
          %s4318 = scalar_lea.sflag [#allocation5], %s4317
          %s4319 = sand.u32 %s705, 1
          %s4320 = smul.addr %s4319, 32
          %s4321 = scalar_lea.vmem [#allocation4], %s4320
          %4322 = dma.done %s4318, 512
        $region148: #{decoder_forward.1} parent=139 // pred_fallthru
          _
        // Predicated region
        $region149: #{decoder_forward.1} parent=139 // pred_check
          %p4323 = pneg %p746
        $region150: #{decoder_forward.1} parent=139 // pred_check_branch
          %4325 = sbr.rel (%p4323) target = $region152
        $region151: #{decoder_forward.1} parent=139 // pred_region
          %s4326 = sand.u32 %s45, 1
          %s4327 = scalar_lea.sflag [#allocation5], %s4326
          %s4328 = sand.u32 %s731, 1
          %s4329 = smul.addr %s4328, 32
          %s4330 = scalar_lea.vmem [#allocation6], %s4329
          %4331 = dma.done %s4327, 512
        $region152: #{decoder_forward.1} parent=139 // pred_fallthru
          _
      $region140: #{decoder_forward.1} parent=5 // pred_fallthru
        _
    $region6: #{decoder_forward.1} parent=1 // loop_footer
      %s43 = sadd.s32 1, %s39
    $region7: #{decoder_forward.1} parent=1 // loop_footer_branch
      %38 = sbr.rel target = $region3
    $region8: #{decoder_forward.1} parent=1 // loop_exit
      _
    %4332 = vsyncpa [#allocation3], 1
    %s4333 = scalar_lea.sflag [#allocation3], 1
    %4334 = vsyncpa %s4333, 1
    %4335 = vsyncpa [#allocation5], 1
    %s4336 = scalar_lea.sflag [#allocation5], 1
    %4337 = vsyncpa %s4336, 1

</llo_original>
